<compile_context>
chip_gen: v7x
topology: tpu7x:2x2x1
jax: 0.10.0
libtpu: 0.0.40
codegen_flags: <defaults>
</compile_context>

<pallas_src>
import jax
import jax.numpy as jnp
from jax.experimental import pallas as pl
from jax.experimental.pallas import tpu as pltpu


# ----------------------------------------------------------------------------
# Pallas kernel: one NRI-decoder step for ALL (batch, start-time) rows.
# Grid axis 0 = rollout step m (state carried in VMEM scratch).
# ----------------------------------------------------------------------------
def _decoder_rollout_kernel(x0_ref, zw_ref, gs_ref, gr_ref, grt_ref,
                            w1s_ref, w1r_ref, b1_ref, w2_ref, b2_ref,
                            wo1x_ref, wo1a_ref, bo1_ref,
                            wo2_ref, bo2_ref, wo3_ref, bo3_ref,
                            o_ref, state_ref):
    @pl.when(pl.program_id(0) == 0)
    def _():
        state_ref[...] = x0_ref[...]

    x = state_ref[...]                                                     # [Rn, D]

    # node2edge gather via block-diagonal one-hot matmuls over flattened rows
    send = jnp.dot(gs_ref[...], x, preferred_element_type=jnp.float32)     # [Re, D]
    recv = jnp.dot(gr_ref[...], x, preferred_element_type=jnp.float32)     # [Re, D]

    # per-edge-type message MLP: all K types fused (stacked W1, block-diag W2)
    h1e = jnp.maximum(
        jnp.dot(send, w1s_ref[...], preferred_element_type=jnp.float32)
        + jnp.dot(recv, w1r_ref[...], preferred_element_type=jnp.float32)
        + b1_ref[...], 0.0)                                                # [Re, K*H]
    msg = jnp.maximum(
        jnp.dot(h1e, w2_ref[...], preferred_element_type=jnp.float32)
        + b2_ref[...], 0.0)                                                # [Re, K*O]

    # gate every edge-type block by its probability (pre-broadcast in wrapper)
    gated = msg * zw_ref[...]                                              # [Re, K*O]

    # edge2node scatter-add (kept per edge type; the sum over K is folded
    # into the tiled output weight wo1a_ref), then concat-free output MLP
    aggk = jnp.dot(grt_ref[...], gated, preferred_element_type=jnp.float32)  # [Rn, K*O]
    h1 = jnp.maximum(
        jnp.dot(x, wo1x_ref[...], preferred_element_type=jnp.float32)
        + jnp.dot(aggk, wo1a_ref[...], preferred_element_type=jnp.float32)
        + bo1_ref[...], 0.0)
    h2 = jnp.maximum(
        jnp.dot(h1, wo2_ref[...], preferred_element_type=jnp.float32)
        + bo2_ref[...], 0.0)
    pred = jnp.dot(h2, wo3_ref[...], preferred_element_type=jnp.float32) + bo3_ref[...]

    nxt = x + pred                                                         # residual
    state_ref[...] = nxt                                                   # carry to step m+1
    o_ref[0] = nxt


def _rollout_pallas(x0_flat, operands, M):
    """Run the fused M-step decoder rollout.

    x0_flat: [B*T'*N, D] float32 initial states.
    Returns [M, B*T'*N, D] predictions (step m in slot m).
    """
    Rn, D = x0_flat.shape
    names = ("g_send", "g_recv", "g_recv_t", "w1s", "w1r", "b1c",
             "w2bd", "b2c", "wo1x", "wo1a_t", "bo1", "wo2", "bo2", "wo3", "bo3")
    ops = [operands[n] for n in names]

    in_specs = [
        pl.BlockSpec(x0_flat.shape, lambda m: (0, 0)),
        pl.BlockSpec(operands["z_wide"].shape, lambda m: (0, 0)),
    ]
    for w in ops:
        in_specs.append(pl.BlockSpec(w.shape, lambda m, n=w.ndim: (0,) * n))

    out_specs = pl.BlockSpec((1, Rn, D), lambda m: (m, 0, 0))

    return pl.pallas_call(
        _decoder_rollout_kernel,
        out_shape=jax.ShapeDtypeStruct((M, Rn, D), jnp.float32),
        grid=(M,),
        in_specs=in_specs,
        out_specs=out_specs,
        scratch_shapes=[pltpu.VMEM((Rn, D), jnp.float32)],
        compiler_params=pltpu.CompilerParams(
            dimension_semantics=("arbitrary",)),
    )(x0_flat, operands["z_wide"], *ops)


# ----------------------------------------------------------------------------
# Wrapper-side operand preparation (pure layout / weight re-packing, tiny).
# ----------------------------------------------------------------------------
def _prepare_operands(params, z_b, B, Tp):
    K, twoD, H = params["w1"].shape
    D = twoD // 2
    O = params["w2"].shape[2]
    E, N = params["rel_send"].shape
    BT = B * Tp

    # block-diagonal gather / scatter matrices over the flattened (b, t) rows
    eye_bt = jnp.eye(BT, dtype=jnp.float32)
    g_send = jnp.kron(eye_bt, params["rel_send"].astype(jnp.float32))   # [BT*E, BT*N]
    g_recv = jnp.kron(eye_bt, params["rel_rec"].astype(jnp.float32))    # [BT*E, BT*N]
    g_recv_t = g_recv.T                                                 # [BT*N, BT*E]

    # message MLP weights: stacked over K (layer 1) / block-diagonal (layer 2)
    w1s = jnp.concatenate([params["w1"][k, :D, :] for k in range(K)], axis=1)  # [D, K*H]
    w1r = jnp.concatenate([params["w1"][k, D:, :] for k in range(K)], axis=1)  # [D, K*H]
    b1c = jnp.concatenate([params["b1"][k] for k in range(K)], axis=1)         # [1, K*H]
    w2bd = jnp.zeros((K * H, K * O), jnp.float32)
    for k in range(K):
        w2bd = w2bd.at[k * H:(k + 1) * H, k * O:(k + 1) * O].set(params["w2"][k])
    b2c = jnp.concatenate([params["b2"][k] for k in range(K)], axis=1)          # [1, K*O]

    # output MLP layer 1 split (no concat); sum over K folded by tiling wo1_agg
    wo1x = params["wo1"][:D, :]                                                 # [D, n_hid]
    wo1a_t = jnp.tile(params["wo1"][D:, :], (K, 1))                             # [K*O, n_hid]

    # edge-type probabilities broadcast over time and message width
    z_bt = jnp.broadcast_to(z_b[:, None, :, :], (B, Tp, E, K)).reshape(BT * E, K)
    z_wide = jnp.repeat(z_bt, O, axis=1)                                        # [BT*E, K*O]

    return dict(z_wide=z_wide, g_send=g_send, g_recv=g_recv, g_recv_t=g_recv_t,
                w1s=w1s, w1r=w1r, b1c=b1c, w2bd=w2bd, b2c=b2c,
                wo1x=wo1x, wo1a_t=wo1a_t, bo1=params["bo1"],
                wo2=params["wo2"], bo2=params["bo2"],
                wo3=params["wo3"], bo3=params["bo3"])


# ----------------------------------------------------------------------------
# Model forward (decoder rollout) — matches OnlineNRIModel.forward semantics.
# ----------------------------------------------------------------------------
def online_nri_forward(states_enc, states_dec, params, edges, M=1):
    """Returns (output, edges) like OnlineNRIModel.forward.

    states_dec: [B, T, N, D];  edges: [E, B, K];  output: [B, T-1, N, D]
    """
    del states_enc  # encoder is not exercised by forward()
    B, T, N, D = states_dec.shape
    z_b = jnp.transpose(edges, (1, 0, 2)).astype(jnp.float32)          # [B, E, K]

    # every M-th timestep is a rollout starting point
    x0 = states_dec[:, ::M].astype(jnp.float32)                        # [B, T', N, D]
    Tp = x0.shape[1]

    operands = _prepare_operands(params, z_b, B, Tp)
    x0_flat = x0.reshape(B * Tp * N, D)

    out = _rollout_pallas(x0_flat, operands, M)                        # [M, B*T'*N, D]

    # re-interleave: step m's predictions land at output[:, m::M]
    out = out.reshape(M, B, Tp, N, D)
    out = jnp.transpose(out, (1, 2, 0, 3, 4)).reshape(B, Tp * M, N, D)
    output = out[:, :T - 1]
    return output, edges


# ----------------------------------------------------------------------------
# Pure-JAX reference (for correctness check).
# ----------------------------------------------------------------------------
def _single_step_ref(x, z_b, p):
    K = z_b.shape[-1]
    send = jnp.einsum('en,btnd->bted', p['rel_send'], x)
    recv = jnp.einsum('en,btnd->bted', p['rel_rec'], x)
    pre = jnp.concatenate([send, recv], axis=-1)                       # [B,T,E,2D]
    msgs = 0.0
    for k in range(K):
        h = jax.nn.relu(jnp.einsum('bted,dh->bteh', pre, p['w1'][k]) + p['b1'][k])
        m = jax.nn.relu(jnp.einsum('bteh,ho->bteo', h, p['w2'][k]) + p['b2'][k])
        msgs = msgs + m * z_b[:, None, :, k:k + 1]
    agg = jnp.einsum('ne,bteo->btno', p['rel_rec_t'], msgs)
    aug = jnp.concatenate([x, agg], axis=-1)
    h1 = jax.nn.relu(jnp.einsum('btnf,fh->btnh', aug, p['wo1']) + p['bo1'])
    h2 = jax.nn.relu(jnp.einsum('btnh,hg->btng', h1, p['wo2']) + p['bo2'])
    pred = jnp.einsum('btng,gd->btnd', h2, p['wo3']) + p['bo3']
    return x + pred


def _forward_ref(states_dec, params, edges, M=1):
    B, T, N, D = states_dec.shape
    z_b = jnp.transpose(edges, (1, 0, 2))
    last = states_dec[:, ::M]
    preds = []
    for _ in range(M):
        last = _single_step_ref(last, z_b, params)
        preds.append(last)
    Tm = preds[0].shape[1]
    output = jnp.zeros((B, Tm * M, N, D), jnp.float32)
    for i, p in enumerate(preds):
        output = output.at[:, i::M].set(p)
    return output[:, :T - 1]


# ----------------------------------------------------------------------------
# Deterministic parameter / input construction.
# ----------------------------------------------------------------------------
def make_params(key, N, D, K, msg_hid, msg_out, n_hid):
    # fully-connected directed edge list (i != j), matching NRI's `es`
    src = [i for i in range(N) for j in range(N) if i != j]
    dst = [j for i in range(N) for j in range(N) if i != j]
    es = jnp.array([src, dst], dtype=jnp.int32)                        # [2, E]
    rel_send = jax.nn.one_hot(es[0], N, dtype=jnp.float32)             # [E, N]
    rel_rec = jax.nn.one_hot(es[1], N, dtype=jnp.float32)              # [E, N]

    ks = jax.random.split(key, 10)

    def init(k, shape, scale=0.1):
        return jax.random.normal(k, shape, jnp.float32) * scale

    params = dict(
        rel_send=rel_send,
        rel_rec=rel_rec,
        rel_rec_t=rel_rec.T,                                           # [N, E]
        w1=init(ks[0], (K, 2 * D, msg_hid)),
        b1=init(ks[1], (K, 1, msg_hid)),
        w2=init(ks[2], (K, msg_hid, msg_out)),
        b2=init(ks[3], (K, 1, msg_out)),
        wo1=init(ks[4], (D + msg_out, n_hid)),
        bo1=init(ks[5], (1, n_hid)),
        wo2=init(ks[6], (n_hid, n_hid)),
        bo2=init(ks[7], (1, n_hid)),
        wo3=init(ks[8], (n_hid, D)),
        bo3=init(ks[9], (1, D)),
    )
    return params, es


if __name__ == "__main__":
    # Small shapes consistent with the module's [batch, step, node, dim] inputs.
    B, T, N, D = 2, 8, 5, 4
    K = 2                      # number of edge types
    msg_hid = msg_out = 32
    n_hid = 32

    key = jax.random.PRNGKey(0)
    k_par, k_enc, k_dec, k_edge = jax.random.split(key, 4)

    params, es = make_params(k_par, N, D, K, msg_hid, msg_out, n_hid)
    E = es.shape[1]

    states_enc = jax.random.normal(k_enc, (B, T, N, D), jnp.float32)
    states_dec = jax.random.normal(k_dec, (B, T, N, D), jnp.float32)
    # edge-type distribution, [E, B, K]  (row-softmax like the encoder output)
    edges = jax.nn.softmax(jax.random.normal(k_edge, (E, B, K), jnp.float32), axis=-1)

    # --- M = 1 (module default) ------------------------------------------
    output, edges_out = online_nri_forward(states_enc, states_dec, params, edges, M=1)
    output = jax.block_until_ready(output)
    assert output.shape == (B, T - 1, N, D)
    assert edges_out.shape == (E, B, K)
    ref = _forward_ref(states_dec, params, edges, M=1)
    assert jnp.allclose(output, ref, atol=1e-4, rtol=1e-4), "M=1 mismatch vs reference"

    # --- M = 2 (exercise the fused multi-step rollout + strided reassembly)
    output2, _ = online_nri_forward(states_enc, states_dec, params, edges, M=2)
    output2 = jax.block_until_ready(output2)
    ref2 = _forward_ref(states_dec, params, edges, M=2)
    assert output2.shape == (B, T - 1, N, D)
    assert jnp.allclose(output2, ref2, atol=1e-4, rtol=1e-4), "M=2 mismatch vs reference"

    print("KERNEL_OK")
</pallas_src>

<mosaic_0001>
module attributes {stable_mosaic.version = 11 : i64} {
  func.func @_decoder_rollout_kernel(%arg0: i32, %arg1: memref<80x4xf32, #tpu.memory_space<vmem>>, %arg2: memref<320x64xf32, #tpu.memory_space<vmem>>, %arg3: memref<320x80xf32, #tpu.memory_space<vmem>>, %arg4: memref<320x80xf32, #tpu.memory_space<vmem>>, %arg5: memref<80x320xf32, #tpu.memory_space<vmem>>, %arg6: memref<4x64xf32, #tpu.memory_space<vmem>>, %arg7: memref<4x64xf32, #tpu.memory_space<vmem>>, %arg8: memref<1x64xf32, #tpu.memory_space<vmem>>, %arg9: memref<64x64xf32, #tpu.memory_space<vmem>>, %arg10: memref<1x64xf32, #tpu.memory_space<vmem>>, %arg11: memref<4x32xf32, #tpu.memory_space<vmem>>, %arg12: memref<64x32xf32, #tpu.memory_space<vmem>>, %arg13: memref<1x32xf32, #tpu.memory_space<vmem>>, %arg14: memref<32x32xf32, #tpu.memory_space<vmem>>, %arg15: memref<1x32xf32, #tpu.memory_space<vmem>>, %arg16: memref<32x4xf32, #tpu.memory_space<vmem>>, %arg17: memref<1x4xf32, #tpu.memory_space<vmem>>, %arg18: memref<1x80x4xf32, #tpu.memory_space<vmem>>, %arg19: memref<80x4xf32, #tpu.memory_space<vmem>>) attributes {dimension_semantics = [#tpu.dimension_semantics<arbitrary>], iteration_bounds = array<i64: 1>, scalar_prefetch = 0 : i64, scratch_operands = 1 : i64, tpu.core_type = #tpu.core_type<tc>, window_params = [{pipeline_mode = #tpu.pipeline_mode<synchronous>, transform_indices = @transform_0, window_bounds = array<i64: 80, 4>}, {pipeline_mode = #tpu.pipeline_mode<synchronous>, transform_indices = @transform_1, window_bounds = array<i64: 320, 64>}, {pipeline_mode = #tpu.pipeline_mode<synchronous>, transform_indices = @transform_2, window_bounds = array<i64: 320, 80>}, {pipeline_mode = #tpu.pipeline_mode<synchronous>, transform_indices = @transform_3, window_bounds = array<i64: 320, 80>}, {pipeline_mode = #tpu.pipeline_mode<synchronous>, transform_indices = @transform_4, window_bounds = array<i64: 80, 320>}, {pipeline_mode = #tpu.pipeline_mode<synchronous>, transform_indices = @transform_5, window_bounds = array<i64: 4, 64>}, {pipeline_mode = #tpu.pipeline_mode<synchronous>, transform_indices = @transform_6, window_bounds = array<i64: 4, 64>}, {pipeline_mode = #tpu.pipeline_mode<synchronous>, transform_indices = @transform_7, window_bounds = array<i64: 1, 64>}, {pipeline_mode = #tpu.pipeline_mode<synchronous>, transform_indices = @transform_8, window_bounds = array<i64: 64, 64>}, {pipeline_mode = #tpu.pipeline_mode<synchronous>, transform_indices = @transform_9, window_bounds = array<i64: 1, 64>}, {pipeline_mode = #tpu.pipeline_mode<synchronous>, transform_indices = @transform_10, window_bounds = array<i64: 4, 32>}, {pipeline_mode = #tpu.pipeline_mode<synchronous>, transform_indices = @transform_11, window_bounds = array<i64: 64, 32>}, {pipeline_mode = #tpu.pipeline_mode<synchronous>, transform_indices = @transform_12, window_bounds = array<i64: 1, 32>}, {pipeline_mode = #tpu.pipeline_mode<synchronous>, transform_indices = @transform_13, window_bounds = array<i64: 32, 32>}, {pipeline_mode = #tpu.pipeline_mode<synchronous>, transform_indices = @transform_14, window_bounds = array<i64: 1, 32>}, {pipeline_mode = #tpu.pipeline_mode<synchronous>, transform_indices = @transform_15, window_bounds = array<i64: 32, 4>}, {pipeline_mode = #tpu.pipeline_mode<synchronous>, transform_indices = @transform_16, window_bounds = array<i64: 1, 4>}, {transform_indices = @transform_17, window_bounds = array<i64: 1, 80, 4>}]} {
    %c0_i32 = arith.constant 0 : i32
    %0 = arith.cmpi eq, %arg0, %c0_i32 : i32
    %1 = arith.extui %0 : i1 to i32
    %c0_i32_0 = arith.constant 0 : i32
    %2 = arith.cmpi ne, %1, %c0_i32_0 : i32
    scf.if %2 {
      %c0_52 = arith.constant 0 : index
      %c0_53 = arith.constant 0 : index
      %56 = vector.load %arg1[%c0_52, %c0_53] : memref<80x4xf32, #tpu.memory_space<vmem>>, vector<80x4xf32>
      %c0_54 = arith.constant 0 : index
      %c0_55 = arith.constant 0 : index
      %57 = vector.load %arg19[%c0_54, %c0_55] : memref<80x4xf32, #tpu.memory_space<vmem>>, vector<80x4xf32>
      tpu.vector_store %arg19[%c0_54, %c0_55], %56 {strides = array<i32>} : memref<80x4xf32, #tpu.memory_space<vmem>>, vector<80x4xf32>,
    } else {
    }
    %c0 = arith.constant 0 : index
    %c0_1 = arith.constant 0 : index
    %3 = vector.load %arg19[%c0, %c0_1] : memref<80x4xf32, #tpu.memory_space<vmem>>, vector<80x4xf32>
    %c0_2 = arith.constant 0 : index
    %c0_3 = arith.constant 0 : index
    %4 = vector.load %arg3[%c0_2, %c0_3] : memref<320x80xf32, #tpu.memory_space<vmem>>, vector<320x80xf32>
    %cst = arith.constant dense<0.000000e+00> : vector<320x4xf32>
    %5 = tpu.matmul %4, %3, %cst {dimension_numbers = #tpu.dot_dimension_numbers<[1], [0], [0], [1], [0, 0, 1, 1], [], []>} : vector<320x80xf32>, vector<80x4xf32>, vector<320x4xf32> -> vector<320x4xf32>
    %c0_4 = arith.constant 0 : index
    %c0_5 = arith.constant 0 : index
    %6 = vector.load %arg4[%c0_4, %c0_5] : memref<320x80xf32, #tpu.memory_space<vmem>>, vector<320x80xf32>
    %cst_6 = arith.constant dense<0.000000e+00> : vector<320x4xf32>
    %7 = tpu.matmul %6, %3, %cst_6 {dimension_numbers = #tpu.dot_dimension_numbers<[1], [0], [0], [1], [0, 0, 1, 1], [], []>} : vector<320x80xf32>, vector<80x4xf32>, vector<320x4xf32> -> vector<320x4xf32>
    %c0_7 = arith.constant 0 : index
    %c0_8 = arith.constant 0 : index
    %8 = vector.load %arg6[%c0_7, %c0_8] : memref<4x64xf32, #tpu.memory_space<vmem>>, vector<4x64xf32>
    %cst_9 = arith.constant dense<0.000000e+00> : vector<320x64xf32>
    %9 = tpu.matmul %5, %8, %cst_9 {dimension_numbers = #tpu.dot_dimension_numbers<[1], [0], [0], [1], [0, 0, 1, 1], [], []>} : vector<320x4xf32>, vector<4x64xf32>, vector<320x64xf32> -> vector<320x64xf32>
    %c0_10 = arith.constant 0 : index
    %c0_11 = arith.constant 0 : index
    %10 = vector.load %arg7[%c0_10, %c0_11] : memref<4x64xf32, #tpu.memory_space<vmem>>, vector<4x64xf32>
    %cst_12 = arith.constant dense<0.000000e+00> : vector<320x64xf32>
    %11 = tpu.matmul %7, %10, %cst_12 {dimension_numbers = #tpu.dot_dimension_numbers<[1], [0], [0], [1], [0, 0, 1, 1], [], []>} : vector<320x4xf32>, vector<4x64xf32>, vector<320x64xf32> -> vector<320x64xf32>
    %12 = arith.addf %9, %11 : vector<320x64xf32>
    %c0_13 = arith.constant 0 : index
    %c0_14 = arith.constant 0 : index
    %13 = vector.load %arg8[%c0_13, %c0_14] : memref<1x64xf32, #tpu.memory_space<vmem>>, vector<1x64xf32>
    %14 = vector.broadcast %13 : vector<1x64xf32> to vector<320x64xf32>
    %15 = arith.addf %12, %14 : vector<320x64xf32>
    %cst_15 = arith.constant 0.000000e+00 : f32
    %16 = vector.broadcast %cst_15 : f32 to vector<320x64xf32>
    %17 = arith.maximumf %15, %16 : vector<320x64xf32>
    %c0_16 = arith.constant 0 : index
    %c0_17 = arith.constant 0 : index
    %18 = vector.load %arg9[%c0_16, %c0_17] : memref<64x64xf32, #tpu.memory_space<vmem>>, vector<64x64xf32>
    %cst_18 = arith.constant dense<0.000000e+00> : vector<320x64xf32>
    %19 = tpu.matmul %17, %18, %cst_18 {dimension_numbers = #tpu.dot_dimension_numbers<[1], [0], [0], [1], [0, 0, 1, 1], [], []>} : vector<320x64xf32>, vector<64x64xf32>, vector<320x64xf32> -> vector<320x64xf32>
    %c0_19 = arith.constant 0 : index
    %c0_20 = arith.constant 0 : index
    %20 = vector.load %arg10[%c0_19, %c0_20] : memref<1x64xf32, #tpu.memory_space<vmem>>, vector<1x64xf32>
    %21 = vector.broadcast %20 : vector<1x64xf32> to vector<320x64xf32>
    %22 = arith.addf %19, %21 : vector<320x64xf32>
    %cst_21 = arith.constant 0.000000e+00 : f32
    %23 = vector.broadcast %cst_21 : f32 to vector<320x64xf32>
    %24 = arith.maximumf %22, %23 : vector<320x64xf32>
    %c0_22 = arith.constant 0 : index
    %c0_23 = arith.constant 0 : index
    %25 = vector.load %arg2[%c0_22, %c0_23] : memref<320x64xf32, #tpu.memory_space<vmem>>, vector<320x64xf32>
    %26 = arith.mulf %24, %25 : vector<320x64xf32>
    %c0_24 = arith.constant 0 : index
    %c0_25 = arith.constant 0 : index
    %27 = vector.load %arg5[%c0_24, %c0_25] : memref<80x320xf32, #tpu.memory_space<vmem>>, vector<80x320xf32>
    %cst_26 = arith.constant dense<0.000000e+00> : vector<80x64xf32>
    %28 = tpu.matmul %27, %26, %cst_26 {dimension_numbers = #tpu.dot_dimension_numbers<[1], [0], [0], [1], [0, 0, 1, 1], [], []>} : vector<80x320xf32>, vector<320x64xf32>, vector<80x64xf32> -> vector<80x64xf32>
    %c0_27 = arith.constant 0 : index
    %c0_28 = arith.constant 0 : index
    %29 = vector.load %arg11[%c0_27, %c0_28] : memref<4x32xf32, #tpu.memory_space<vmem>>, vector<4x32xf32>
    %cst_29 = arith.constant dense<0.000000e+00> : vector<80x32xf32>
    %30 = tpu.matmul %3, %29, %cst_29 {dimension_numbers = #tpu.dot_dimension_numbers<[1], [0], [0], [1], [0, 0, 1, 1], [], []>} : vector<80x4xf32>, vector<4x32xf32>, vector<80x32xf32> -> vector<80x32xf32>
    %c0_30 = arith.constant 0 : index
    %c0_31 = arith.constant 0 : index
    %31 = vector.load %arg12[%c0_30, %c0_31] : memref<64x32xf32, #tpu.memory_space<vmem>>, vector<64x32xf32>
    %cst_32 = arith.constant dense<0.000000e+00> : vector<80x32xf32>
    %32 = tpu.matmul %28, %31, %cst_32 {dimension_numbers = #tpu.dot_dimension_numbers<[1], [0], [0], [1], [0, 0, 1, 1], [], []>} : vector<80x64xf32>, vector<64x32xf32>, vector<80x32xf32> -> vector<80x32xf32>
    %33 = arith.addf %30, %32 : vector<80x32xf32>
    %c0_33 = arith.constant 0 : index
    %c0_34 = arith.constant 0 : index
    %34 = vector.load %arg13[%c0_33, %c0_34] : memref<1x32xf32, #tpu.memory_space<vmem>>, vector<1x32xf32>
    %35 = vector.broadcast %34 : vector<1x32xf32> to vector<80x32xf32>
    %36 = arith.addf %33, %35 : vector<80x32xf32>
    %cst_35 = arith.constant 0.000000e+00 : f32
    %37 = vector.broadcast %cst_35 : f32 to vector<80x32xf32>
    %38 = arith.maximumf %36, %37 : vector<80x32xf32>
    %c0_36 = arith.constant 0 : index
    %c0_37 = arith.constant 0 : index
    %39 = vector.load %arg14[%c0_36, %c0_37] : memref<32x32xf32, #tpu.memory_space<vmem>>, vector<32x32xf32>
    %cst_38 = arith.constant dense<0.000000e+00> : vector<80x32xf32>
    %40 = tpu.matmul %38, %39, %cst_38 {dimension_numbers = #tpu.dot_dimension_numbers<[1], [0], [0], [1], [0, 0, 1, 1], [], []>} : vector<80x32xf32>, vector<32x32xf32>, vector<80x32xf32> -> vector<80x32xf32>
    %c0_39 = arith.constant 0 : index
    %c0_40 = arith.constant 0 : index
    %41 = vector.load %arg15[%c0_39, %c0_40] : memref<1x32xf32, #tpu.memory_space<vmem>>, vector<1x32xf32>
    %42 = vector.broadcast %41 : vector<1x32xf32> to vector<80x32xf32>
    %43 = arith.addf %40, %42 : vector<80x32xf32>
    %cst_41 = arith.constant 0.000000e+00 : f32
    %44 = vector.broadcast %cst_41 : f32 to vector<80x32xf32>
    %45 = arith.maximumf %43, %44 : vector<80x32xf32>
    %c0_42 = arith.constant 0 : index
    %c0_43 = arith.constant 0 : index
    %46 = vector.load %arg16[%c0_42, %c0_43] : memref<32x4xf32, #tpu.memory_space<vmem>>, vector<32x4xf32>
    %cst_44 = arith.constant dense<0.000000e+00> : vector<80x4xf32>
    %47 = tpu.matmul %45, %46, %cst_44 {dimension_numbers = #tpu.dot_dimension_numbers<[1], [0], [0], [1], [0, 0, 1, 1], [], []>} : vector<80x32xf32>, vector<32x4xf32>, vector<80x4xf32> -> vector<80x4xf32>
    %c0_45 = arith.constant 0 : index
    %c0_46 = arith.constant 0 : index
    %48 = vector.load %arg17[%c0_45, %c0_46] : memref<1x4xf32, #tpu.memory_space<vmem>>, vector<1x4xf32>
    %49 = vector.broadcast %48 : vector<1x4xf32> to vector<80x4xf32>
    %50 = arith.addf %47, %49 : vector<80x4xf32>
    %51 = arith.addf %3, %50 : vector<80x4xf32>
    %c0_47 = arith.constant 0 : index
    %c0_48 = arith.constant 0 : index
    %52 = vector.load %arg19[%c0_47, %c0_48] : memref<80x4xf32, #tpu.memory_space<vmem>>, vector<80x4xf32>
    tpu.vector_store %arg19[%c0_47, %c0_48], %51 {strides = array<i32>} : memref<80x4xf32, #tpu.memory_space<vmem>>, vector<80x4xf32>,
    %c0_49 = arith.constant 0 : index
    %c0_50 = arith.constant 0 : index
    %c0_51 = arith.constant 0 : index
    %53 = vector.load %arg18[%c0_49, %c0_50, %c0_51] : memref<1x80x4xf32, #tpu.memory_space<vmem>>, vector<1x80x4xf32>
    %54 = vector.shape_cast %53 : vector<1x80x4xf32> to vector<80x4xf32>
    %55 = vector.shape_cast %51 : vector<80x4xf32> to vector<1x80x4xf32>
    tpu.vector_store %arg18[%c0_49, %c0_50, %c0_51], %55 {strides = array<i32>} : memref<1x80x4xf32, #tpu.memory_space<vmem>>, vector<1x80x4xf32>,
    return
  }
  func.func @transform_0(%arg0: i32) -> (i32, i32) {
    %c0_i32 = arith.constant 0 : i32
    %c0_i32_0 = arith.constant 0 : i32
    %c0_i32_1 = arith.constant 0 : i32
    return %c0_i32, %c0_i32_0 : i32, i32
  }
  func.func @transform_1(%arg0: i32) -> (i32, i32) {
    %c0_i32 = arith.constant 0 : i32
    %c0_i32_0 = arith.constant 0 : i32
    %c0_i32_1 = arith.constant 0 : i32
    return %c0_i32, %c0_i32_0 : i32, i32
  }
  func.func @transform_2(%arg0: i32) -> (i32, i32) {
    %c0_i32 = arith.constant 0 : i32
    %c0_i32_0 = arith.constant 0 : i32
    %c0_i32_1 = arith.constant 0 : i32
    return %c0_i32, %c0_i32_0 : i32, i32
  }
  func.func @transform_3(%arg0: i32) -> (i32, i32) {
    %c0_i32 = arith.constant 0 : i32
    %c0_i32_0 = arith.constant 0 : i32
    %c0_i32_1 = arith.constant 0 : i32
    return %c0_i32, %c0_i32_0 : i32, i32
  }
  func.func @transform_4(%arg0: i32) -> (i32, i32) {
    %c0_i32 = arith.constant 0 : i32
    %c0_i32_0 = arith.constant 0 : i32
    %c0_i32_1 = arith.constant 0 : i32
    return %c0_i32, %c0_i32_0 : i32, i32
  }
  func.func @transform_5(%arg0: i32) -> (i32, i32) {
    %c0_i32 = arith.constant 0 : i32
    %c0_i32_0 = arith.constant 0 : i32
    %c0_i32_1 = arith.constant 0 : i32
    return %c0_i32, %c0_i32_0 : i32, i32
  }
  func.func @transform_6(%arg0: i32) -> (i32, i32) {
    %c0_i32 = arith.constant 0 : i32
    %c0_i32_0 = arith.constant 0 : i32
    %c0_i32_1 = arith.constant 0 : i32
    return %c0_i32, %c0_i32_0 : i32, i32
  }
  func.func @transform_7(%arg0: i32) -> (i32, i32) {
    %c0_i32 = arith.constant 0 : i32
    %c0_i32_0 = arith.constant 0 : i32
    %c0_i32_1 = arith.constant 0 : i32
    return %c0_i32, %c0_i32_0 : i32, i32
  }
  func.func @transform_8(%arg0: i32) -> (i32, i32) {
    %c0_i32 = arith.constant 0 : i32
    %c0_i32_0 = arith.constant 0 : i32
    %c0_i32_1 = arith.constant 0 : i32
    return %c0_i32, %c0_i32_0 : i32, i32
  }
  func.func @transform_9(%arg0: i32) -> (i32, i32) {
    %c0_i32 = arith.constant 0 : i32
    %c0_i32_0 = arith.constant 0 : i32
    %c0_i32_1 = arith.constant 0 : i32
    return %c0_i32, %c0_i32_0 : i32, i32
  }
  func.func @transform_10(%arg0: i32) -> (i32, i32) {
    %c0_i32 = arith.constant 0 : i32
    %c0_i32_0 = arith.constant 0 : i32
    %c0_i32_1 = arith.constant 0 : i32
    return %c0_i32, %c0_i32_0 : i32, i32
  }
  func.func @transform_11(%arg0: i32) -> (i32, i32) {
    %c0_i32 = arith.constant 0 : i32
    %c0_i32_0 = arith.constant 0 : i32
    %c0_i32_1 = arith.constant 0 : i32
    return %c0_i32, %c0_i32_0 : i32, i32
  }
  func.func @transform_12(%arg0: i32) -> (i32, i32) {
    %c0_i32 = arith.constant 0 : i32
    %c0_i32_0 = arith.constant 0 : i32
    %c0_i32_1 = arith.constant 0 : i32
    return %c0_i32, %c0_i32_0 : i32, i32
  }
  func.func @transform_13(%arg0: i32) -> (i32, i32) {
    %c0_i32 = arith.constant 0 : i32
    %c0_i32_0 = arith.constant 0 : i32
    %c0_i32_1 = arith.constant 0 : i32
    return %c0_i32, %c0_i32_0 : i32, i32
  }
  func.func @transform_14(%arg0: i32) -> (i32, i32) {
    %c0_i32 = arith.constant 0 : i32
    %c0_i32_0 = arith.constant 0 : i32
    %c0_i32_1 = arith.constant 0 : i32
    return %c0_i32, %c0_i32_0 : i32, i32
  }
  func.func @transform_15(%arg0: i32) -> (i32, i32) {
    %c0_i32 = arith.constant 0 : i32
    %c0_i32_0 = arith.constant 0 : i32
    %c0_i32_1 = arith.constant 0 : i32
    return %c0_i32, %c0_i32_0 : i32, i32
  }
  func.func @transform_16(%arg0: i32) -> (i32, i32) {
    %c0_i32 = arith.constant 0 : i32
    %c0_i32_0 = arith.constant 0 : i32
    %c0_i32_1 = arith.constant 0 : i32
    return %c0_i32, %c0_i32_0 : i32, i32
  }
  func.func @transform_17(%arg0: i32) -> (i32, i32, i32) {
    %c0_i32 = arith.constant 0 : i32
    %c0_i32_0 = arith.constant 0 : i32
    %c0_i32_1 = arith.constant 0 : i32
    return %arg0, %c0_i32, %c0_i32_0 : i32, i32, i32
  }
}

</mosaic_0001>

<llo_original>
// kernel: tpu_custom_call.1
$region0: #{tpu_custom_call.1}
  #allocation0 [shape = 'u32[]', space=smem, size = 0x4, offset = 0x4, fixed_abs, tag = 'smem constant byte address 0x4 - core index']
  #allocation1 [shape = 'u32[144,128]{1,0:T(1,128)}', space=vmem, size = 0x12000, scoped, tag = 'internal scratch']
  #allocation2 [shape = 'f32[80,4]{1,0:T(8,128)}', space=vmem, size = 0xa000, scoped, tag = 'scratch operand']
  %s0 = inlined_call_operand.vmem [shape: f32[80,4], index: 0, kind: input, shape index: {}]
  %s1 = inlined_call_operand.vmem [shape: f32[320,64], index: 1, kind: input, shape index: {}]
  %s2 = inlined_call_operand.vmem [shape: f32[320,80], index: 2, kind: input, shape index: {}]
  %s3 = inlined_call_operand.vmem [shape: f32[320,80], index: 3, kind: input, shape index: {}]
  %s4 = inlined_call_operand.vmem [shape: f32[80,320], index: 4, kind: input, shape index: {}]
  %s5 = inlined_call_operand.vmem [shape: f32[4,64], index: 5, kind: input, shape index: {}]
  %s6 = inlined_call_operand.vmem [shape: f32[4,64], index: 6, kind: input, shape index: {}]
  %s7 = inlined_call_operand.vmem [shape: f32[1,64], index: 7, kind: input, shape index: {}]
  %s8 = inlined_call_operand.vmem [shape: f32[64,64], index: 8, kind: input, shape index: {}]
  %s9 = inlined_call_operand.vmem [shape: f32[1,64], index: 9, kind: input, shape index: {}]
  %s10 = inlined_call_operand.vmem [shape: f32[4,32], index: 10, kind: input, shape index: {}]
  %s11 = inlined_call_operand.vmem [shape: f32[64,32], index: 11, kind: input, shape index: {}]
  %s12 = inlined_call_operand.vmem [shape: f32[1,32], index: 12, kind: input, shape index: {}]
  %s13 = inlined_call_operand.vmem [shape: f32[32,32], index: 13, kind: input, shape index: {}]
  %s14 = inlined_call_operand.vmem [shape: f32[1,32], index: 14, kind: input, shape index: {}]
  %s15 = inlined_call_operand.vmem [shape: f32[32,4], index: 15, kind: input, shape index: {}]
  %s16 = inlined_call_operand.vmem [shape: f32[1,4], index: 16, kind: input, shape index: {}]
  %s17 = inlined_call_operand.vmem [shape: f32[1,80,4], index: 17, kind: output, shape index: {}]
  %s18 = sld [smem:[#allocation0]]
  $region82: #{tpu_custom_call.1} parent=0
    _
  %s20 = ssub.s32 1, %s18
  %s21 = scalar_select 0, %s20, %s18
  // Predicated region
  $region2: #{tpu_custom_call.1} parent=0 // pred_check
    _
  $region3: #{tpu_custom_call.1} parent=0 // pred_check_branch
    %23 = sbr.rel (0) target = $region5
  $region4: #{tpu_custom_call.1} parent=0 // pred_region
    _
  $region5: #{tpu_custom_call.1} parent=0 // pred_fallthru
    _
  // Predicated region
  $region6: #{tpu_custom_call.1} parent=0 // pred_check
    _
  $region7: #{tpu_custom_call.1} parent=0 // pred_check_branch
    %25 = sbr.rel (0) target = $region9
  $region8: #{tpu_custom_call.1} parent=0 // pred_region
    _
  $region9: #{tpu_custom_call.1} parent=0 // pred_fallthru
    _
  // Predicated region
  $region10: #{tpu_custom_call.1} parent=0 // pred_check
    _
  $region11: #{tpu_custom_call.1} parent=0 // pred_check_branch
    %27 = sbr.rel (0) target = $region13
  $region12: #{tpu_custom_call.1} parent=0 // pred_region
    _
  $region13: #{tpu_custom_call.1} parent=0 // pred_fallthru
    _
  // Predicated region
  $region14: #{tpu_custom_call.1} parent=0 // pred_check
    _
  $region15: #{tpu_custom_call.1} parent=0 // pred_check_branch
    %29 = sbr.rel (0) target = $region17
  $region16: #{tpu_custom_call.1} parent=0 // pred_region
    _
  $region17: #{tpu_custom_call.1} parent=0 // pred_fallthru
    _
  // Predicated region
  $region18: #{tpu_custom_call.1} parent=0 // pred_check
    _
  $region19: #{tpu_custom_call.1} parent=0 // pred_check_branch
    %31 = sbr.rel (0) target = $region21
  $region20: #{tpu_custom_call.1} parent=0 // pred_region
    _
  $region21: #{tpu_custom_call.1} parent=0 // pred_fallthru
    _
  // Predicated region
  $region22: #{tpu_custom_call.1} parent=0 // pred_check
    _
  $region23: #{tpu_custom_call.1} parent=0 // pred_check_branch
    %33 = sbr.rel (0) target = $region25
  $region24: #{tpu_custom_call.1} parent=0 // pred_region
    _
  $region25: #{tpu_custom_call.1} parent=0 // pred_fallthru
    _
  // Predicated region
  $region26: #{tpu_custom_call.1} parent=0 // pred_check
    _
  $region27: #{tpu_custom_call.1} parent=0 // pred_check_branch
    %35 = sbr.rel (0) target = $region29
  $region28: #{tpu_custom_call.1} parent=0 // pred_region
    _
  $region29: #{tpu_custom_call.1} parent=0 // pred_fallthru
    _
  // Predicated region
  $region30: #{tpu_custom_call.1} parent=0 // pred_check
    _
  $region31: #{tpu_custom_call.1} parent=0 // pred_check_branch
    %37 = sbr.rel (0) target = $region33
  $region32: #{tpu_custom_call.1} parent=0 // pred_region
    _
  $region33: #{tpu_custom_call.1} parent=0 // pred_fallthru
    _
  // Predicated region
  $region34: #{tpu_custom_call.1} parent=0 // pred_check
    _
  $region35: #{tpu_custom_call.1} parent=0 // pred_check_branch
    %39 = sbr.rel (0) target = $region37
  $region36: #{tpu_custom_call.1} parent=0 // pred_region
    _
  $region37: #{tpu_custom_call.1} parent=0 // pred_fallthru
    _
  // Predicated region
  $region38: #{tpu_custom_call.1} parent=0 // pred_check
    _
  $region39: #{tpu_custom_call.1} parent=0 // pred_check_branch
    %41 = sbr.rel (0) target = $region41
  $region40: #{tpu_custom_call.1} parent=0 // pred_region
    _
  $region41: #{tpu_custom_call.1} parent=0 // pred_fallthru
    _
  // Predicated region
  $region42: #{tpu_custom_call.1} parent=0 // pred_check
    _
  $region43: #{tpu_custom_call.1} parent=0 // pred_check_branch
    %43 = sbr.rel (0) target = $region45
  $region44: #{tpu_custom_call.1} parent=0 // pred_region
    _
  $region45: #{tpu_custom_call.1} parent=0 // pred_fallthru
    _
  // Predicated region
  $region46: #{tpu_custom_call.1} parent=0 // pred_check
    _
  $region47: #{tpu_custom_call.1} parent=0 // pred_check_branch
    %45 = sbr.rel (0) target = $region49
  $region48: #{tpu_custom_call.1} parent=0 // pred_region
    _
  $region49: #{tpu_custom_call.1} parent=0 // pred_fallthru
    _
  // Predicated region
  $region50: #{tpu_custom_call.1} parent=0 // pred_check
    _
  $region51: #{tpu_custom_call.1} parent=0 // pred_check_branch
    %47 = sbr.rel (0) target = $region53
  $region52: #{tpu_custom_call.1} parent=0 // pred_region
    _
  $region53: #{tpu_custom_call.1} parent=0 // pred_fallthru
    _
  // Predicated region
  $region54: #{tpu_custom_call.1} parent=0 // pred_check
    _
  $region55: #{tpu_custom_call.1} parent=0 // pred_check_branch
    %49 = sbr.rel (0) target = $region57
  $region56: #{tpu_custom_call.1} parent=0 // pred_region
    _
  $region57: #{tpu_custom_call.1} parent=0 // pred_fallthru
    _
  // Predicated region
  $region58: #{tpu_custom_call.1} parent=0 // pred_check
    _
  $region59: #{tpu_custom_call.1} parent=0 // pred_check_branch
    %51 = sbr.rel (0) target = $region61
  $region60: #{tpu_custom_call.1} parent=0 // pred_region
    _
  $region61: #{tpu_custom_call.1} parent=0 // pred_fallthru
    _
  // Predicated region
  $region62: #{tpu_custom_call.1} parent=0 // pred_check
    _
  $region63: #{tpu_custom_call.1} parent=0 // pred_check_branch
    %53 = sbr.rel (0) target = $region65
  $region64: #{tpu_custom_call.1} parent=0 // pred_region
    _
  $region65: #{tpu_custom_call.1} parent=0 // pred_fallthru
    _
  // Predicated region
  $region66: #{tpu_custom_call.1} parent=0 // pred_check
    _
  $region67: #{tpu_custom_call.1} parent=0 // pred_check_branch
    %55 = sbr.rel (0) target = $region69
  $region68: #{tpu_custom_call.1} parent=0 // pred_region
    _
  $region69: #{tpu_custom_call.1} parent=0 // pred_fallthru
    _
  %p56 = scmp.eq.s32.totalorder 0, 0
  // Predicated region
  $region70: #{tpu_custom_call.1} parent=0 // pred_check
    %p57 = pneg %p56
  $region71: #{tpu_custom_call.1} parent=0 // pred_check_branch
    %59 = sbr.rel (%p57) target = $region73
  $region72: #{tpu_custom_call.1} parent=0 // pred_region
    %v60 = vld [vmem:[%s0] sm:$0xff]
    %v61 = vld [vmem:[%s0 + $0x8] sm:$0xff]
    %v62 = vld [vmem:[%s0 + $0x10] sm:$0xff]
    %v63 = vld [vmem:[%s0 + $0x18] sm:$0xff]
    %v64 = vld [vmem:[%s0 + $0x20] sm:$0xff]
    %v65 = vld [vmem:[%s0 + $0x28] sm:$0xff]
    %v66 = vld [vmem:[%s0 + $0x30] sm:$0xff]
    %v67 = vld [vmem:[%s0 + $0x38] sm:$0xff]
    %v68 = vld [vmem:[%s0 + $0x40] sm:$0xff]
    %v69 = vld [vmem:[%s0 + $0x48] sm:$0xff]
    %vm70 = vcmask 31744
    %71 = vst.msk [vmem:[#allocation2] sm:$0xff] %vm70, %v60
    %72 = vst.msk [vmem:[#allocation2 + $0x8] sm:$0xff] %vm70, %v61
    %73 = vst.msk [vmem:[#allocation2 + $0x10] sm:$0xff] %vm70, %v62
    %74 = vst.msk [vmem:[#allocation2 + $0x18] sm:$0xff] %vm70, %v63
    %75 = vst.msk [vmem:[#allocation2 + $0x20] sm:$0xff] %vm70, %v64
    %76 = vst.msk [vmem:[#allocation2 + $0x28] sm:$0xff] %vm70, %v65
    %77 = vst.msk [vmem:[#allocation2 + $0x30] sm:$0xff] %vm70, %v66
    %78 = vst.msk [vmem:[#allocation2 + $0x38] sm:$0xff] %vm70, %v67
    %79 = vst.msk [vmem:[#allocation2 + $0x40] sm:$0xff] %vm70, %v68
    %80 = vst.msk [vmem:[#allocation2 + $0x48] sm:$0xff] %vm70, %v69
  $region73: #{tpu_custom_call.1} parent=0 // pred_fallthru
    _
  %v81 = vld [vmem:[#allocation2] sm:$0xff]
  %v82 = vld [vmem:[#allocation2 + $0x8] sm:$0xff]
  %v83 = vld [vmem:[#allocation2 + $0x10] sm:$0xff]
  %v84 = vld [vmem:[#allocation2 + $0x18] sm:$0xff]
  %v85 = vld [vmem:[#allocation2 + $0x20] sm:$0xff]
  %v86 = vld [vmem:[#allocation2 + $0x28] sm:$0xff]
  %v87 = vld [vmem:[#allocation2 + $0x30] sm:$0xff]
  %v88 = vld [vmem:[#allocation2 + $0x38] sm:$0xff]
  %v89 = vld [vmem:[#allocation2 + $0x40] sm:$0xff]
  %v90 = vld [vmem:[#allocation2 + $0x48] sm:$0xff]
  %v91 = vld [vmem:[%s2] sm:$0xff]
  %v92 = vld [vmem:[%s2 + $0x8] sm:$0xff]
  %v93 = vld [vmem:[%s2 + $0x10] sm:$0xff]
  %v94 = vld [vmem:[%s2 + $0x18] sm:$0xff]
  %v95 = vld [vmem:[%s2 + $0x20] sm:$0xff]
  %v96 = vld [vmem:[%s2 + $0x28] sm:$0xff]
  %v97 = vld [vmem:[%s2 + $0x30] sm:$0xff]
  %v98 = vld [vmem:[%s2 + $0x38] sm:$0xff]
  %v99 = vld [vmem:[%s2 + $0x40] sm:$0xff]
  %v100 = vld [vmem:[%s2 + $0x48] sm:$0xff]
  %v101 = vld [vmem:[%s2 + $0x50] sm:$0xff]
  %v102 = vld [vmem:[%s2 + $0x58] sm:$0xff]
  %v103 = vld [vmem:[%s2 + $0x60] sm:$0xff]
  %v104 = vld [vmem:[%s2 + $0x68] sm:$0xff]
  %v105 = vld [vmem:[%s2 + $0x70] sm:$0xff]
  %v106 = vld [vmem:[%s2 + $0x78] sm:$0xff]
  %v107 = vld [vmem:[%s2 + $0x80] sm:$0xff]
  %v108 = vld [vmem:[%s2 + $0x88] sm:$0xff]
  %v109 = vld [vmem:[%s2 + $0x90] sm:$0xff]
  %v110 = vld [vmem:[%s2 + $0x98] sm:$0xff]
  %v111 = vld [vmem:[%s2 + $0xa0] sm:$0xff]
  %v112 = vld [vmem:[%s2 + $0xa8] sm:$0xff]
  %v113 = vld [vmem:[%s2 + $0xb0] sm:$0xff]
  %v114 = vld [vmem:[%s2 + $0xb8] sm:$0xff]
  %v115 = vld [vmem:[%s2 + $0xc0] sm:$0xff]
  %v116 = vld [vmem:[%s2 + $0xc8] sm:$0xff]
  %v117 = vld [vmem:[%s2 + $0xd0] sm:$0xff]
  %v118 = vld [vmem:[%s2 + $0xd8] sm:$0xff]
  %v119 = vld [vmem:[%s2 + $0xe0] sm:$0xff]
  %v120 = vld [vmem:[%s2 + $0xe8] sm:$0xff]
  %v121 = vld [vmem:[%s2 + $0xf0] sm:$0xff]
  %v122 = vld [vmem:[%s2 + $0xf8] sm:$0xff]
  %v123 = vld [vmem:[%s2 + $0x100] sm:$0xff]
  %v124 = vld [vmem:[%s2 + $0x108] sm:$0xff]
  %v125 = vld [vmem:[%s2 + $0x110] sm:$0xff]
  %v126 = vld [vmem:[%s2 + $0x118] sm:$0xff]
  %v127 = vld [vmem:[%s2 + $0x120] sm:$0xff]
  %v128 = vld [vmem:[%s2 + $0x128] sm:$0xff]
  %v129 = vld [vmem:[%s2 + $0x130] sm:$0xff]
  %v130 = vld [vmem:[%s2 + $0x138] sm:$0xff]
  %vm131 = vcmask 654336
  %v133 = vsel %vm131, %v91, 0
  %v136 = vsel %vm131, %v92, 0
  %v139 = vsel %vm131, %v93, 0
  %v142 = vsel %vm131, %v94, 0
  %v145 = vsel %vm131, %v95, 0
  %v148 = vsel %vm131, %v96, 0
  %v151 = vsel %vm131, %v97, 0
  %v154 = vsel %vm131, %v98, 0
  %v157 = vsel %vm131, %v99, 0
  %v160 = vsel %vm131, %v100, 0
  %v163 = vsel %vm131, %v101, 0
  %v166 = vsel %vm131, %v102, 0
  %v169 = vsel %vm131, %v103, 0
  %v172 = vsel %vm131, %v104, 0
  %v175 = vsel %vm131, %v105, 0
  %v178 = vsel %vm131, %v106, 0
  %v181 = vsel %vm131, %v107, 0
  %v184 = vsel %vm131, %v108, 0
  %v187 = vsel %vm131, %v109, 0
  %v190 = vsel %vm131, %v110, 0
  %v193 = vsel %vm131, %v111, 0
  %v196 = vsel %vm131, %v112, 0
  %v199 = vsel %vm131, %v113, 0
  %v202 = vsel %vm131, %v114, 0
  %v205 = vsel %vm131, %v115, 0
  %v208 = vsel %vm131, %v116, 0
  %v211 = vsel %vm131, %v117, 0
  %v214 = vsel %vm131, %v118, 0
  %v217 = vsel %vm131, %v119, 0
  %v220 = vsel %vm131, %v120, 0
  %v223 = vsel %vm131, %v121, 0
  %v226 = vsel %vm131, %v122, 0
  %v229 = vsel %vm131, %v123, 0
  %v232 = vsel %vm131, %v124, 0
  %v235 = vsel %vm131, %v125, 0
  %v238 = vsel %vm131, %v126, 0
  %v241 = vsel %vm131, %v127, 0
  %v244 = vsel %vm131, %v128, 0
  %v247 = vsel %vm131, %v129, 0
  %v250 = vsel %vm131, %v130, 0
  %252 = vmatprep.subr.mxu0 0.0
  %253 = vmatpush1.msra.mxu0 %v81
  %254 = vmatprep.subr.mxu0 0.0
  %255 = vmatpush1.msra.mxu0 %v82
  %256 = vmatprep.subr.mxu0 0.0
  %257 = vmatpush1.msra.mxu0 %v83
  %258 = vmatprep.subr.mxu0 0.0
  %259 = vmatpush1.msra.mxu0 %v84
  %260 = vmatprep.subr.mxu0 0.0
  %261 = vmatpush1.msra.mxu0 %v85
  %262 = vmatprep.subr.mxu0 0.0
  %263 = vmatpush1.msra.mxu0 %v86
  %264 = vmatprep.subr.mxu0 0.0
  %265 = vmatpush1.msra.mxu0 %v87
  %266 = vmatprep.subr.mxu0 0.0
  %267 = vmatpush1.msra.mxu0 %v88
  %268 = vmatprep.subr.mxu0 0.0
  %269 = vmatpush1.msra.mxu0 %v89
  %270 = vmatprep.subr.mxu0 0.0
  %271 = vmatpush1.msra.mxu0 %v90
  %272 = vmatprep.subr.mxu0 0.0
  %273 = vmatpush1.msra.mxu0 0.0
  %274 = vmatprep.subr.mxu0 0.0
  %275 = vmatpush1.msra.mxu0 0.0
  %276 = vmatprep.subr.mxu0 0.0
  %277 = vmatpush1.msra.mxu0 0.0
  %278 = vmatprep.subr.mxu0 0.0
  %279 = vmatpush1.msra.mxu0 0.0
  %280 = vmatprep.subr.mxu0 0.0
  %281 = vmatpush1.msra.mxu0 0.0
  %282 = vmatprep.subr.mxu0 0.0
  %283 = vmatpush1.msra.mxu0 0.0
  %284 = vmatprep.subr.mxu0 0.0
  %285 = vmatpush1.msra.mxu0 0.0
  %286 = vmatprep.subr.mxu0 0.0
  %287 = vmatpush1.msra.mxu0 0.0
  %288 = vmatprep.subr.mxu0 0.0
  %289 = vmatpush1.msra.mxu0 0.0
  %290 = vmatprep.subr.mxu0 0.0
  %291 = vmatpush1.msra.mxu0 0.0
  %292 = vmatprep.subr.mxu0 0.0
  %293 = vmatpush1.msra.mxu0 0.0
  %294 = vmatprep.subr.mxu0 0.0
  %295 = vmatpush1.msra.mxu0 0.0
  %296 = vmatprep.subr.mxu0 0.0
  %297 = vmatpush1.msra.mxu0 0.0
  %298 = vmatprep.subr.mxu0 0.0
  %299 = vmatpush1.msra.mxu0 0.0
  %300 = vmatprep.subr.mxu0 0.0
  %301 = vmatpush1.msra.mxu0 0.0
  %302 = vmatprep.subr.mxu0 0.0
  %303 = vmatpush1.msra.mxu0 0.0
  %304 = vmatprep.subr.mxu0 0.0
  %305 = vmatpush1.msra.mxu0 0.0
  %306 = vmatprep.subr.mxu0 0.0
  %307 = vmatpush1.msra.mxu0 0.0
  %308 = vmatprep.subr.mxu0 0.0
  %309 = vmatpush1.msra.mxu0 0.0
  %310 = vmatprep.subr.mxu0 0.0
  %311 = vmatpush1.msra.mxu0 0.0
  %312 = vmatprep.subr.mxu0 0.0
  %313 = vmatpush1.msra.mxu0 0.0
  %314 = vmatprep.subr.mxu0 0.0
  %315 = vmatpush1.msra.mxu0 0.0
  %316 = vmatprep.mubr.f32.mxu0 0.0
  %317 = vmatmul.mubr.f32.gmra.mrb[0].mxu0 %v133
  %v318 = vpop.f32.mrb[0].mxu0
  %v319 = vadd.f32 0.0, %v318
  %v320 = vpop.f32.mrb[0].mxu0
  %321 = vmatprep.mubr.f32.mxu0 0.0
  %322 = vmatmul.mubr.f32.gmra.mrb[0].mxu0 %v136
  %v323 = vpop.f32.mrb[0].mxu0
  %v324 = vadd.f32 0.0, %v323
  %v325 = vpop.f32.mrb[0].mxu0
  %326 = vmatprep.mubr.f32.mxu0 0.0
  %327 = vmatmul.mubr.f32.gmra.mrb[0].mxu0 %v139
  %v328 = vpop.f32.mrb[0].mxu0
  %v329 = vadd.f32 0.0, %v328
  %v330 = vpop.f32.mrb[0].mxu0
  %331 = vmatprep.mubr.f32.mxu0 0.0
  %332 = vmatmul.mubr.f32.gmra.mrb[0].mxu0 %v142
  %v333 = vpop.f32.mrb[0].mxu0
  %v334 = vadd.f32 0.0, %v333
  %v335 = vpop.f32.mrb[0].mxu0
  %336 = vmatprep.mubr.f32.mxu0 0.0
  %337 = vmatmul.mubr.f32.gmra.mrb[0].mxu0 %v145
  %v338 = vpop.f32.mrb[0].mxu0
  %v339 = vadd.f32 0.0, %v338
  %v340 = vpop.f32.mrb[0].mxu0
  %341 = vmatprep.mubr.f32.mxu0 0.0
  %342 = vmatmul.mubr.f32.gmra.mrb[0].mxu0 %v148
  %v343 = vpop.f32.mrb[0].mxu0
  %v344 = vadd.f32 0.0, %v343
  %v345 = vpop.f32.mrb[0].mxu0
  %346 = vmatprep.mubr.f32.mxu0 0.0
  %347 = vmatmul.mubr.f32.gmra.mrb[0].mxu0 %v151
  %v348 = vpop.f32.mrb[0].mxu0
  %v349 = vadd.f32 0.0, %v348
  %v350 = vpop.f32.mrb[0].mxu0
  %351 = vmatprep.mubr.f32.mxu0 0.0
  %352 = vmatmul.mubr.f32.gmra.mrb[0].mxu0 %v154
  %v353 = vpop.f32.mrb[0].mxu0
  %v354 = vadd.f32 0.0, %v353
  %v355 = vpop.f32.mrb[0].mxu0
  %356 = vmatprep.mubr.f32.mxu0 0.0
  %357 = vmatmul.mubr.f32.gmra.mrb[0].mxu0 %v157
  %v358 = vpop.f32.mrb[0].mxu0
  %v359 = vadd.f32 0.0, %v358
  %v360 = vpop.f32.mrb[0].mxu0
  %361 = vmatprep.mubr.f32.mxu0 0.0
  %362 = vmatmul.mubr.f32.gmra.mrb[0].mxu0 %v160
  %v363 = vpop.f32.mrb[0].mxu0
  %v364 = vadd.f32 0.0, %v363
  %v365 = vpop.f32.mrb[0].mxu0
  %366 = vmatprep.mubr.f32.mxu0 0.0
  %367 = vmatmul.mubr.f32.gmra.mrb[0].mxu0 %v163
  %v368 = vpop.f32.mrb[0].mxu0
  %v369 = vadd.f32 0.0, %v368
  %v370 = vpop.f32.mrb[0].mxu0
  %371 = vmatprep.mubr.f32.mxu0 0.0
  %372 = vmatmul.mubr.f32.gmra.mrb[0].mxu0 %v166
  %v373 = vpop.f32.mrb[0].mxu0
  %v374 = vadd.f32 0.0, %v373
  %v375 = vpop.f32.mrb[0].mxu0
  %376 = vmatprep.mubr.f32.mxu0 0.0
  %377 = vmatmul.mubr.f32.gmra.mrb[0].mxu0 %v169
  %v378 = vpop.f32.mrb[0].mxu0
  %v379 = vadd.f32 0.0, %v378
  %v380 = vpop.f32.mrb[0].mxu0
  %381 = vmatprep.mubr.f32.mxu0 0.0
  %382 = vmatmul.mubr.f32.gmra.mrb[0].mxu0 %v172
  %v383 = vpop.f32.mrb[0].mxu0
  %v384 = vadd.f32 0.0, %v383
  %v385 = vpop.f32.mrb[0].mxu0
  %386 = vmatprep.mubr.f32.mxu0 0.0
  %387 = vmatmul.mubr.f32.gmra.mrb[0].mxu0 %v175
  %v388 = vpop.f32.mrb[0].mxu0
  %v389 = vadd.f32 0.0, %v388
  %v390 = vpop.f32.mrb[0].mxu0
  %391 = vmatprep.mubr.f32.mxu0 0.0
  %392 = vmatmul.mubr.f32.gmra.mrb[0].mxu0 %v178
  %v393 = vpop.f32.mrb[0].mxu0
  %v394 = vadd.f32 0.0, %v393
  %v395 = vpop.f32.mrb[0].mxu0
  %396 = vmatprep.mubr.f32.mxu0 0.0
  %397 = vmatmul.mubr.f32.gmra.mrb[0].mxu0 %v181
  %v398 = vpop.f32.mrb[0].mxu0
  %v399 = vadd.f32 0.0, %v398
  %v400 = vpop.f32.mrb[0].mxu0
  %401 = vmatprep.mubr.f32.mxu0 0.0
  %402 = vmatmul.mubr.f32.gmra.mrb[0].mxu0 %v184
  %v403 = vpop.f32.mrb[0].mxu0
  %v404 = vadd.f32 0.0, %v403
  %v405 = vpop.f32.mrb[0].mxu0
  %406 = vmatprep.mubr.f32.mxu0 0.0
  %407 = vmatmul.mubr.f32.gmra.mrb[0].mxu0 %v187
  %v408 = vpop.f32.mrb[0].mxu0
  %v409 = vadd.f32 0.0, %v408
  %v410 = vpop.f32.mrb[0].mxu0
  %411 = vmatprep.mubr.f32.mxu0 0.0
  %412 = vmatmul.mubr.f32.gmra.mrb[0].mxu0 %v190
  %v413 = vpop.f32.mrb[0].mxu0
  %v414 = vadd.f32 0.0, %v413
  %v415 = vpop.f32.mrb[0].mxu0
  %416 = vmatprep.mubr.f32.mxu0 0.0
  %417 = vmatmul.mubr.f32.gmra.mrb[0].mxu0 %v193
  %v418 = vpop.f32.mrb[0].mxu0
  %v419 = vadd.f32 0.0, %v418
  %v420 = vpop.f32.mrb[0].mxu0
  %421 = vmatprep.mubr.f32.mxu0 0.0
  %422 = vmatmul.mubr.f32.gmra.mrb[0].mxu0 %v196
  %v423 = vpop.f32.mrb[0].mxu0
  %v424 = vadd.f32 0.0, %v423
  %v425 = vpop.f32.mrb[0].mxu0
  %426 = vmatprep.mubr.f32.mxu0 0.0
  %427 = vmatmul.mubr.f32.gmra.mrb[0].mxu0 %v199
  %v428 = vpop.f32.mrb[0].mxu0
  %v429 = vadd.f32 0.0, %v428
  %v430 = vpop.f32.mrb[0].mxu0
  %431 = vmatprep.mubr.f32.mxu0 0.0
  %432 = vmatmul.mubr.f32.gmra.mrb[0].mxu0 %v202
  %v433 = vpop.f32.mrb[0].mxu0
  %v434 = vadd.f32 0.0, %v433
  %v435 = vpop.f32.mrb[0].mxu0
  %436 = vmatprep.mubr.f32.mxu0 0.0
  %437 = vmatmul.mubr.f32.gmra.mrb[0].mxu0 %v205
  %v438 = vpop.f32.mrb[0].mxu0
  %v439 = vadd.f32 0.0, %v438
  %v440 = vpop.f32.mrb[0].mxu0
  %441 = vmatprep.mubr.f32.mxu0 0.0
  %442 = vmatmul.mubr.f32.gmra.mrb[0].mxu0 %v208
  %v443 = vpop.f32.mrb[0].mxu0
  %v444 = vadd.f32 0.0, %v443
  %v445 = vpop.f32.mrb[0].mxu0
  %446 = vmatprep.mubr.f32.mxu0 0.0
  %447 = vmatmul.mubr.f32.gmra.mrb[0].mxu0 %v211
  %v448 = vpop.f32.mrb[0].mxu0
  %v449 = vadd.f32 0.0, %v448
  %v450 = vpop.f32.mrb[0].mxu0
  %451 = vmatprep.mubr.f32.mxu0 0.0
  %452 = vmatmul.mubr.f32.gmra.mrb[0].mxu0 %v214
  %v453 = vpop.f32.mrb[0].mxu0
  %v454 = vadd.f32 0.0, %v453
  %v455 = vpop.f32.mrb[0].mxu0
  %456 = vmatprep.mubr.f32.mxu0 0.0
  %457 = vmatmul.mubr.f32.gmra.mrb[0].mxu0 %v217
  %v458 = vpop.f32.mrb[0].mxu0
  %v459 = vadd.f32 0.0, %v458
  %v460 = vpop.f32.mrb[0].mxu0
  %461 = vmatprep.mubr.f32.mxu0 0.0
  %462 = vmatmul.mubr.f32.gmra.mrb[0].mxu0 %v220
  %v463 = vpop.f32.mrb[0].mxu0
  %v464 = vadd.f32 0.0, %v463
  %v465 = vpop.f32.mrb[0].mxu0
  %466 = vmatprep.mubr.f32.mxu0 0.0
  %467 = vmatmul.mubr.f32.gmra.mrb[0].mxu0 %v223
  %v468 = vpop.f32.mrb[0].mxu0
  %v469 = vadd.f32 0.0, %v468
  %v470 = vpop.f32.mrb[0].mxu0
  %471 = vmatprep.mubr.f32.mxu0 0.0
  %472 = vmatmul.mubr.f32.gmra.mrb[0].mxu0 %v226
  %v473 = vpop.f32.mrb[0].mxu0
  %v474 = vadd.f32 0.0, %v473
  %v475 = vpop.f32.mrb[0].mxu0
  %476 = vmatprep.mubr.f32.mxu0 0.0
  %477 = vmatmul.mubr.f32.gmra.mrb[0].mxu0 %v229
  %v478 = vpop.f32.mrb[0].mxu0
  %v479 = vadd.f32 0.0, %v478
  %v480 = vpop.f32.mrb[0].mxu0
  %481 = vmatprep.mubr.f32.mxu0 0.0
  %482 = vmatmul.mubr.f32.gmra.mrb[0].mxu0 %v232
  %v483 = vpop.f32.mrb[0].mxu0
  %v484 = vadd.f32 0.0, %v483
  %v485 = vpop.f32.mrb[0].mxu0
  %486 = vmatprep.mubr.f32.mxu0 0.0
  %487 = vmatmul.mubr.f32.gmra.mrb[0].mxu0 %v235
  %v488 = vpop.f32.mrb[0].mxu0
  %v489 = vadd.f32 0.0, %v488
  %v490 = vpop.f32.mrb[0].mxu0
  %491 = vmatprep.mubr.f32.mxu0 0.0
  %492 = vmatmul.mubr.f32.gmra.mrb[0].mxu0 %v238
  %v493 = vpop.f32.mrb[0].mxu0
  %v494 = vadd.f32 0.0, %v493
  %v495 = vpop.f32.mrb[0].mxu0
  %496 = vmatprep.mubr.f32.mxu0 0.0
  %497 = vmatmul.mubr.f32.gmra.mrb[0].mxu0 %v241
  %v498 = vpop.f32.mrb[0].mxu0
  %v499 = vadd.f32 0.0, %v498
  %v500 = vpop.f32.mrb[0].mxu0
  %501 = vmatprep.mubr.f32.mxu0 0.0
  %502 = vmatmul.mubr.f32.gmra.mrb[0].mxu0 %v244
  %v503 = vpop.f32.mrb[0].mxu0
  %v504 = vadd.f32 0.0, %v503
  %v505 = vpop.f32.mrb[0].mxu0
  %506 = vmatprep.mubr.f32.mxu0 0.0
  %507 = vmatmul.mubr.f32.gmra.mrb[0].mxu0 %v247
  %v508 = vpop.f32.mrb[0].mxu0
  %v509 = vadd.f32 0.0, %v508
  %v510 = vpop.f32.mrb[0].mxu0
  %511 = vmatprep.mubr.f32.mxu0 0.0
  %512 = vmatmul.mubr.f32.gmra.mrb[0].mxu0 %v250
  %v513 = vpop.f32.mrb[0].mxu0
  %v514 = vadd.f32 0.0, %v513
  %v515 = vpop.f32.mrb[0].mxu0
  %516 = vdwg.mxu0
  %v517 = vld [vmem:[%s3] sm:$0xff]
  %v518 = vld [vmem:[%s3 + $0x8] sm:$0xff]
  %v519 = vld [vmem:[%s3 + $0x10] sm:$0xff]
  %v520 = vld [vmem:[%s3 + $0x18] sm:$0xff]
  %v521 = vld [vmem:[%s3 + $0x20] sm:$0xff]
  %v522 = vld [vmem:[%s3 + $0x28] sm:$0xff]
  %v523 = vld [vmem:[%s3 + $0x30] sm:$0xff]
  %v524 = vld [vmem:[%s3 + $0x38] sm:$0xff]
  %v525 = vld [vmem:[%s3 + $0x40] sm:$0xff]
  %v526 = vld [vmem:[%s3 + $0x48] sm:$0xff]
  %v527 = vld [vmem:[%s3 + $0x50] sm:$0xff]
  %v528 = vld [vmem:[%s3 + $0x58] sm:$0xff]
  %v529 = vld [vmem:[%s3 + $0x60] sm:$0xff]
  %v530 = vld [vmem:[%s3 + $0x68] sm:$0xff]
  %v531 = vld [vmem:[%s3 + $0x70] sm:$0xff]
  %v532 = vld [vmem:[%s3 + $0x78] sm:$0xff]
  %v533 = vld [vmem:[%s3 + $0x80] sm:$0xff]
  %v534 = vld [vmem:[%s3 + $0x88] sm:$0xff]
  %v535 = vld [vmem:[%s3 + $0x90] sm:$0xff]
  %v536 = vld [vmem:[%s3 + $0x98] sm:$0xff]
  %v537 = vld [vmem:[%s3 + $0xa0] sm:$0xff]
  %v538 = vld [vmem:[%s3 + $0xa8] sm:$0xff]
  %v539 = vld [vmem:[%s3 + $0xb0] sm:$0xff]
  %v540 = vld [vmem:[%s3 + $0xb8] sm:$0xff]
  %v541 = vld [vmem:[%s3 + $0xc0] sm:$0xff]
  %v542 = vld [vmem:[%s3 + $0xc8] sm:$0xff]
  %v543 = vld [vmem:[%s3 + $0xd0] sm:$0xff]
  %v544 = vld [vmem:[%s3 + $0xd8] sm:$0xff]
  %v545 = vld [vmem:[%s3 + $0xe0] sm:$0xff]
  %v546 = vld [vmem:[%s3 + $0xe8] sm:$0xff]
  %v547 = vld [vmem:[%s3 + $0xf0] sm:$0xff]
  %v548 = vld [vmem:[%s3 + $0xf8] sm:$0xff]
  %v549 = vld [vmem:[%s3 + $0x100] sm:$0xff]
  %v550 = vld [vmem:[%s3 + $0x108] sm:$0xff]
  %v551 = vld [vmem:[%s3 + $0x110] sm:$0xff]
  %v552 = vld [vmem:[%s3 + $0x118] sm:$0xff]
  %v553 = vld [vmem:[%s3 + $0x120] sm:$0xff]
  %v554 = vld [vmem:[%s3 + $0x128] sm:$0xff]
  %v555 = vld [vmem:[%s3 + $0x130] sm:$0xff]
  %v556 = vld [vmem:[%s3 + $0x138] sm:$0xff]
  %v558 = vsel %vm131, %v517, 0
  %v561 = vsel %vm131, %v518, 0
  %v564 = vsel %vm131, %v519, 0
  %v567 = vsel %vm131, %v520, 0
  %v570 = vsel %vm131, %v521, 0
  %v573 = vsel %vm131, %v522, 0
  %v576 = vsel %vm131, %v523, 0
  %v579 = vsel %vm131, %v524, 0
  %v582 = vsel %vm131, %v525, 0
  %v585 = vsel %vm131, %v526, 0
  %v588 = vsel %vm131, %v527, 0
  %v591 = vsel %vm131, %v528, 0
  %v594 = vsel %vm131, %v529, 0
  %v597 = vsel %vm131, %v530, 0
  %v600 = vsel %vm131, %v531, 0
  %v603 = vsel %vm131, %v532, 0
  %v606 = vsel %vm131, %v533, 0
  %v609 = vsel %vm131, %v534, 0
  %v612 = vsel %vm131, %v535, 0
  %v615 = vsel %vm131, %v536, 0
  %v618 = vsel %vm131, %v537, 0
  %v621 = vsel %vm131, %v538, 0
  %v624 = vsel %vm131, %v539, 0
  %v627 = vsel %vm131, %v540, 0
  %v630 = vsel %vm131, %v541, 0
  %v633 = vsel %vm131, %v542, 0
  %v636 = vsel %vm131, %v543, 0
  %v639 = vsel %vm131, %v544, 0
  %v642 = vsel %vm131, %v545, 0
  %v645 = vsel %vm131, %v546, 0
  %v648 = vsel %vm131, %v547, 0
  %v651 = vsel %vm131, %v548, 0
  %v654 = vsel %vm131, %v549, 0
  %v657 = vsel %vm131, %v550, 0
  %v660 = vsel %vm131, %v551, 0
  %v663 = vsel %vm131, %v552, 0
  %v666 = vsel %vm131, %v553, 0
  %v669 = vsel %vm131, %v554, 0
  %v672 = vsel %vm131, %v555, 0
  %v675 = vsel %vm131, %v556, 0
  %677 = vmatprep.subr.mxu0 0.0
  %678 = vmatpush1.msra.mxu0 %v81
  %679 = vmatprep.subr.mxu0 0.0
  %680 = vmatpush1.msra.mxu0 %v82
  %681 = vmatprep.subr.mxu0 0.0
  %682 = vmatpush1.msra.mxu0 %v83
  %683 = vmatprep.subr.mxu0 0.0
  %684 = vmatpush1.msra.mxu0 %v84
  %685 = vmatprep.subr.mxu0 0.0
  %686 = vmatpush1.msra.mxu0 %v85
  %687 = vmatprep.subr.mxu0 0.0
  %688 = vmatpush1.msra.mxu0 %v86
  %689 = vmatprep.subr.mxu0 0.0
  %690 = vmatpush1.msra.mxu0 %v87
  %691 = vmatprep.subr.mxu0 0.0
  %692 = vmatpush1.msra.mxu0 %v88
  %693 = vmatprep.subr.mxu0 0.0
  %694 = vmatpush1.msra.mxu0 %v89
  %695 = vmatprep.subr.mxu0 0.0
  %696 = vmatpush1.msra.mxu0 %v90
  %697 = vmatprep.subr.mxu0 0.0
  %698 = vmatpush1.msra.mxu0 0.0
  %699 = vmatprep.subr.mxu0 0.0
  %700 = vmatpush1.msra.mxu0 0.0
  %701 = vmatprep.subr.mxu0 0.0
  %702 = vmatpush1.msra.mxu0 0.0
  %703 = vmatprep.subr.mxu0 0.0
  %704 = vmatpush1.msra.mxu0 0.0
  %705 = vmatprep.subr.mxu0 0.0
  %706 = vmatpush1.msra.mxu0 0.0
  %707 = vmatprep.subr.mxu0 0.0
  %708 = vmatpush1.msra.mxu0 0.0
  %709 = vmatprep.subr.mxu0 0.0
  %710 = vmatpush1.msra.mxu0 0.0
  %711 = vmatprep.subr.mxu0 0.0
  %712 = vmatpush1.msra.mxu0 0.0
  %713 = vmatprep.subr.mxu0 0.0
  %714 = vmatpush1.msra.mxu0 0.0
  %715 = vmatprep.subr.mxu0 0.0
  %716 = vmatpush1.msra.mxu0 0.0
  %717 = vmatprep.subr.mxu0 0.0
  %718 = vmatpush1.msra.mxu0 0.0
  %719 = vmatprep.subr.mxu0 0.0
  %720 = vmatpush1.msra.mxu0 0.0
  %721 = vmatprep.subr.mxu0 0.0
  %722 = vmatpush1.msra.mxu0 0.0
  %723 = vmatprep.subr.mxu0 0.0
  %724 = vmatpush1.msra.mxu0 0.0
  %725 = vmatprep.subr.mxu0 0.0
  %726 = vmatpush1.msra.mxu0 0.0
  %727 = vmatprep.subr.mxu0 0.0
  %728 = vmatpush1.msra.mxu0 0.0
  %729 = vmatprep.subr.mxu0 0.0
  %730 = vmatpush1.msra.mxu0 0.0
  %731 = vmatprep.subr.mxu0 0.0
  %732 = vmatpush1.msra.mxu0 0.0
  %733 = vmatprep.subr.mxu0 0.0
  %734 = vmatpush1.msra.mxu0 0.0
  %735 = vmatprep.subr.mxu0 0.0
  %736 = vmatpush1.msra.mxu0 0.0
  %737 = vmatprep.subr.mxu0 0.0
  %738 = vmatpush1.msra.mxu0 0.0
  %739 = vmatprep.subr.mxu0 0.0
  %740 = vmatpush1.msra.mxu0 0.0
  %741 = vmatprep.mubr.f32.mxu0 0.0
  %742 = vmatmul.mubr.f32.gmra.mrb[0].mxu0 %v558
  %v743 = vpop.f32.mrb[0].mxu0
  %v744 = vadd.f32 0.0, %v743
  %v745 = vpop.f32.mrb[0].mxu0
  %746 = vmatprep.mubr.f32.mxu0 0.0
  %747 = vmatmul.mubr.f32.gmra.mrb[0].mxu0 %v561
  %v748 = vpop.f32.mrb[0].mxu0
  %v749 = vadd.f32 0.0, %v748
  %v750 = vpop.f32.mrb[0].mxu0
  %751 = vmatprep.mubr.f32.mxu0 0.0
  %752 = vmatmul.mubr.f32.gmra.mrb[0].mxu0 %v564
  %v753 = vpop.f32.mrb[0].mxu0
  %v754 = vadd.f32 0.0, %v753
  %v755 = vpop.f32.mrb[0].mxu0
  %756 = vmatprep.mubr.f32.mxu0 0.0
  %757 = vmatmul.mubr.f32.gmra.mrb[0].mxu0 %v567
  %v758 = vpop.f32.mrb[0].mxu0
  %v759 = vadd.f32 0.0, %v758
  %v760 = vpop.f32.mrb[0].mxu0
  %761 = vmatprep.mubr.f32.mxu0 0.0
  %762 = vmatmul.mubr.f32.gmra.mrb[0].mxu0 %v570
  %v763 = vpop.f32.mrb[0].mxu0
  %v764 = vadd.f32 0.0, %v763
  %v765 = vpop.f32.mrb[0].mxu0
  %766 = vmatprep.mubr.f32.mxu0 0.0
  %767 = vmatmul.mubr.f32.gmra.mrb[0].mxu0 %v573
  %v768 = vpop.f32.mrb[0].mxu0
  %v769 = vadd.f32 0.0, %v768
  %v770 = vpop.f32.mrb[0].mxu0
  %771 = vmatprep.mubr.f32.mxu0 0.0
  %772 = vmatmul.mubr.f32.gmra.mrb[0].mxu0 %v576
  %v773 = vpop.f32.mrb[0].mxu0
  %v774 = vadd.f32 0.0, %v773
  %v775 = vpop.f32.mrb[0].mxu0
  %776 = vmatprep.mubr.f32.mxu0 0.0
  %777 = vmatmul.mubr.f32.gmra.mrb[0].mxu0 %v579
  %v778 = vpop.f32.mrb[0].mxu0
  %v779 = vadd.f32 0.0, %v778
  %v780 = vpop.f32.mrb[0].mxu0
  %781 = vmatprep.mubr.f32.mxu0 0.0
  %782 = vmatmul.mubr.f32.gmra.mrb[0].mxu0 %v582
  %v783 = vpop.f32.mrb[0].mxu0
  %v784 = vadd.f32 0.0, %v783
  %v785 = vpop.f32.mrb[0].mxu0
  %786 = vmatprep.mubr.f32.mxu0 0.0
  %787 = vmatmul.mubr.f32.gmra.mrb[0].mxu0 %v585
  %v788 = vpop.f32.mrb[0].mxu0
  %v789 = vadd.f32 0.0, %v788
  %v790 = vpop.f32.mrb[0].mxu0
  %791 = vmatprep.mubr.f32.mxu0 0.0
  %792 = vmatmul.mubr.f32.gmra.mrb[0].mxu0 %v588
  %v793 = vpop.f32.mrb[0].mxu0
  %v794 = vadd.f32 0.0, %v793
  %v795 = vpop.f32.mrb[0].mxu0
  %796 = vmatprep.mubr.f32.mxu0 0.0
  %797 = vmatmul.mubr.f32.gmra.mrb[0].mxu0 %v591
  %v798 = vpop.f32.mrb[0].mxu0
  %v799 = vadd.f32 0.0, %v798
  %v800 = vpop.f32.mrb[0].mxu0
  %801 = vmatprep.mubr.f32.mxu0 0.0
  %802 = vmatmul.mubr.f32.gmra.mrb[0].mxu0 %v594
  %v803 = vpop.f32.mrb[0].mxu0
  %v804 = vadd.f32 0.0, %v803
  %v805 = vpop.f32.mrb[0].mxu0
  %806 = vmatprep.mubr.f32.mxu0 0.0
  %807 = vmatmul.mubr.f32.gmra.mrb[0].mxu0 %v597
  %v808 = vpop.f32.mrb[0].mxu0
  %v809 = vadd.f32 0.0, %v808
  %v810 = vpop.f32.mrb[0].mxu0
  %811 = vmatprep.mubr.f32.mxu0 0.0
  %812 = vmatmul.mubr.f32.gmra.mrb[0].mxu0 %v600
  %v813 = vpop.f32.mrb[0].mxu0
  %v814 = vadd.f32 0.0, %v813
  %v815 = vpop.f32.mrb[0].mxu0
  %816 = vmatprep.mubr.f32.mxu0 0.0
  %817 = vmatmul.mubr.f32.gmra.mrb[0].mxu0 %v603
  %v818 = vpop.f32.mrb[0].mxu0
  %v819 = vadd.f32 0.0, %v818
  %v820 = vpop.f32.mrb[0].mxu0
  %821 = vmatprep.mubr.f32.mxu0 0.0
  %822 = vmatmul.mubr.f32.gmra.mrb[0].mxu0 %v606
  %v823 = vpop.f32.mrb[0].mxu0
  %v824 = vadd.f32 0.0, %v823
  %v825 = vpop.f32.mrb[0].mxu0
  %826 = vmatprep.mubr.f32.mxu0 0.0
  %827 = vmatmul.mubr.f32.gmra.mrb[0].mxu0 %v609
  %v828 = vpop.f32.mrb[0].mxu0
  %v829 = vadd.f32 0.0, %v828
  %v830 = vpop.f32.mrb[0].mxu0
  %831 = vmatprep.mubr.f32.mxu0 0.0
  %832 = vmatmul.mubr.f32.gmra.mrb[0].mxu0 %v612
  %v833 = vpop.f32.mrb[0].mxu0
  %v834 = vadd.f32 0.0, %v833
  %v835 = vpop.f32.mrb[0].mxu0
  %836 = vmatprep.mubr.f32.mxu0 0.0
  %837 = vmatmul.mubr.f32.gmra.mrb[0].mxu0 %v615
  %v838 = vpop.f32.mrb[0].mxu0
  %v839 = vadd.f32 0.0, %v838
  %v840 = vpop.f32.mrb[0].mxu0
  %841 = vmatprep.mubr.f32.mxu0 0.0
  %842 = vmatmul.mubr.f32.gmra.mrb[0].mxu0 %v618
  %v843 = vpop.f32.mrb[0].mxu0
  %v844 = vadd.f32 0.0, %v843
  %v845 = vpop.f32.mrb[0].mxu0
  %846 = vmatprep.mubr.f32.mxu0 0.0
  %847 = vmatmul.mubr.f32.gmra.mrb[0].mxu0 %v621
  %v848 = vpop.f32.mrb[0].mxu0
  %v849 = vadd.f32 0.0, %v848
  %v850 = vpop.f32.mrb[0].mxu0
  %851 = vmatprep.mubr.f32.mxu0 0.0
  %852 = vmatmul.mubr.f32.gmra.mrb[0].mxu0 %v624
  %v853 = vpop.f32.mrb[0].mxu0
  %v854 = vadd.f32 0.0, %v853
  %v855 = vpop.f32.mrb[0].mxu0
  %856 = vmatprep.mubr.f32.mxu0 0.0
  %857 = vmatmul.mubr.f32.gmra.mrb[0].mxu0 %v627
  %v858 = vpop.f32.mrb[0].mxu0
  %v859 = vadd.f32 0.0, %v858
  %v860 = vpop.f32.mrb[0].mxu0
  %861 = vmatprep.mubr.f32.mxu0 0.0
  %862 = vmatmul.mubr.f32.gmra.mrb[0].mxu0 %v630
  %v863 = vpop.f32.mrb[0].mxu0
  %v864 = vadd.f32 0.0, %v863
  %v865 = vpop.f32.mrb[0].mxu0
  %866 = vmatprep.mubr.f32.mxu0 0.0
  %867 = vmatmul.mubr.f32.gmra.mrb[0].mxu0 %v633
  %v868 = vpop.f32.mrb[0].mxu0
  %v869 = vadd.f32 0.0, %v868
  %v870 = vpop.f32.mrb[0].mxu0
  %871 = vmatprep.mubr.f32.mxu0 0.0
  %872 = vmatmul.mubr.f32.gmra.mrb[0].mxu0 %v636
  %v873 = vpop.f32.mrb[0].mxu0
  %v874 = vadd.f32 0.0, %v873
  %v875 = vpop.f32.mrb[0].mxu0
  %876 = vmatprep.mubr.f32.mxu0 0.0
  %877 = vmatmul.mubr.f32.gmra.mrb[0].mxu0 %v639
  %v878 = vpop.f32.mrb[0].mxu0
  %v879 = vadd.f32 0.0, %v878
  %v880 = vpop.f32.mrb[0].mxu0
  %881 = vmatprep.mubr.f32.mxu0 0.0
  %882 = vmatmul.mubr.f32.gmra.mrb[0].mxu0 %v642
  %v883 = vpop.f32.mrb[0].mxu0
  %v884 = vadd.f32 0.0, %v883
  %v885 = vpop.f32.mrb[0].mxu0
  %886 = vmatprep.mubr.f32.mxu0 0.0
  %887 = vmatmul.mubr.f32.gmra.mrb[0].mxu0 %v645
  %v888 = vpop.f32.mrb[0].mxu0
  %v889 = vadd.f32 0.0, %v888
  %v890 = vpop.f32.mrb[0].mxu0
  %891 = vmatprep.mubr.f32.mxu0 0.0
  %892 = vmatmul.mubr.f32.gmra.mrb[0].mxu0 %v648
  %v893 = vpop.f32.mrb[0].mxu0
  %v894 = vadd.f32 0.0, %v893
  %v895 = vpop.f32.mrb[0].mxu0
  %896 = vmatprep.mubr.f32.mxu0 0.0
  %897 = vmatmul.mubr.f32.gmra.mrb[0].mxu0 %v651
  %v898 = vpop.f32.mrb[0].mxu0
  %v899 = vadd.f32 0.0, %v898
  %v900 = vpop.f32.mrb[0].mxu0
  %901 = vmatprep.mubr.f32.mxu0 0.0
  %902 = vmatmul.mubr.f32.gmra.mrb[0].mxu0 %v654
  %v903 = vpop.f32.mrb[0].mxu0
  %v904 = vadd.f32 0.0, %v903
  %v905 = vpop.f32.mrb[0].mxu0
  %906 = vmatprep.mubr.f32.mxu0 0.0
  %907 = vmatmul.mubr.f32.gmra.mrb[0].mxu0 %v657
  %v908 = vpop.f32.mrb[0].mxu0
  %v909 = vadd.f32 0.0, %v908
  %v910 = vpop.f32.mrb[0].mxu0
  %911 = vmatprep.mubr.f32.mxu0 0.0
  %912 = vmatmul.mubr.f32.gmra.mrb[0].mxu0 %v660
  %v913 = vpop.f32.mrb[0].mxu0
  %v914 = vadd.f32 0.0, %v913
  %v915 = vpop.f32.mrb[0].mxu0
  %916 = vmatprep.mubr.f32.mxu0 0.0
  %917 = vmatmul.mubr.f32.gmra.mrb[0].mxu0 %v663
  %v918 = vpop.f32.mrb[0].mxu0
  %v919 = vadd.f32 0.0, %v918
  %v920 = vpop.f32.mrb[0].mxu0
  %921 = vmatprep.mubr.f32.mxu0 0.0
  %922 = vmatmul.mubr.f32.gmra.mrb[0].mxu0 %v666
  %v923 = vpop.f32.mrb[0].mxu0
  %v924 = vadd.f32 0.0, %v923
  %v925 = vpop.f32.mrb[0].mxu0
  %926 = vmatprep.mubr.f32.mxu0 0.0
  %927 = vmatmul.mubr.f32.gmra.mrb[0].mxu0 %v669
  %v928 = vpop.f32.mrb[0].mxu0
  %v929 = vadd.f32 0.0, %v928
  %v930 = vpop.f32.mrb[0].mxu0
  %931 = vmatprep.mubr.f32.mxu0 0.0
  %932 = vmatmul.mubr.f32.gmra.mrb[0].mxu0 %v672
  %v933 = vpop.f32.mrb[0].mxu0
  %v934 = vadd.f32 0.0, %v933
  %v935 = vpop.f32.mrb[0].mxu0
  %936 = vmatprep.mubr.f32.mxu0 0.0
  %937 = vmatmul.mubr.f32.gmra.mrb[0].mxu0 %v675
  %v938 = vpop.f32.mrb[0].mxu0
  %v939 = vadd.f32 0.0, %v938
  %v940 = vpop.f32.mrb[0].mxu0
  %941 = vdwg.mxu0
  %v942 = vld [vmem:[%s5] sm:$0xf]
  %v943 = vld [vmem:[%s6] sm:$0xf]
  %vm944 = vcmask 31744
  %v946 = vsel %vm944, %v744, 0
  %v949 = vsel %vm944, %v749, 0
  %v952 = vsel %vm944, %v754, 0
  %v955 = vsel %vm944, %v759, 0
  %v958 = vsel %vm944, %v764, 0
  %v961 = vsel %vm944, %v769, 0
  %v964 = vsel %vm944, %v774, 0
  %v967 = vsel %vm944, %v779, 0
  %v970 = vsel %vm944, %v784, 0
  %v973 = vsel %vm944, %v789, 0
  %v976 = vsel %vm944, %v794, 0
  %v979 = vsel %vm944, %v799, 0
  %v982 = vsel %vm944, %v804, 0
  %v985 = vsel %vm944, %v809, 0
  %v988 = vsel %vm944, %v814, 0
  %v991 = vsel %vm944, %v819, 0
  %v994 = vsel %vm944, %v824, 0
  %v997 = vsel %vm944, %v829, 0
  %v1000 = vsel %vm944, %v834, 0
  %v1003 = vsel %vm944, %v839, 0
  %v1006 = vsel %vm944, %v844, 0
  %v1009 = vsel %vm944, %v849, 0
  %v1012 = vsel %vm944, %v854, 0
  %v1015 = vsel %vm944, %v859, 0
  %v1018 = vsel %vm944, %v864, 0
  %v1021 = vsel %vm944, %v869, 0
  %v1024 = vsel %vm944, %v874, 0
  %v1027 = vsel %vm944, %v879, 0
  %v1030 = vsel %vm944, %v884, 0
  %v1033 = vsel %vm944, %v889, 0
  %v1036 = vsel %vm944, %v894, 0
  %v1039 = vsel %vm944, %v899, 0
  %v1042 = vsel %vm944, %v904, 0
  %v1045 = vsel %vm944, %v909, 0
  %v1048 = vsel %vm944, %v914, 0
  %v1051 = vsel %vm944, %v919, 0
  %v1054 = vsel %vm944, %v924, 0
  %v1057 = vsel %vm944, %v929, 0
  %v1060 = vsel %vm944, %v934, 0
  %v1063 = vsel %vm944, %v939, 0
  %vm1065 = vcmask 1043456
  %v1067 = vsel %vm1065, %v943, 0
  %1069 = vmatprep.subr.mxu0 0.0
  %1070 = vmatpush1.msra.mxu0 %v1067
  %1071 = vmatprep.subr.mxu0 0.0
  %1072 = vmatpush1.msra.mxu0 0.0
  %1073 = vmatprep.subr.mxu0 0.0
  %1074 = vmatpush1.msra.mxu0 0.0
  %1075 = vmatprep.subr.mxu0 0.0
  %1076 = vmatpush1.msra.mxu0 0.0
  %1077 = vmatprep.subr.mxu0 0.0
  %1078 = vmatpush1.msra.mxu0 0.0
  %1079 = vmatprep.subr.mxu0 0.0
  %1080 = vmatpush1.msra.mxu0 0.0
  %1081 = vmatprep.subr.mxu0 0.0
  %1082 = vmatpush1.msra.mxu0 0.0
  %1083 = vmatprep.subr.mxu0 0.0
  %1084 = vmatpush1.msra.mxu0 0.0
  %1085 = vmatprep.subr.mxu0 0.0
  %1086 = vmatpush1.msra.mxu0 0.0
  %1087 = vmatprep.subr.mxu0 0.0
  %1088 = vmatpush1.msra.mxu0 0.0
  %1089 = vmatprep.subr.mxu0 0.0
  %1090 = vmatpush1.msra.mxu0 0.0
  %1091 = vmatprep.subr.mxu0 0.0
  %1092 = vmatpush1.msra.mxu0 0.0
  %1093 = vmatprep.subr.mxu0 0.0
  %1094 = vmatpush1.msra.mxu0 0.0
  %1095 = vmatprep.subr.mxu0 0.0
  %1096 = vmatpush1.msra.mxu0 0.0
  %1097 = vmatprep.subr.mxu0 0.0
  %1098 = vmatpush1.msra.mxu0 0.0
  %1099 = vmatprep.subr.mxu0 0.0
  %1100 = vmatpush1.msra.mxu0 0.0
  %1101 = vmatprep.subr.mxu0 0.0
  %1102 = vmatpush1.msra.mxu0 0.0
  %1103 = vmatprep.subr.mxu0 0.0
  %1104 = vmatpush1.msra.mxu0 0.0
  %1105 = vmatprep.subr.mxu0 0.0
  %1106 = vmatpush1.msra.mxu0 0.0
  %1107 = vmatprep.subr.mxu0 0.0
  %1108 = vmatpush1.msra.mxu0 0.0
  %1109 = vmatprep.subr.mxu0 0.0
  %1110 = vmatpush1.msra.mxu0 0.0
  %1111 = vmatprep.subr.mxu0 0.0
  %1112 = vmatpush1.msra.mxu0 0.0
  %1113 = vmatprep.subr.mxu0 0.0
  %1114 = vmatpush1.msra.mxu0 0.0
  %1115 = vmatprep.subr.mxu0 0.0
  %1116 = vmatpush1.msra.mxu0 0.0
  %1117 = vmatprep.subr.mxu0 0.0
  %1118 = vmatpush1.msra.mxu0 0.0
  %1119 = vmatprep.subr.mxu0 0.0
  %1120 = vmatpush1.msra.mxu0 0.0
  %1121 = vmatprep.subr.mxu0 0.0
  %1122 = vmatpush1.msra.mxu0 0.0
  %1123 = vmatprep.subr.mxu0 0.0
  %1124 = vmatpush1.msra.mxu0 0.0
  %1125 = vmatprep.subr.mxu0 0.0
  %1126 = vmatpush1.msra.mxu0 0.0
  %1127 = vmatprep.subr.mxu0 0.0
  %1128 = vmatpush1.msra.mxu0 0.0
  %1129 = vmatprep.subr.mxu0 0.0
  %1130 = vmatpush1.msra.mxu0 0.0
  %1131 = vmatprep.subr.mxu0 0.0
  %1132 = vmatpush1.msra.mxu0 0.0
  %1133 = vmatprep.mubr.f32.mxu0 0.0
  %1134 = vmatmul.mubr.f32.gmra.mrb[0].mxu0 %v946
  %v1135 = vpop.f32.mrb[0].mxu0
  %v1136 = vadd.f32 0.0, %v1135
  %v1137 = vpop.f32.mrb[0].mxu0
  %1138 = vmatprep.mubr.f32.mxu0 0.0
  %1139 = vmatmul.mubr.f32.gmra.mrb[0].mxu0 %v949
  %v1140 = vpop.f32.mrb[0].mxu0
  %v1141 = vadd.f32 0.0, %v1140
  %v1142 = vpop.f32.mrb[0].mxu0
  %1143 = vmatprep.mubr.f32.mxu0 0.0
  %1144 = vmatmul.mubr.f32.gmra.mrb[0].mxu0 %v952
  %v1145 = vpop.f32.mrb[0].mxu0
  %v1146 = vadd.f32 0.0, %v1145
  %v1147 = vpop.f32.mrb[0].mxu0
  %1148 = vmatprep.mubr.f32.mxu0 0.0
  %1149 = vmatmul.mubr.f32.gmra.mrb[0].mxu0 %v955
  %v1150 = vpop.f32.mrb[0].mxu0
  %v1151 = vadd.f32 0.0, %v1150
  %v1152 = vpop.f32.mrb[0].mxu0
  %1153 = vmatprep.mubr.f32.mxu0 0.0
  %1154 = vmatmul.mubr.f32.gmra.mrb[0].mxu0 %v958
  %v1155 = vpop.f32.mrb[0].mxu0
  %v1156 = vadd.f32 0.0, %v1155
  %v1157 = vpop.f32.mrb[0].mxu0
  %1158 = vmatprep.mubr.f32.mxu0 0.0
  %1159 = vmatmul.mubr.f32.gmra.mrb[0].mxu0 %v961
  %v1160 = vpop.f32.mrb[0].mxu0
  %v1161 = vadd.f32 0.0, %v1160
  %v1162 = vpop.f32.mrb[0].mxu0
  %1163 = vmatprep.mubr.f32.mxu0 0.0
  %1164 = vmatmul.mubr.f32.gmra.mrb[0].mxu0 %v964
  %v1165 = vpop.f32.mrb[0].mxu0
  %v1166 = vadd.f32 0.0, %v1165
  %v1167 = vpop.f32.mrb[0].mxu0
  %1168 = vmatprep.mubr.f32.mxu0 0.0
  %1169 = vmatmul.mubr.f32.gmra.mrb[0].mxu0 %v967
  %v1170 = vpop.f32.mrb[0].mxu0
  %v1171 = vadd.f32 0.0, %v1170
  %v1172 = vpop.f32.mrb[0].mxu0
  %1173 = vmatprep.mubr.f32.mxu0 0.0
  %1174 = vmatmul.mubr.f32.gmra.mrb[0].mxu0 %v970
  %v1175 = vpop.f32.mrb[0].mxu0
  %v1176 = vadd.f32 0.0, %v1175
  %v1177 = vpop.f32.mrb[0].mxu0
  %1178 = vmatprep.mubr.f32.mxu0 0.0
  %1179 = vmatmul.mubr.f32.gmra.mrb[0].mxu0 %v973
  %v1180 = vpop.f32.mrb[0].mxu0
  %v1181 = vadd.f32 0.0, %v1180
  %v1182 = vpop.f32.mrb[0].mxu0
  %1183 = vmatprep.mubr.f32.mxu0 0.0
  %1184 = vmatmul.mubr.f32.gmra.mrb[0].mxu0 %v976
  %v1185 = vpop.f32.mrb[0].mxu0
  %v1186 = vadd.f32 0.0, %v1185
  %v1187 = vpop.f32.mrb[0].mxu0
  %1188 = vmatprep.mubr.f32.mxu0 0.0
  %1189 = vmatmul.mubr.f32.gmra.mrb[0].mxu0 %v979
  %v1190 = vpop.f32.mrb[0].mxu0
  %v1191 = vadd.f32 0.0, %v1190
  %v1192 = vpop.f32.mrb[0].mxu0
  %1193 = vmatprep.mubr.f32.mxu0 0.0
  %1194 = vmatmul.mubr.f32.gmra.mrb[0].mxu0 %v982
  %v1195 = vpop.f32.mrb[0].mxu0
  %v1196 = vadd.f32 0.0, %v1195
  %v1197 = vpop.f32.mrb[0].mxu0
  %1198 = vmatprep.mubr.f32.mxu0 0.0
  %1199 = vmatmul.mubr.f32.gmra.mrb[0].mxu0 %v985
  %v1200 = vpop.f32.mrb[0].mxu0
  %v1201 = vadd.f32 0.0, %v1200
  %v1202 = vpop.f32.mrb[0].mxu0
  %1203 = vmatprep.mubr.f32.mxu0 0.0
  %1204 = vmatmul.mubr.f32.gmra.mrb[0].mxu0 %v988
  %v1205 = vpop.f32.mrb[0].mxu0
  %v1206 = vadd.f32 0.0, %v1205
  %v1207 = vpop.f32.mrb[0].mxu0
  %1208 = vmatprep.mubr.f32.mxu0 0.0
  %1209 = vmatmul.mubr.f32.gmra.mrb[0].mxu0 %v991
  %v1210 = vpop.f32.mrb[0].mxu0
  %v1211 = vadd.f32 0.0, %v1210
  %v1212 = vpop.f32.mrb[0].mxu0
  %1213 = vmatprep.mubr.f32.mxu0 0.0
  %1214 = vmatmul.mubr.f32.gmra.mrb[0].mxu0 %v994
  %v1215 = vpop.f32.mrb[0].mxu0
  %v1216 = vadd.f32 0.0, %v1215
  %v1217 = vpop.f32.mrb[0].mxu0
  %1218 = vmatprep.mubr.f32.mxu0 0.0
  %1219 = vmatmul.mubr.f32.gmra.mrb[0].mxu0 %v997
  %v1220 = vpop.f32.mrb[0].mxu0
  %v1221 = vadd.f32 0.0, %v1220
  %v1222 = vpop.f32.mrb[0].mxu0
  %1223 = vmatprep.mubr.f32.mxu0 0.0
  %1224 = vmatmul.mubr.f32.gmra.mrb[0].mxu0 %v1000
  %v1225 = vpop.f32.mrb[0].mxu0
  %v1226 = vadd.f32 0.0, %v1225
  %v1227 = vpop.f32.mrb[0].mxu0
  %1228 = vmatprep.mubr.f32.mxu0 0.0
  %1229 = vmatmul.mubr.f32.gmra.mrb[0].mxu0 %v1003
  %v1230 = vpop.f32.mrb[0].mxu0
  %v1231 = vadd.f32 0.0, %v1230
  %v1232 = vpop.f32.mrb[0].mxu0
  %1233 = vmatprep.mubr.f32.mxu0 0.0
  %1234 = vmatmul.mubr.f32.gmra.mrb[0].mxu0 %v1006
  %v1235 = vpop.f32.mrb[0].mxu0
  %v1236 = vadd.f32 0.0, %v1235
  %v1237 = vpop.f32.mrb[0].mxu0
  %1238 = vmatprep.mubr.f32.mxu0 0.0
  %1239 = vmatmul.mubr.f32.gmra.mrb[0].mxu0 %v1009
  %v1240 = vpop.f32.mrb[0].mxu0
  %v1241 = vadd.f32 0.0, %v1240
  %v1242 = vpop.f32.mrb[0].mxu0
  %1243 = vmatprep.mubr.f32.mxu0 0.0
  %1244 = vmatmul.mubr.f32.gmra.mrb[0].mxu0 %v1012
  %v1245 = vpop.f32.mrb[0].mxu0
  %v1246 = vadd.f32 0.0, %v1245
  %v1247 = vpop.f32.mrb[0].mxu0
  %1248 = vmatprep.mubr.f32.mxu0 0.0
  %1249 = vmatmul.mubr.f32.gmra.mrb[0].mxu0 %v1015
  %v1250 = vpop.f32.mrb[0].mxu0
  %v1251 = vadd.f32 0.0, %v1250
  %v1252 = vpop.f32.mrb[0].mxu0
  %1253 = vmatprep.mubr.f32.mxu0 0.0
  %1254 = vmatmul.mubr.f32.gmra.mrb[0].mxu0 %v1018
  %v1255 = vpop.f32.mrb[0].mxu0
  %v1256 = vadd.f32 0.0, %v1255
  %v1257 = vpop.f32.mrb[0].mxu0
  %1258 = vmatprep.mubr.f32.mxu0 0.0
  %1259 = vmatmul.mubr.f32.gmra.mrb[0].mxu0 %v1021
  %v1260 = vpop.f32.mrb[0].mxu0
  %v1261 = vadd.f32 0.0, %v1260
  %v1262 = vpop.f32.mrb[0].mxu0
  %1263 = vmatprep.mubr.f32.mxu0 0.0
  %1264 = vmatmul.mubr.f32.gmra.mrb[0].mxu0 %v1024
  %v1265 = vpop.f32.mrb[0].mxu0
  %v1266 = vadd.f32 0.0, %v1265
  %v1267 = vpop.f32.mrb[0].mxu0
  %1268 = vmatprep.mubr.f32.mxu0 0.0
  %1269 = vmatmul.mubr.f32.gmra.mrb[0].mxu0 %v1027
  %v1270 = vpop.f32.mrb[0].mxu0
  %v1271 = vadd.f32 0.0, %v1270
  %v1272 = vpop.f32.mrb[0].mxu0
  %1273 = vmatprep.mubr.f32.mxu0 0.0
  %1274 = vmatmul.mubr.f32.gmra.mrb[0].mxu0 %v1030
  %v1275 = vpop.f32.mrb[0].mxu0
  %v1276 = vadd.f32 0.0, %v1275
  %v1277 = vpop.f32.mrb[0].mxu0
  %1278 = vmatprep.mubr.f32.mxu0 0.0
  %1279 = vmatmul.mubr.f32.gmra.mrb[0].mxu0 %v1033
  %v1280 = vpop.f32.mrb[0].mxu0
  %v1281 = vadd.f32 0.0, %v1280
  %v1282 = vpop.f32.mrb[0].mxu0
  %1283 = vmatprep.mubr.f32.mxu0 0.0
  %1284 = vmatmul.mubr.f32.gmra.mrb[0].mxu0 %v1036
  %v1285 = vpop.f32.mrb[0].mxu0
  %v1286 = vadd.f32 0.0, %v1285
  %v1287 = vpop.f32.mrb[0].mxu0
  %1288 = vmatprep.mubr.f32.mxu0 0.0
  %1289 = vmatmul.mubr.f32.gmra.mrb[0].mxu0 %v1039
  %v1290 = vpop.f32.mrb[0].mxu0
  %v1291 = vadd.f32 0.0, %v1290
  %v1292 = vpop.f32.mrb[0].mxu0
  %1293 = vmatprep.mubr.f32.mxu0 0.0
  %1294 = vmatmul.mubr.f32.gmra.mrb[0].mxu0 %v1042
  %v1295 = vpop.f32.mrb[0].mxu0
  %v1296 = vadd.f32 0.0, %v1295
  %v1297 = vpop.f32.mrb[0].mxu0
  %1298 = vmatprep.mubr.f32.mxu0 0.0
  %1299 = vmatmul.mubr.f32.gmra.mrb[0].mxu0 %v1045
  %v1300 = vpop.f32.mrb[0].mxu0
  %v1301 = vadd.f32 0.0, %v1300
  %v1302 = vpop.f32.mrb[0].mxu0
  %1303 = vmatprep.mubr.f32.mxu0 0.0
  %1304 = vmatmul.mubr.f32.gmra.mrb[0].mxu0 %v1048
  %v1305 = vpop.f32.mrb[0].mxu0
  %v1306 = vadd.f32 0.0, %v1305
  %v1307 = vpop.f32.mrb[0].mxu0
  %1308 = vmatprep.mubr.f32.mxu0 0.0
  %1309 = vmatmul.mubr.f32.gmra.mrb[0].mxu0 %v1051
  %v1310 = vpop.f32.mrb[0].mxu0
  %v1311 = vadd.f32 0.0, %v1310
  %v1312 = vpop.f32.mrb[0].mxu0
  %1313 = vmatprep.mubr.f32.mxu0 0.0
  %1314 = vmatmul.mubr.f32.gmra.mrb[0].mxu0 %v1054
  %v1315 = vpop.f32.mrb[0].mxu0
  %v1316 = vadd.f32 0.0, %v1315
  %v1317 = vpop.f32.mrb[0].mxu0
  %1318 = vmatprep.mubr.f32.mxu0 0.0
  %1319 = vmatmul.mubr.f32.gmra.mrb[0].mxu0 %v1057
  %v1320 = vpop.f32.mrb[0].mxu0
  %v1321 = vadd.f32 0.0, %v1320
  %v1322 = vpop.f32.mrb[0].mxu0
  %1323 = vmatprep.mubr.f32.mxu0 0.0
  %1324 = vmatmul.mubr.f32.gmra.mrb[0].mxu0 %v1060
  %v1325 = vpop.f32.mrb[0].mxu0
  %v1326 = vadd.f32 0.0, %v1325
  %v1327 = vpop.f32.mrb[0].mxu0
  %1328 = vmatprep.mubr.f32.mxu0 0.0
  %1329 = vmatmul.mubr.f32.gmra.mrb[0].mxu0 %v1063
  %v1330 = vpop.f32.mrb[0].mxu0
  %v1331 = vadd.f32 0.0, %v1330
  %v1332 = vpop.f32.mrb[0].mxu0
  %1333 = vdwg.mxu0
  %v1335 = vsel %vm944, %v319, 0
  %v1338 = vsel %vm944, %v324, 0
  %v1341 = vsel %vm944, %v329, 0
  %v1344 = vsel %vm944, %v334, 0
  %v1347 = vsel %vm944, %v339, 0
  %v1350 = vsel %vm944, %v344, 0
  %v1353 = vsel %vm944, %v349, 0
  %v1356 = vsel %vm944, %v354, 0
  %v1359 = vsel %vm944, %v359, 0
  %v1362 = vsel %vm944, %v364, 0
  %v1365 = vsel %vm944, %v369, 0
  %v1368 = vsel %vm944, %v374, 0
  %v1371 = vsel %vm944, %v379, 0
  %v1374 = vsel %vm944, %v384, 0
  %v1377 = vsel %vm944, %v389, 0
  %v1380 = vsel %vm944, %v394, 0
  %v1383 = vsel %vm944, %v399, 0
  %v1386 = vsel %vm944, %v404, 0
  %v1389 = vsel %vm944, %v409, 0
  %v1392 = vsel %vm944, %v414, 0
  %v1395 = vsel %vm944, %v419, 0
  %v1398 = vsel %vm944, %v424, 0
  %v1401 = vsel %vm944, %v429, 0
  %v1404 = vsel %vm944, %v434, 0
  %v1407 = vsel %vm944, %v439, 0
  %v1410 = vsel %vm944, %v444, 0
  %v1413 = vsel %vm944, %v449, 0
  %v1416 = vsel %vm944, %v454, 0
  %v1419 = vsel %vm944, %v459, 0
  %v1422 = vsel %vm944, %v464, 0
  %v1425 = vsel %vm944, %v469, 0
  %v1428 = vsel %vm944, %v474, 0
  %v1431 = vsel %vm944, %v479, 0
  %v1434 = vsel %vm944, %v484, 0
  %v1437 = vsel %vm944, %v489, 0
  %v1440 = vsel %vm944, %v494, 0
  %v1443 = vsel %vm944, %v499, 0
  %v1446 = vsel %vm944, %v504, 0
  %v1449 = vsel %vm944, %v509, 0
  %v1452 = vsel %vm944, %v514, 0
  %v1455 = vsel %vm1065, %v942, 0
  %1457 = vmatprep.subr.mxu0 0.0
  %1458 = vmatpush1.msra.mxu0 %v1455
  %1459 = vmatprep.subr.mxu0 0.0
  %1460 = vmatpush1.msra.mxu0 0.0
  %1461 = vmatprep.subr.mxu0 0.0
  %1462 = vmatpush1.msra.mxu0 0.0
  %1463 = vmatprep.subr.mxu0 0.0
  %1464 = vmatpush1.msra.mxu0 0.0
  %1465 = vmatprep.subr.mxu0 0.0
  %1466 = vmatpush1.msra.mxu0 0.0
  %1467 = vmatprep.subr.mxu0 0.0
  %1468 = vmatpush1.msra.mxu0 0.0
  %1469 = vmatprep.subr.mxu0 0.0
  %1470 = vmatpush1.msra.mxu0 0.0
  %1471 = vmatprep.subr.mxu0 0.0
  %1472 = vmatpush1.msra.mxu0 0.0
  %1473 = vmatprep.subr.mxu0 0.0
  %1474 = vmatpush1.msra.mxu0 0.0
  %1475 = vmatprep.subr.mxu0 0.0
  %1476 = vmatpush1.msra.mxu0 0.0
  %1477 = vmatprep.subr.mxu0 0.0
  %1478 = vmatpush1.msra.mxu0 0.0
  %1479 = vmatprep.subr.mxu0 0.0
  %1480 = vmatpush1.msra.mxu0 0.0
  %1481 = vmatprep.subr.mxu0 0.0
  %1482 = vmatpush1.msra.mxu0 0.0
  %1483 = vmatprep.subr.mxu0 0.0
  %1484 = vmatpush1.msra.mxu0 0.0
  %1485 = vmatprep.subr.mxu0 0.0
  %1486 = vmatpush1.msra.mxu0 0.0
  %1487 = vmatprep.subr.mxu0 0.0
  %1488 = vmatpush1.msra.mxu0 0.0
  %1489 = vmatprep.subr.mxu0 0.0
  %1490 = vmatpush1.msra.mxu0 0.0
  %1491 = vmatprep.subr.mxu0 0.0
  %1492 = vmatpush1.msra.mxu0 0.0
  %1493 = vmatprep.subr.mxu0 0.0
  %1494 = vmatpush1.msra.mxu0 0.0
  %1495 = vmatprep.subr.mxu0 0.0
  %1496 = vmatpush1.msra.mxu0 0.0
  %1497 = vmatprep.subr.mxu0 0.0
  %1498 = vmatpush1.msra.mxu0 0.0
  %1499 = vmatprep.subr.mxu0 0.0
  %1500 = vmatpush1.msra.mxu0 0.0
  %1501 = vmatprep.subr.mxu0 0.0
  %1502 = vmatpush1.msra.mxu0 0.0
  %1503 = vmatprep.subr.mxu0 0.0
  %1504 = vmatpush1.msra.mxu0 0.0
  %1505 = vmatprep.subr.mxu0 0.0
  %1506 = vmatpush1.msra.mxu0 0.0
  %1507 = vmatprep.subr.mxu0 0.0
  %1508 = vmatpush1.msra.mxu0 0.0
  %1509 = vmatprep.subr.mxu0 0.0
  %1510 = vmatpush1.msra.mxu0 0.0
  %1511 = vmatprep.subr.mxu0 0.0
  %1512 = vmatpush1.msra.mxu0 0.0
  %1513 = vmatprep.subr.mxu0 0.0
  %1514 = vmatpush1.msra.mxu0 0.0
  %1515 = vmatprep.subr.mxu0 0.0
  %1516 = vmatpush1.msra.mxu0 0.0
  %1517 = vmatprep.subr.mxu0 0.0
  %1518 = vmatpush1.msra.mxu0 0.0
  %1519 = vmatprep.subr.mxu0 0.0
  %1520 = vmatpush1.msra.mxu0 0.0
  %1521 = vmatprep.mubr.f32.mxu0 0.0
  %1522 = vmatmul.mubr.f32.gmra.mrb[0].mxu0 %v1335
  %v1523 = vpop.f32.mrb[0].mxu0
  %v1524 = vadd.f32 %v1136, %v1523
  %v1525 = vpop.f32.mrb[0].mxu0
  %1526 = vmatprep.mubr.f32.mxu0 0.0
  %1527 = vmatmul.mubr.f32.gmra.mrb[0].mxu0 %v1338
  %v1528 = vpop.f32.mrb[0].mxu0
  %v1529 = vadd.f32 %v1141, %v1528
  %v1530 = vpop.f32.mrb[0].mxu0
  %1531 = vmatprep.mubr.f32.mxu0 0.0
  %1532 = vmatmul.mubr.f32.gmra.mrb[0].mxu0 %v1341
  %v1533 = vpop.f32.mrb[0].mxu0
  %v1534 = vadd.f32 %v1146, %v1533
  %v1535 = vpop.f32.mrb[0].mxu0
  %1536 = vmatprep.mubr.f32.mxu0 0.0
  %1537 = vmatmul.mubr.f32.gmra.mrb[0].mxu0 %v1344
  %v1538 = vpop.f32.mrb[0].mxu0
  %v1539 = vadd.f32 %v1151, %v1538
  %v1540 = vpop.f32.mrb[0].mxu0
  %1541 = vmatprep.mubr.f32.mxu0 0.0
  %1542 = vmatmul.mubr.f32.gmra.mrb[0].mxu0 %v1347
  %v1543 = vpop.f32.mrb[0].mxu0
  %v1544 = vadd.f32 %v1156, %v1543
  %v1545 = vpop.f32.mrb[0].mxu0
  %1546 = vmatprep.mubr.f32.mxu0 0.0
  %1547 = vmatmul.mubr.f32.gmra.mrb[0].mxu0 %v1350
  %v1548 = vpop.f32.mrb[0].mxu0
  %v1549 = vadd.f32 %v1161, %v1548
  %v1550 = vpop.f32.mrb[0].mxu0
  %1551 = vmatprep.mubr.f32.mxu0 0.0
  %1552 = vmatmul.mubr.f32.gmra.mrb[0].mxu0 %v1353
  %v1553 = vpop.f32.mrb[0].mxu0
  %v1554 = vadd.f32 %v1166, %v1553
  %v1555 = vpop.f32.mrb[0].mxu0
  %1556 = vmatprep.mubr.f32.mxu0 0.0
  %1557 = vmatmul.mubr.f32.gmra.mrb[0].mxu0 %v1356
  %v1558 = vpop.f32.mrb[0].mxu0
  %v1559 = vadd.f32 %v1171, %v1558
  %v1560 = vpop.f32.mrb[0].mxu0
  %1561 = vmatprep.mubr.f32.mxu0 0.0
  %1562 = vmatmul.mubr.f32.gmra.mrb[0].mxu0 %v1359
  %v1563 = vpop.f32.mrb[0].mxu0
  %v1564 = vadd.f32 %v1176, %v1563
  %v1565 = vpop.f32.mrb[0].mxu0
  %1566 = vmatprep.mubr.f32.mxu0 0.0
  %1567 = vmatmul.mubr.f32.gmra.mrb[0].mxu0 %v1362
  %v1568 = vpop.f32.mrb[0].mxu0
  %v1569 = vadd.f32 %v1181, %v1568
  %v1570 = vpop.f32.mrb[0].mxu0
  %1571 = vmatprep.mubr.f32.mxu0 0.0
  %1572 = vmatmul.mubr.f32.gmra.mrb[0].mxu0 %v1365
  %v1573 = vpop.f32.mrb[0].mxu0
  %v1574 = vadd.f32 %v1186, %v1573
  %v1575 = vpop.f32.mrb[0].mxu0
  %1576 = vmatprep.mubr.f32.mxu0 0.0
  %1577 = vmatmul.mubr.f32.gmra.mrb[0].mxu0 %v1368
  %v1578 = vpop.f32.mrb[0].mxu0
  %v1579 = vadd.f32 %v1191, %v1578
  %v1580 = vpop.f32.mrb[0].mxu0
  %1581 = vmatprep.mubr.f32.mxu0 0.0
  %1582 = vmatmul.mubr.f32.gmra.mrb[0].mxu0 %v1371
  %v1583 = vpop.f32.mrb[0].mxu0
  %v1584 = vadd.f32 %v1196, %v1583
  %v1585 = vpop.f32.mrb[0].mxu0
  %1586 = vmatprep.mubr.f32.mxu0 0.0
  %1587 = vmatmul.mubr.f32.gmra.mrb[0].mxu0 %v1374
  %v1588 = vpop.f32.mrb[0].mxu0
  %v1589 = vadd.f32 %v1201, %v1588
  %v1590 = vpop.f32.mrb[0].mxu0
  %1591 = vmatprep.mubr.f32.mxu0 0.0
  %1592 = vmatmul.mubr.f32.gmra.mrb[0].mxu0 %v1377
  %v1593 = vpop.f32.mrb[0].mxu0
  %v1594 = vadd.f32 %v1206, %v1593
  %v1595 = vpop.f32.mrb[0].mxu0
  %1596 = vmatprep.mubr.f32.mxu0 0.0
  %1597 = vmatmul.mubr.f32.gmra.mrb[0].mxu0 %v1380
  %v1598 = vpop.f32.mrb[0].mxu0
  %v1599 = vadd.f32 %v1211, %v1598
  %v1600 = vpop.f32.mrb[0].mxu0
  %1601 = vmatprep.mubr.f32.mxu0 0.0
  %1602 = vmatmul.mubr.f32.gmra.mrb[0].mxu0 %v1383
  %v1603 = vpop.f32.mrb[0].mxu0
  %v1604 = vadd.f32 %v1216, %v1603
  %v1605 = vpop.f32.mrb[0].mxu0
  %1606 = vmatprep.mubr.f32.mxu0 0.0
  %1607 = vmatmul.mubr.f32.gmra.mrb[0].mxu0 %v1386
  %v1608 = vpop.f32.mrb[0].mxu0
  %v1609 = vadd.f32 %v1221, %v1608
  %v1610 = vpop.f32.mrb[0].mxu0
  %1611 = vmatprep.mubr.f32.mxu0 0.0
  %1612 = vmatmul.mubr.f32.gmra.mrb[0].mxu0 %v1389
  %v1613 = vpop.f32.mrb[0].mxu0
  %v1614 = vadd.f32 %v1226, %v1613
  %v1615 = vpop.f32.mrb[0].mxu0
  %1616 = vmatprep.mubr.f32.mxu0 0.0
  %1617 = vmatmul.mubr.f32.gmra.mrb[0].mxu0 %v1392
  %v1618 = vpop.f32.mrb[0].mxu0
  %v1619 = vadd.f32 %v1231, %v1618
  %v1620 = vpop.f32.mrb[0].mxu0
  %1621 = vmatprep.mubr.f32.mxu0 0.0
  %1622 = vmatmul.mubr.f32.gmra.mrb[0].mxu0 %v1395
  %v1623 = vpop.f32.mrb[0].mxu0
  %v1624 = vadd.f32 %v1236, %v1623
  %v1625 = vpop.f32.mrb[0].mxu0
  %1626 = vmatprep.mubr.f32.mxu0 0.0
  %1627 = vmatmul.mubr.f32.gmra.mrb[0].mxu0 %v1398
  %v1628 = vpop.f32.mrb[0].mxu0
  %v1629 = vadd.f32 %v1241, %v1628
  %v1630 = vpop.f32.mrb[0].mxu0
  %1631 = vmatprep.mubr.f32.mxu0 0.0
  %1632 = vmatmul.mubr.f32.gmra.mrb[0].mxu0 %v1401
  %v1633 = vpop.f32.mrb[0].mxu0
  %v1634 = vadd.f32 %v1246, %v1633
  %v1635 = vpop.f32.mrb[0].mxu0
  %1636 = vmatprep.mubr.f32.mxu0 0.0
  %1637 = vmatmul.mubr.f32.gmra.mrb[0].mxu0 %v1404
  %v1638 = vpop.f32.mrb[0].mxu0
  %v1639 = vadd.f32 %v1251, %v1638
  %v1640 = vpop.f32.mrb[0].mxu0
  %1641 = vmatprep.mubr.f32.mxu0 0.0
  %1642 = vmatmul.mubr.f32.gmra.mrb[0].mxu0 %v1407
  %v1643 = vpop.f32.mrb[0].mxu0
  %v1644 = vadd.f32 %v1256, %v1643
  %v1645 = vpop.f32.mrb[0].mxu0
  %1646 = vmatprep.mubr.f32.mxu0 0.0
  %1647 = vmatmul.mubr.f32.gmra.mrb[0].mxu0 %v1410
  %v1648 = vpop.f32.mrb[0].mxu0
  %v1649 = vadd.f32 %v1261, %v1648
  %v1650 = vpop.f32.mrb[0].mxu0
  %1651 = vmatprep.mubr.f32.mxu0 0.0
  %1652 = vmatmul.mubr.f32.gmra.mrb[0].mxu0 %v1413
  %v1653 = vpop.f32.mrb[0].mxu0
  %v1654 = vadd.f32 %v1266, %v1653
  %v1655 = vpop.f32.mrb[0].mxu0
  %1656 = vmatprep.mubr.f32.mxu0 0.0
  %1657 = vmatmul.mubr.f32.gmra.mrb[0].mxu0 %v1416
  %v1658 = vpop.f32.mrb[0].mxu0
  %v1659 = vadd.f32 %v1271, %v1658
  %v1660 = vpop.f32.mrb[0].mxu0
  %1661 = vmatprep.mubr.f32.mxu0 0.0
  %1662 = vmatmul.mubr.f32.gmra.mrb[0].mxu0 %v1419
  %v1663 = vpop.f32.mrb[0].mxu0
  %v1664 = vadd.f32 %v1276, %v1663
  %v1665 = vpop.f32.mrb[0].mxu0
  %1666 = vmatprep.mubr.f32.mxu0 0.0
  %1667 = vmatmul.mubr.f32.gmra.mrb[0].mxu0 %v1422
  %v1668 = vpop.f32.mrb[0].mxu0
  %v1669 = vadd.f32 %v1281, %v1668
  %v1670 = vpop.f32.mrb[0].mxu0
  %1671 = vmatprep.mubr.f32.mxu0 0.0
  %1672 = vmatmul.mubr.f32.gmra.mrb[0].mxu0 %v1425
  %v1673 = vpop.f32.mrb[0].mxu0
  %v1674 = vadd.f32 %v1286, %v1673
  %v1675 = vpop.f32.mrb[0].mxu0
  %1676 = vmatprep.mubr.f32.mxu0 0.0
  %1677 = vmatmul.mubr.f32.gmra.mrb[0].mxu0 %v1428
  %v1678 = vpop.f32.mrb[0].mxu0
  %v1679 = vadd.f32 %v1291, %v1678
  %v1680 = vpop.f32.mrb[0].mxu0
  %1681 = vmatprep.mubr.f32.mxu0 0.0
  %1682 = vmatmul.mubr.f32.gmra.mrb[0].mxu0 %v1431
  %v1683 = vpop.f32.mrb[0].mxu0
  %v1684 = vadd.f32 %v1296, %v1683
  %v1685 = vpop.f32.mrb[0].mxu0
  %1686 = vmatprep.mubr.f32.mxu0 0.0
  %1687 = vmatmul.mubr.f32.gmra.mrb[0].mxu0 %v1434
  %v1688 = vpop.f32.mrb[0].mxu0
  %v1689 = vadd.f32 %v1301, %v1688
  %v1690 = vpop.f32.mrb[0].mxu0
  %1691 = vmatprep.mubr.f32.mxu0 0.0
  %1692 = vmatmul.mubr.f32.gmra.mrb[0].mxu0 %v1437
  %v1693 = vpop.f32.mrb[0].mxu0
  %v1694 = vadd.f32 %v1306, %v1693
  %v1695 = vpop.f32.mrb[0].mxu0
  %1696 = vmatprep.mubr.f32.mxu0 0.0
  %1697 = vmatmul.mubr.f32.gmra.mrb[0].mxu0 %v1440
  %v1698 = vpop.f32.mrb[0].mxu0
  %v1699 = vadd.f32 %v1311, %v1698
  %v1700 = vpop.f32.mrb[0].mxu0
  %1701 = vmatprep.mubr.f32.mxu0 0.0
  %1702 = vmatmul.mubr.f32.gmra.mrb[0].mxu0 %v1443
  %v1703 = vpop.f32.mrb[0].mxu0
  %v1704 = vadd.f32 %v1316, %v1703
  %v1705 = vpop.f32.mrb[0].mxu0
  %1706 = vmatprep.mubr.f32.mxu0 0.0
  %1707 = vmatmul.mubr.f32.gmra.mrb[0].mxu0 %v1446
  %v1708 = vpop.f32.mrb[0].mxu0
  %v1709 = vadd.f32 %v1321, %v1708
  %v1710 = vpop.f32.mrb[0].mxu0
  %1711 = vmatprep.mubr.f32.mxu0 0.0
  %1712 = vmatmul.mubr.f32.gmra.mrb[0].mxu0 %v1449
  %v1713 = vpop.f32.mrb[0].mxu0
  %v1714 = vadd.f32 %v1326, %v1713
  %v1715 = vpop.f32.mrb[0].mxu0
  %1716 = vmatprep.mubr.f32.mxu0 0.0
  %1717 = vmatmul.mubr.f32.gmra.mrb[0].mxu0 %v1452
  %v1718 = vpop.f32.mrb[0].mxu0
  %v1719 = vadd.f32 %v1331, %v1718
  %v1720 = vpop.f32.mrb[0].mxu0
  %1721 = vdwg.mxu0
  %v1722 = vld [vmem:[%s7] sm:$0x1]
  %v1724 = vlaneseq
  %v1725 = vshrl.u32 %v1724, 7
  %v1726 = vsub.s32 0, %v1725
  %v1727 = vrot.slane %v1722, %v1726
  %v1729 = vadd.f32 %v1524, %v1727
  %v1730 = vadd.f32 %v1529, %v1727
  %v1731 = vadd.f32 %v1534, %v1727
  %v1732 = vadd.f32 %v1539, %v1727
  %v1733 = vadd.f32 %v1544, %v1727
  %v1734 = vadd.f32 %v1549, %v1727
  %v1735 = vadd.f32 %v1554, %v1727
  %v1736 = vadd.f32 %v1559, %v1727
  %v1737 = vadd.f32 %v1564, %v1727
  %v1738 = vadd.f32 %v1569, %v1727
  %v1739 = vadd.f32 %v1574, %v1727
  %v1740 = vadd.f32 %v1579, %v1727
  %v1741 = vadd.f32 %v1584, %v1727
  %v1742 = vadd.f32 %v1589, %v1727
  %v1743 = vadd.f32 %v1594, %v1727
  %v1744 = vadd.f32 %v1599, %v1727
  %v1745 = vadd.f32 %v1604, %v1727
  %v1746 = vadd.f32 %v1609, %v1727
  %v1747 = vadd.f32 %v1614, %v1727
  %v1748 = vadd.f32 %v1619, %v1727
  %v1749 = vadd.f32 %v1624, %v1727
  %v1750 = vadd.f32 %v1629, %v1727
  %v1751 = vadd.f32 %v1634, %v1727
  %v1752 = vadd.f32 %v1639, %v1727
  %v1753 = vadd.f32 %v1644, %v1727
  %v1754 = vadd.f32 %v1649, %v1727
  %v1755 = vadd.f32 %v1654, %v1727
  %v1756 = vadd.f32 %v1659, %v1727
  %v1757 = vadd.f32 %v1664, %v1727
  %v1758 = vadd.f32 %v1669, %v1727
  %v1759 = vadd.f32 %v1674, %v1727
  %v1760 = vadd.f32 %v1679, %v1727
  %v1761 = vadd.f32 %v1684, %v1727
  %v1762 = vadd.f32 %v1689, %v1727
  %v1763 = vadd.f32 %v1694, %v1727
  %v1764 = vadd.f32 %v1699, %v1727
  %v1765 = vadd.f32 %v1704, %v1727
  %v1766 = vadd.f32 %v1709, %v1727
  %v1767 = vadd.f32 %v1714, %v1727
  %v1768 = vadd.f32 %v1719, %v1727
  %v1769 = vmax.f32 %v1729, 0.0
  %v1770 = vmax.f32 %v1730, 0.0
  %v1771 = vmax.f32 %v1731, 0.0
  %v1772 = vmax.f32 %v1732, 0.0
  %v1773 = vmax.f32 %v1733, 0.0
  %v1774 = vmax.f32 %v1734, 0.0
  %v1775 = vmax.f32 %v1735, 0.0
  %v1776 = vmax.f32 %v1736, 0.0
  %v1777 = vmax.f32 %v1737, 0.0
  %v1778 = vmax.f32 %v1738, 0.0
  %v1779 = vmax.f32 %v1739, 0.0
  %v1780 = vmax.f32 %v1740, 0.0
  %v1781 = vmax.f32 %v1741, 0.0
  %v1782 = vmax.f32 %v1742, 0.0
  %v1783 = vmax.f32 %v1743, 0.0
  %v1784 = vmax.f32 %v1744, 0.0
  %v1785 = vmax.f32 %v1745, 0.0
  %v1786 = vmax.f32 %v1746, 0.0
  %v1787 = vmax.f32 %v1747, 0.0
  %v1788 = vmax.f32 %v1748, 0.0
  %v1789 = vmax.f32 %v1749, 0.0
  %v1790 = vmax.f32 %v1750, 0.0
  %v1791 = vmax.f32 %v1751, 0.0
  %v1792 = vmax.f32 %v1752, 0.0
  %v1793 = vmax.f32 %v1753, 0.0
  %v1794 = vmax.f32 %v1754, 0.0
  %v1795 = vmax.f32 %v1755, 0.0
  %v1796 = vmax.f32 %v1756, 0.0
  %v1797 = vmax.f32 %v1757, 0.0
  %v1798 = vmax.f32 %v1758, 0.0
  %v1799 = vmax.f32 %v1759, 0.0
  %v1800 = vmax.f32 %v1760, 0.0
  %v1801 = vmax.f32 %v1761, 0.0
  %v1802 = vmax.f32 %v1762, 0.0
  %v1803 = vmax.f32 %v1763, 0.0
  %v1804 = vmax.f32 %v1764, 0.0
  %v1805 = vmax.f32 %v1765, 0.0
  %v1806 = vmax.f32 %v1766, 0.0
  %v1807 = vmax.f32 %v1767, 0.0
  %v1808 = vmax.f32 %v1768, 0.0
  %v1809 = vld [vmem:[%s8] sm:$0xff]
  %v1810 = vld [vmem:[%s8 + $0x8] sm:$0xff]
  %v1811 = vld [vmem:[%s8 + $0x10] sm:$0xff]
  %v1812 = vld [vmem:[%s8 + $0x18] sm:$0xff]
  %v1813 = vld [vmem:[%s8 + $0x20] sm:$0xff]
  %v1814 = vld [vmem:[%s8 + $0x28] sm:$0xff]
  %v1815 = vld [vmem:[%s8 + $0x30] sm:$0xff]
  %v1816 = vld [vmem:[%s8 + $0x38] sm:$0xff]
  %v1817 = vld [vmem:[%s9] sm:$0x1]
  %v1819 = vlaneseq
  %v1820 = vshrl.u32 %v1819, 7
  %v1821 = vsub.s32 0, %v1820
  %v1822 = vrot.slane %v1817, %v1821
  %vm1824 = vcmask 523264
  %v1826 = vsel %vm1824, %v1769, 0
  %v1829 = vsel %vm1824, %v1770, 0
  %v1832 = vsel %vm1824, %v1771, 0
  %v1835 = vsel %vm1824, %v1772, 0
  %v1838 = vsel %vm1824, %v1773, 0
  %v1841 = vsel %vm1824, %v1774, 0
  %v1844 = vsel %vm1824, %v1775, 0
  %v1847 = vsel %vm1824, %v1776, 0
  %v1850 = vsel %vm1824, %v1777, 0
  %v1853 = vsel %vm1824, %v1778, 0
  %v1856 = vsel %vm1824, %v1779, 0
  %v1859 = vsel %vm1824, %v1780, 0
  %v1862 = vsel %vm1824, %v1781, 0
  %v1865 = vsel %vm1824, %v1782, 0
  %v1868 = vsel %vm1824, %v1783, 0
  %v1871 = vsel %vm1824, %v1784, 0
  %v1874 = vsel %vm1824, %v1785, 0
  %v1877 = vsel %vm1824, %v1786, 0
  %v1880 = vsel %vm1824, %v1787, 0
  %v1883 = vsel %vm1824, %v1788, 0
  %v1886 = vsel %vm1824, %v1789, 0
  %v1889 = vsel %vm1824, %v1790, 0
  %v1892 = vsel %vm1824, %v1791, 0
  %v1895 = vsel %vm1824, %v1792, 0
  %v1898 = vsel %vm1824, %v1793, 0
  %v1901 = vsel %vm1824, %v1794, 0
  %v1904 = vsel %vm1824, %v1795, 0
  %v1907 = vsel %vm1824, %v1796, 0
  %v1910 = vsel %vm1824, %v1797, 0
  %v1913 = vsel %vm1824, %v1798, 0
  %v1916 = vsel %vm1824, %v1799, 0
  %v1919 = vsel %vm1824, %v1800, 0
  %v1922 = vsel %vm1824, %v1801, 0
  %v1925 = vsel %vm1824, %v1802, 0
  %v1928 = vsel %vm1824, %v1803, 0
  %v1931 = vsel %vm1824, %v1804, 0
  %v1934 = vsel %vm1824, %v1805, 0
  %v1937 = vsel %vm1824, %v1806, 0
  %v1940 = vsel %vm1824, %v1807, 0
  %v1943 = vsel %vm1824, %v1808, 0
  %1945 = vmatprep.subr.mxu0 0.0
  %1946 = vmatpush1.msra.mxu0 %v1809
  %1947 = vmatprep.subr.mxu0 0.0
  %1948 = vmatpush1.msra.mxu0 %v1810
  %1949 = vmatprep.subr.mxu0 0.0
  %1950 = vmatpush1.msra.mxu0 %v1811
  %1951 = vmatprep.subr.mxu0 0.0
  %1952 = vmatpush1.msra.mxu0 %v1812
  %1953 = vmatprep.subr.mxu0 0.0
  %1954 = vmatpush1.msra.mxu0 %v1813
  %1955 = vmatprep.subr.mxu0 0.0
  %1956 = vmatpush1.msra.mxu0 %v1814
  %1957 = vmatprep.subr.mxu0 0.0
  %1958 = vmatpush1.msra.mxu0 %v1815
  %1959 = vmatprep.subr.mxu0 0.0
  %1960 = vmatpush1.msra.mxu0 %v1816
  %1961 = vmatprep.subr.mxu0 0.0
  %1962 = vmatpush1.msra.mxu0 0.0
  %1963 = vmatprep.subr.mxu0 0.0
  %1964 = vmatpush1.msra.mxu0 0.0
  %1965 = vmatprep.subr.mxu0 0.0
  %1966 = vmatpush1.msra.mxu0 0.0
  %1967 = vmatprep.subr.mxu0 0.0
  %1968 = vmatpush1.msra.mxu0 0.0
  %1969 = vmatprep.subr.mxu0 0.0
  %1970 = vmatpush1.msra.mxu0 0.0
  %1971 = vmatprep.subr.mxu0 0.0
  %1972 = vmatpush1.msra.mxu0 0.0
  %1973 = vmatprep.subr.mxu0 0.0
  %1974 = vmatpush1.msra.mxu0 0.0
  %1975 = vmatprep.subr.mxu0 0.0
  %1976 = vmatpush1.msra.mxu0 0.0
  %1977 = vmatprep.subr.mxu0 0.0
  %1978 = vmatpush1.msra.mxu0 0.0
  %1979 = vmatprep.subr.mxu0 0.0
  %1980 = vmatpush1.msra.mxu0 0.0
  %1981 = vmatprep.subr.mxu0 0.0
  %1982 = vmatpush1.msra.mxu0 0.0
  %1983 = vmatprep.subr.mxu0 0.0
  %1984 = vmatpush1.msra.mxu0 0.0
  %1985 = vmatprep.subr.mxu0 0.0
  %1986 = vmatpush1.msra.mxu0 0.0
  %1987 = vmatprep.subr.mxu0 0.0
  %1988 = vmatpush1.msra.mxu0 0.0
  %1989 = vmatprep.subr.mxu0 0.0
  %1990 = vmatpush1.msra.mxu0 0.0
  %1991 = vmatprep.subr.mxu0 0.0
  %1992 = vmatpush1.msra.mxu0 0.0
  %1993 = vmatprep.subr.mxu0 0.0
  %1994 = vmatpush1.msra.mxu0 0.0
  %1995 = vmatprep.subr.mxu0 0.0
  %1996 = vmatpush1.msra.mxu0 0.0
  %1997 = vmatprep.subr.mxu0 0.0
  %1998 = vmatpush1.msra.mxu0 0.0
  %1999 = vmatprep.subr.mxu0 0.0
  %2000 = vmatpush1.msra.mxu0 0.0
  %2001 = vmatprep.subr.mxu0 0.0
  %2002 = vmatpush1.msra.mxu0 0.0
  %2003 = vmatprep.subr.mxu0 0.0
  %2004 = vmatpush1.msra.mxu0 0.0
  %2005 = vmatprep.subr.mxu0 0.0
  %2006 = vmatpush1.msra.mxu0 0.0
  %2007 = vmatprep.subr.mxu0 0.0
  %2008 = vmatpush1.msra.mxu0 0.0
  %2009 = vmatprep.mubr.f32.mxu0 0.0
  %2010 = vmatmul.mubr.f32.gmra.mrb[0].mxu0 %v1826
  %v2011 = vpop.f32.mrb[0].mxu0
  %v2012 = vadd.f32 %v1822, %v2011
  %v2013 = vpop.f32.mrb[0].mxu0
  %2014 = vmatprep.mubr.f32.mxu0 0.0
  %2015 = vmatmul.mubr.f32.gmra.mrb[0].mxu0 %v1829
  %v2016 = vpop.f32.mrb[0].mxu0
  %v2017 = vadd.f32 %v1822, %v2016
  %v2018 = vpop.f32.mrb[0].mxu0
  %2019 = vmatprep.mubr.f32.mxu0 0.0
  %2020 = vmatmul.mubr.f32.gmra.mrb[0].mxu0 %v1832
  %v2021 = vpop.f32.mrb[0].mxu0
  %v2022 = vadd.f32 %v1822, %v2021
  %v2023 = vpop.f32.mrb[0].mxu0
  %2024 = vmatprep.mubr.f32.mxu0 0.0
  %2025 = vmatmul.mubr.f32.gmra.mrb[0].mxu0 %v1835
  %v2026 = vpop.f32.mrb[0].mxu0
  %v2027 = vadd.f32 %v1822, %v2026
  %v2028 = vpop.f32.mrb[0].mxu0
  %2029 = vmatprep.mubr.f32.mxu0 0.0
  %2030 = vmatmul.mubr.f32.gmra.mrb[0].mxu0 %v1838
  %v2031 = vpop.f32.mrb[0].mxu0
  %v2032 = vadd.f32 %v1822, %v2031
  %v2033 = vpop.f32.mrb[0].mxu0
  %2034 = vmatprep.mubr.f32.mxu0 0.0
  %2035 = vmatmul.mubr.f32.gmra.mrb[0].mxu0 %v1841
  %v2036 = vpop.f32.mrb[0].mxu0
  %v2037 = vadd.f32 %v1822, %v2036
  %v2038 = vpop.f32.mrb[0].mxu0
  %2039 = vmatprep.mubr.f32.mxu0 0.0
  %2040 = vmatmul.mubr.f32.gmra.mrb[0].mxu0 %v1844
  %v2041 = vpop.f32.mrb[0].mxu0
  %v2042 = vadd.f32 %v1822, %v2041
  %v2043 = vpop.f32.mrb[0].mxu0
  %2044 = vmatprep.mubr.f32.mxu0 0.0
  %2045 = vmatmul.mubr.f32.gmra.mrb[0].mxu0 %v1847
  %v2046 = vpop.f32.mrb[0].mxu0
  %v2047 = vadd.f32 %v1822, %v2046
  %v2048 = vpop.f32.mrb[0].mxu0
  %2049 = vmatprep.mubr.f32.mxu0 0.0
  %2050 = vmatmul.mubr.f32.gmra.mrb[0].mxu0 %v1850
  %v2051 = vpop.f32.mrb[0].mxu0
  %v2052 = vadd.f32 %v1822, %v2051
  %v2053 = vpop.f32.mrb[0].mxu0
  %2054 = vmatprep.mubr.f32.mxu0 0.0
  %2055 = vmatmul.mubr.f32.gmra.mrb[0].mxu0 %v1853
  %v2056 = vpop.f32.mrb[0].mxu0
  %v2057 = vadd.f32 %v1822, %v2056
  %v2058 = vpop.f32.mrb[0].mxu0
  %2059 = vmatprep.mubr.f32.mxu0 0.0
  %2060 = vmatmul.mubr.f32.gmra.mrb[0].mxu0 %v1856
  %v2061 = vpop.f32.mrb[0].mxu0
  %v2062 = vadd.f32 %v1822, %v2061
  %v2063 = vpop.f32.mrb[0].mxu0
  %2064 = vmatprep.mubr.f32.mxu0 0.0
  %2065 = vmatmul.mubr.f32.gmra.mrb[0].mxu0 %v1859
  %v2066 = vpop.f32.mrb[0].mxu0
  %v2067 = vadd.f32 %v1822, %v2066
  %v2068 = vpop.f32.mrb[0].mxu0
  %2069 = vmatprep.mubr.f32.mxu0 0.0
  %2070 = vmatmul.mubr.f32.gmra.mrb[0].mxu0 %v1862
  %v2071 = vpop.f32.mrb[0].mxu0
  %v2072 = vadd.f32 %v1822, %v2071
  %v2073 = vpop.f32.mrb[0].mxu0
  %2074 = vmatprep.mubr.f32.mxu0 0.0
  %2075 = vmatmul.mubr.f32.gmra.mrb[0].mxu0 %v1865
  %v2076 = vpop.f32.mrb[0].mxu0
  %v2077 = vadd.f32 %v1822, %v2076
  %v2078 = vpop.f32.mrb[0].mxu0
  %2079 = vmatprep.mubr.f32.mxu0 0.0
  %2080 = vmatmul.mubr.f32.gmra.mrb[0].mxu0 %v1868
  %v2081 = vpop.f32.mrb[0].mxu0
  %v2082 = vadd.f32 %v1822, %v2081
  %v2083 = vpop.f32.mrb[0].mxu0
  %2084 = vmatprep.mubr.f32.mxu0 0.0
  %2085 = vmatmul.mubr.f32.gmra.mrb[0].mxu0 %v1871
  %v2086 = vpop.f32.mrb[0].mxu0
  %v2087 = vadd.f32 %v1822, %v2086
  %v2088 = vpop.f32.mrb[0].mxu0
  %2089 = vmatprep.mubr.f32.mxu0 0.0
  %2090 = vmatmul.mubr.f32.gmra.mrb[0].mxu0 %v1874
  %v2091 = vpop.f32.mrb[0].mxu0
  %v2092 = vadd.f32 %v1822, %v2091
  %v2093 = vpop.f32.mrb[0].mxu0
  %2094 = vmatprep.mubr.f32.mxu0 0.0
  %2095 = vmatmul.mubr.f32.gmra.mrb[0].mxu0 %v1877
  %v2096 = vpop.f32.mrb[0].mxu0
  %v2097 = vadd.f32 %v1822, %v2096
  %v2098 = vpop.f32.mrb[0].mxu0
  %2099 = vmatprep.mubr.f32.mxu0 0.0
  %2100 = vmatmul.mubr.f32.gmra.mrb[0].mxu0 %v1880
  %v2101 = vpop.f32.mrb[0].mxu0
  %v2102 = vadd.f32 %v1822, %v2101
  %v2103 = vpop.f32.mrb[0].mxu0
  %2104 = vmatprep.mubr.f32.mxu0 0.0
  %2105 = vmatmul.mubr.f32.gmra.mrb[0].mxu0 %v1883
  %v2106 = vpop.f32.mrb[0].mxu0
  %v2107 = vadd.f32 %v1822, %v2106
  %v2108 = vpop.f32.mrb[0].mxu0
  %2109 = vmatprep.mubr.f32.mxu0 0.0
  %2110 = vmatmul.mubr.f32.gmra.mrb[0].mxu0 %v1886
  %v2111 = vpop.f32.mrb[0].mxu0
  %v2112 = vadd.f32 %v1822, %v2111
  %v2113 = vpop.f32.mrb[0].mxu0
  %2114 = vmatprep.mubr.f32.mxu0 0.0
  %2115 = vmatmul.mubr.f32.gmra.mrb[0].mxu0 %v1889
  %v2116 = vpop.f32.mrb[0].mxu0
  %v2117 = vadd.f32 %v1822, %v2116
  %v2118 = vpop.f32.mrb[0].mxu0
  %2119 = vmatprep.mubr.f32.mxu0 0.0
  %2120 = vmatmul.mubr.f32.gmra.mrb[0].mxu0 %v1892
  %v2121 = vpop.f32.mrb[0].mxu0
  %v2122 = vadd.f32 %v1822, %v2121
  %v2123 = vpop.f32.mrb[0].mxu0
  %2124 = vmatprep.mubr.f32.mxu0 0.0
  %2125 = vmatmul.mubr.f32.gmra.mrb[0].mxu0 %v1895
  %v2126 = vpop.f32.mrb[0].mxu0
  %v2127 = vadd.f32 %v1822, %v2126
  %v2128 = vpop.f32.mrb[0].mxu0
  %2129 = vmatprep.mubr.f32.mxu0 0.0
  %2130 = vmatmul.mubr.f32.gmra.mrb[0].mxu0 %v1898
  %v2131 = vpop.f32.mrb[0].mxu0
  %v2132 = vadd.f32 %v1822, %v2131
  %v2133 = vpop.f32.mrb[0].mxu0
  %2134 = vmatprep.mubr.f32.mxu0 0.0
  %2135 = vmatmul.mubr.f32.gmra.mrb[0].mxu0 %v1901
  %v2136 = vpop.f32.mrb[0].mxu0
  %v2137 = vadd.f32 %v1822, %v2136
  %v2138 = vpop.f32.mrb[0].mxu0
  %2139 = vmatprep.mubr.f32.mxu0 0.0
  %2140 = vmatmul.mubr.f32.gmra.mrb[0].mxu0 %v1904
  %v2141 = vpop.f32.mrb[0].mxu0
  %v2142 = vadd.f32 %v1822, %v2141
  %v2143 = vpop.f32.mrb[0].mxu0
  %2144 = vmatprep.mubr.f32.mxu0 0.0
  %2145 = vmatmul.mubr.f32.gmra.mrb[0].mxu0 %v1907
  %v2146 = vpop.f32.mrb[0].mxu0
  %v2147 = vadd.f32 %v1822, %v2146
  %v2148 = vpop.f32.mrb[0].mxu0
  %2149 = vmatprep.mubr.f32.mxu0 0.0
  %2150 = vmatmul.mubr.f32.gmra.mrb[0].mxu0 %v1910
  %v2151 = vpop.f32.mrb[0].mxu0
  %v2152 = vadd.f32 %v1822, %v2151
  %v2153 = vpop.f32.mrb[0].mxu0
  %2154 = vmatprep.mubr.f32.mxu0 0.0
  %2155 = vmatmul.mubr.f32.gmra.mrb[0].mxu0 %v1913
  %v2156 = vpop.f32.mrb[0].mxu0
  %v2157 = vadd.f32 %v1822, %v2156
  %v2158 = vpop.f32.mrb[0].mxu0
  %2159 = vmatprep.mubr.f32.mxu0 0.0
  %2160 = vmatmul.mubr.f32.gmra.mrb[0].mxu0 %v1916
  %v2161 = vpop.f32.mrb[0].mxu0
  %v2162 = vadd.f32 %v1822, %v2161
  %v2163 = vpop.f32.mrb[0].mxu0
  %2164 = vmatprep.mubr.f32.mxu0 0.0
  %2165 = vmatmul.mubr.f32.gmra.mrb[0].mxu0 %v1919
  %v2166 = vpop.f32.mrb[0].mxu0
  %v2167 = vadd.f32 %v1822, %v2166
  %v2168 = vpop.f32.mrb[0].mxu0
  %2169 = vmatprep.mubr.f32.mxu0 0.0
  %2170 = vmatmul.mubr.f32.gmra.mrb[0].mxu0 %v1922
  %v2171 = vpop.f32.mrb[0].mxu0
  %v2172 = vadd.f32 %v1822, %v2171
  %v2173 = vpop.f32.mrb[0].mxu0
  %2174 = vmatprep.mubr.f32.mxu0 0.0
  %2175 = vmatmul.mubr.f32.gmra.mrb[0].mxu0 %v1925
  %v2176 = vpop.f32.mrb[0].mxu0
  %v2177 = vadd.f32 %v1822, %v2176
  %v2178 = vpop.f32.mrb[0].mxu0
  %2179 = vmatprep.mubr.f32.mxu0 0.0
  %2180 = vmatmul.mubr.f32.gmra.mrb[0].mxu0 %v1928
  %v2181 = vpop.f32.mrb[0].mxu0
  %v2182 = vadd.f32 %v1822, %v2181
  %v2183 = vpop.f32.mrb[0].mxu0
  %2184 = vmatprep.mubr.f32.mxu0 0.0
  %2185 = vmatmul.mubr.f32.gmra.mrb[0].mxu0 %v1931
  %v2186 = vpop.f32.mrb[0].mxu0
  %v2187 = vadd.f32 %v1822, %v2186
  %v2188 = vpop.f32.mrb[0].mxu0
  %2189 = vmatprep.mubr.f32.mxu0 0.0
  %2190 = vmatmul.mubr.f32.gmra.mrb[0].mxu0 %v1934
  %v2191 = vpop.f32.mrb[0].mxu0
  %v2192 = vadd.f32 %v1822, %v2191
  %v2193 = vpop.f32.mrb[0].mxu0
  %2194 = vmatprep.mubr.f32.mxu0 0.0
  %2195 = vmatmul.mubr.f32.gmra.mrb[0].mxu0 %v1937
  %v2196 = vpop.f32.mrb[0].mxu0
  %v2197 = vadd.f32 %v1822, %v2196
  %v2198 = vpop.f32.mrb[0].mxu0
  %2199 = vmatprep.mubr.f32.mxu0 0.0
  %2200 = vmatmul.mubr.f32.gmra.mrb[0].mxu0 %v1940
  %v2201 = vpop.f32.mrb[0].mxu0
  %v2202 = vadd.f32 %v1822, %v2201
  %v2203 = vpop.f32.mrb[0].mxu0
  %2204 = vmatprep.mubr.f32.mxu0 0.0
  %2205 = vmatmul.mubr.f32.gmra.mrb[0].mxu0 %v1943
  %v2206 = vpop.f32.mrb[0].mxu0
  %v2207 = vadd.f32 %v1822, %v2206
  %v2208 = vpop.f32.mrb[0].mxu0
  %2209 = vdwg.mxu0
  %v2210 = vmax.f32 %v2012, 0.0
  %v2211 = vmax.f32 %v2017, 0.0
  %v2212 = vmax.f32 %v2022, 0.0
  %v2213 = vmax.f32 %v2027, 0.0
  %v2214 = vmax.f32 %v2032, 0.0
  %v2215 = vmax.f32 %v2037, 0.0
  %v2216 = vmax.f32 %v2042, 0.0
  %v2217 = vmax.f32 %v2047, 0.0
  %v2218 = vmax.f32 %v2052, 0.0
  %v2219 = vmax.f32 %v2057, 0.0
  %v2220 = vmax.f32 %v2062, 0.0
  %v2221 = vmax.f32 %v2067, 0.0
  %v2222 = vmax.f32 %v2072, 0.0
  %v2223 = vmax.f32 %v2077, 0.0
  %v2224 = vmax.f32 %v2082, 0.0
  %v2225 = vmax.f32 %v2087, 0.0
  %v2226 = vmax.f32 %v2092, 0.0
  %v2227 = vmax.f32 %v2097, 0.0
  %v2228 = vmax.f32 %v2102, 0.0
  %v2229 = vmax.f32 %v2107, 0.0
  %v2230 = vmax.f32 %v2112, 0.0
  %v2231 = vmax.f32 %v2117, 0.0
  %v2232 = vmax.f32 %v2122, 0.0
  %v2233 = vmax.f32 %v2127, 0.0
  %v2234 = vmax.f32 %v2132, 0.0
  %v2235 = vmax.f32 %v2137, 0.0
  %v2236 = vmax.f32 %v2142, 0.0
  %v2237 = vmax.f32 %v2147, 0.0
  %v2238 = vmax.f32 %v2152, 0.0
  %v2239 = vmax.f32 %v2157, 0.0
  %v2240 = vmax.f32 %v2162, 0.0
  %v2241 = vmax.f32 %v2167, 0.0
  %v2242 = vmax.f32 %v2172, 0.0
  %v2243 = vmax.f32 %v2177, 0.0
  %v2244 = vmax.f32 %v2182, 0.0
  %v2245 = vmax.f32 %v2187, 0.0
  %v2246 = vmax.f32 %v2192, 0.0
  %v2247 = vmax.f32 %v2197, 0.0
  %v2248 = vmax.f32 %v2202, 0.0
  %v2249 = vmax.f32 %v2207, 0.0
  %v2250 = vld [vmem:[%s1] sm:$0xff]
  %v2251 = vld [vmem:[%s1 + $0x8] sm:$0xff]
  %v2252 = vld [vmem:[%s1 + $0x10] sm:$0xff]
  %v2253 = vld [vmem:[%s1 + $0x18] sm:$0xff]
  %v2254 = vld [vmem:[%s1 + $0x20] sm:$0xff]
  %v2255 = vld [vmem:[%s1 + $0x28] sm:$0xff]
  %v2256 = vld [vmem:[%s1 + $0x30] sm:$0xff]
  %v2257 = vld [vmem:[%s1 + $0x38] sm:$0xff]
  %v2258 = vld [vmem:[%s1 + $0x40] sm:$0xff]
  %v2259 = vld [vmem:[%s1 + $0x48] sm:$0xff]
  %v2260 = vld [vmem:[%s1 + $0x50] sm:$0xff]
  %v2261 = vld [vmem:[%s1 + $0x58] sm:$0xff]
  %v2262 = vld [vmem:[%s1 + $0x60] sm:$0xff]
  %v2263 = vld [vmem:[%s1 + $0x68] sm:$0xff]
  %v2264 = vld [vmem:[%s1 + $0x70] sm:$0xff]
  %v2265 = vld [vmem:[%s1 + $0x78] sm:$0xff]
  %v2266 = vld [vmem:[%s1 + $0x80] sm:$0xff]
  %v2267 = vld [vmem:[%s1 + $0x88] sm:$0xff]
  %v2268 = vld [vmem:[%s1 + $0x90] sm:$0xff]
  %v2269 = vld [vmem:[%s1 + $0x98] sm:$0xff]
  %v2270 = vld [vmem:[%s1 + $0xa0] sm:$0xff]
  %v2271 = vld [vmem:[%s1 + $0xa8] sm:$0xff]
  %v2272 = vld [vmem:[%s1 + $0xb0] sm:$0xff]
  %v2273 = vld [vmem:[%s1 + $0xb8] sm:$0xff]
  %v2274 = vld [vmem:[%s1 + $0xc0] sm:$0xff]
  %v2275 = vld [vmem:[%s1 + $0xc8] sm:$0xff]
  %v2276 = vld [vmem:[%s1 + $0xd0] sm:$0xff]
  %v2277 = vld [vmem:[%s1 + $0xd8] sm:$0xff]
  %v2278 = vld [vmem:[%s1 + $0xe0] sm:$0xff]
  %v2279 = vld [vmem:[%s1 + $0xe8] sm:$0xff]
  %v2280 = vld [vmem:[%s1 + $0xf0] sm:$0xff]
  %v2281 = vld [vmem:[%s1 + $0xf8] sm:$0xff]
  %v2282 = vld [vmem:[%s1 + $0x100] sm:$0xff]
  %v2283 = vld [vmem:[%s1 + $0x108] sm:$0xff]
  %v2284 = vld [vmem:[%s1 + $0x110] sm:$0xff]
  %v2285 = vld [vmem:[%s1 + $0x118] sm:$0xff]
  %v2286 = vld [vmem:[%s1 + $0x120] sm:$0xff]
  %v2287 = vld [vmem:[%s1 + $0x128] sm:$0xff]
  %v2288 = vld [vmem:[%s1 + $0x130] sm:$0xff]
  %v2289 = vld [vmem:[%s1 + $0x138] sm:$0xff]
  %v2290 = vmul.f32 %v2210, %v2250
  %v2291 = vmul.f32 %v2211, %v2251
  %v2292 = vmul.f32 %v2212, %v2252
  %v2293 = vmul.f32 %v2213, %v2253
  %v2294 = vmul.f32 %v2214, %v2254
  %v2295 = vmul.f32 %v2215, %v2255
  %v2296 = vmul.f32 %v2216, %v2256
  %v2297 = vmul.f32 %v2217, %v2257
  %v2298 = vmul.f32 %v2218, %v2258
  %v2299 = vmul.f32 %v2219, %v2259
  %v2300 = vmul.f32 %v2220, %v2260
  %v2301 = vmul.f32 %v2221, %v2261
  %v2302 = vmul.f32 %v2222, %v2262
  %v2303 = vmul.f32 %v2223, %v2263
  %v2304 = vmul.f32 %v2224, %v2264
  %v2305 = vmul.f32 %v2225, %v2265
  %v2306 = vmul.f32 %v2226, %v2266
  %v2307 = vmul.f32 %v2227, %v2267
  %v2308 = vmul.f32 %v2228, %v2268
  %v2309 = vmul.f32 %v2229, %v2269
  %v2310 = vmul.f32 %v2230, %v2270
  %v2311 = vmul.f32 %v2231, %v2271
  %v2312 = vmul.f32 %v2232, %v2272
  %v2313 = vmul.f32 %v2233, %v2273
  %v2314 = vmul.f32 %v2234, %v2274
  %v2315 = vmul.f32 %v2235, %v2275
  %v2316 = vmul.f32 %v2236, %v2276
  %v2317 = vmul.f32 %v2237, %v2277
  %v2318 = vmul.f32 %v2238, %v2278
  %v2319 = vmul.f32 %v2239, %v2279
  %v2320 = vmul.f32 %v2240, %v2280
  %v2321 = vmul.f32 %v2241, %v2281
  %v2322 = vmul.f32 %v2242, %v2282
  %v2323 = vmul.f32 %v2243, %v2283
  %v2324 = vmul.f32 %v2244, %v2284
  %v2325 = vmul.f32 %v2245, %v2285
  %v2326 = vmul.f32 %v2246, %v2286
  %v2327 = vmul.f32 %v2247, %v2287
  %v2328 = vmul.f32 %v2248, %v2288
  %v2329 = vmul.f32 %v2249, %v2289
  %v2330 = vld [vmem:[%s4] sm:$0xff]
  %v2331 = vld [vmem:[%s4 + $0x8] sm:$0xff]
  %v2332 = vld [vmem:[%s4 + $0x10] sm:$0xff]
  %v2333 = vld [vmem:[%s4 + $0x18] sm:$0xff]
  %v2334 = vld [vmem:[%s4 + $0x20] sm:$0xff]
  %v2335 = vld [vmem:[%s4 + $0x28] sm:$0xff]
  %v2336 = vld [vmem:[%s4 + $0x30] sm:$0xff]
  %v2337 = vld [vmem:[%s4 + $0x38] sm:$0xff]
  %v2338 = vld [vmem:[%s4 + $0x40] sm:$0xff]
  %v2339 = vld [vmem:[%s4 + $0x48] sm:$0xff]
  %v2340 = vld [vmem:[%s4 + $0x50] sm:$0xff]
  %v2341 = vld [vmem:[%s4 + $0x58] sm:$0xff]
  %v2342 = vld [vmem:[%s4 + $0x60] sm:$0xff]
  %v2343 = vld [vmem:[%s4 + $0x68] sm:$0xff]
  %v2344 = vld [vmem:[%s4 + $0x70] sm:$0xff]
  %v2345 = vld [vmem:[%s4 + $0x78] sm:$0xff]
  %v2346 = vld [vmem:[%s4 + $0x80] sm:$0xff]
  %v2347 = vld [vmem:[%s4 + $0x88] sm:$0xff]
  %v2348 = vld [vmem:[%s4 + $0x90] sm:$0xff]
  %v2349 = vld [vmem:[%s4 + $0x98] sm:$0xff]
  %v2350 = vld [vmem:[%s4 + $0xa0] sm:$0xff]
  %v2351 = vld [vmem:[%s4 + $0xa8] sm:$0xff]
  %v2352 = vld [vmem:[%s4 + $0xb0] sm:$0xff]
  %v2353 = vld [vmem:[%s4 + $0xb8] sm:$0xff]
  %v2354 = vld [vmem:[%s4 + $0xc0] sm:$0xff]
  %v2355 = vld [vmem:[%s4 + $0xc8] sm:$0xff]
  %v2356 = vld [vmem:[%s4 + $0xd0] sm:$0xff]
  %v2357 = vld [vmem:[%s4 + $0xd8] sm:$0xff]
  %v2358 = vld [vmem:[%s4 + $0xe0] sm:$0xff]
  %v2359 = vld [vmem:[%s4 + $0xe8] sm:$0xff]
  %v2361 = vsel %vm1824, %v2332, 0
  %v2364 = vsel %vm1824, %v2335, 0
  %v2367 = vsel %vm1824, %v2338, 0
  %v2370 = vsel %vm1824, %v2341, 0
  %v2373 = vsel %vm1824, %v2344, 0
  %v2376 = vsel %vm1824, %v2347, 0
  %v2379 = vsel %vm1824, %v2350, 0
  %v2382 = vsel %vm1824, %v2353, 0
  %v2385 = vsel %vm1824, %v2356, 0
  %v2388 = vsel %vm1824, %v2359, 0
  %2390 = vmatprep.subr.mxu0 0.0
  %2391 = vmatpush1.msra.mxu0 %v2290
  %2392 = vmatprep.subr.mxu0 0.0
  %2393 = vmatpush1.msra.mxu0 %v2291
  %2394 = vmatprep.subr.mxu0 0.0
  %2395 = vmatpush1.msra.mxu0 %v2292
  %2396 = vmatprep.subr.mxu0 0.0
  %2397 = vmatpush1.msra.mxu0 %v2293
  %2398 = vmatprep.subr.mxu0 0.0
  %2399 = vmatpush1.msra.mxu0 %v2294
  %2400 = vmatprep.subr.mxu0 0.0
  %2401 = vmatpush1.msra.mxu0 %v2295
  %2402 = vmatprep.subr.mxu0 0.0
  %2403 = vmatpush1.msra.mxu0 %v2296
  %2404 = vmatprep.subr.mxu0 0.0
  %2405 = vmatpush1.msra.mxu0 %v2297
  %2406 = vmatprep.subr.mxu0 0.0
  %2407 = vmatpush1.msra.mxu0 %v2298
  %2408 = vmatprep.subr.mxu0 0.0
  %2409 = vmatpush1.msra.mxu0 %v2299
  %2410 = vmatprep.subr.mxu0 0.0
  %2411 = vmatpush1.msra.mxu0 %v2300
  %2412 = vmatprep.subr.mxu0 0.0
  %2413 = vmatpush1.msra.mxu0 %v2301
  %2414 = vmatprep.subr.mxu0 0.0
  %2415 = vmatpush1.msra.mxu0 %v2302
  %2416 = vmatprep.subr.mxu0 0.0
  %2417 = vmatpush1.msra.mxu0 %v2303
  %2418 = vmatprep.subr.mxu0 0.0
  %2419 = vmatpush1.msra.mxu0 %v2304
  %2420 = vmatprep.subr.mxu0 0.0
  %2421 = vmatpush1.msra.mxu0 %v2305
  %2422 = vmatprep.subr.mxu0 0.0
  %2423 = vmatpush1.msra.mxu0 %v2306
  %2424 = vmatprep.subr.mxu0 0.0
  %2425 = vmatpush1.msra.mxu0 %v2307
  %2426 = vmatprep.subr.mxu0 0.0
  %2427 = vmatpush1.msra.mxu0 %v2308
  %2428 = vmatprep.subr.mxu0 0.0
  %2429 = vmatpush1.msra.mxu0 %v2309
  %2430 = vmatprep.subr.mxu0 0.0
  %2431 = vmatpush1.msra.mxu0 %v2310
  %2432 = vmatprep.subr.mxu0 0.0
  %2433 = vmatpush1.msra.mxu0 %v2311
  %2434 = vmatprep.subr.mxu0 0.0
  %2435 = vmatpush1.msra.mxu0 %v2312
  %2436 = vmatprep.subr.mxu0 0.0
  %2437 = vmatpush1.msra.mxu0 %v2313
  %2438 = vmatprep.subr.mxu0 0.0
  %2439 = vmatpush1.msra.mxu0 %v2314
  %2440 = vmatprep.subr.mxu0 0.0
  %2441 = vmatpush1.msra.mxu0 %v2315
  %2442 = vmatprep.subr.mxu0 0.0
  %2443 = vmatpush1.msra.mxu0 %v2316
  %2444 = vmatprep.subr.mxu0 0.0
  %2445 = vmatpush1.msra.mxu0 %v2317
  %2446 = vmatprep.subr.mxu0 0.0
  %2447 = vmatpush1.msra.mxu0 %v2318
  %2448 = vmatprep.subr.mxu0 0.0
  %2449 = vmatpush1.msra.mxu0 %v2319
  %2450 = vmatprep.subr.mxu0 0.0
  %2451 = vmatpush1.msra.mxu0 %v2320
  %2452 = vmatprep.subr.mxu0 0.0
  %2453 = vmatpush1.msra.mxu0 %v2321
  %2454 = vmatprep.mubr.f32.mxu0 %v2331
  %2455 = vmatmul.mubr.f32.gmra.mrb[0].mxu0 %v2330
  %v2456 = vpop.f32.mrb[0].mxu0
  %v2457 = vadd.f32 0.0, %v2456
  %v2458 = vpop.f32.mrb[0].mxu0
  %2459 = vmatprep.mubr.f32.mxu0 %v2334
  %2460 = vmatmul.mubr.f32.gmra.mrb[0].mxu0 %v2333
  %v2461 = vpop.f32.mrb[0].mxu0
  %v2462 = vadd.f32 0.0, %v2461
  %v2463 = vpop.f32.mrb[0].mxu0
  %2464 = vmatprep.mubr.f32.mxu0 %v2337
  %2465 = vmatmul.mubr.f32.gmra.mrb[0].mxu0 %v2336
  %v2466 = vpop.f32.mrb[0].mxu0
  %v2467 = vadd.f32 0.0, %v2466
  %v2468 = vpop.f32.mrb[0].mxu0
  %2469 = vmatprep.mubr.f32.mxu0 %v2340
  %2470 = vmatmul.mubr.f32.gmra.mrb[0].mxu0 %v2339
  %v2471 = vpop.f32.mrb[0].mxu0
  %v2472 = vadd.f32 0.0, %v2471
  %v2473 = vpop.f32.mrb[0].mxu0
  %2474 = vmatprep.mubr.f32.mxu0 %v2343
  %2475 = vmatmul.mubr.f32.gmra.mrb[0].mxu0 %v2342
  %v2476 = vpop.f32.mrb[0].mxu0
  %v2477 = vadd.f32 0.0, %v2476
  %v2478 = vpop.f32.mrb[0].mxu0
  %2479 = vmatprep.mubr.f32.mxu0 %v2346
  %2480 = vmatmul.mubr.f32.gmra.mrb[0].mxu0 %v2345
  %v2481 = vpop.f32.mrb[0].mxu0
  %v2482 = vadd.f32 0.0, %v2481
  %v2483 = vpop.f32.mrb[0].mxu0
  %2484 = vmatprep.mubr.f32.mxu0 %v2349
  %2485 = vmatmul.mubr.f32.gmra.mrb[0].mxu0 %v2348
  %v2486 = vpop.f32.mrb[0].mxu0
  %v2487 = vadd.f32 0.0, %v2486
  %v2488 = vpop.f32.mrb[0].mxu0
  %2489 = vmatprep.mubr.f32.mxu0 %v2352
  %2490 = vmatmul.mubr.f32.gmra.mrb[0].mxu0 %v2351
  %v2491 = vpop.f32.mrb[0].mxu0
  %v2492 = vadd.f32 0.0, %v2491
  %v2493 = vpop.f32.mrb[0].mxu0
  %2494 = vmatprep.mubr.f32.mxu0 %v2355
  %2495 = vmatmul.mubr.f32.gmra.mrb[0].mxu0 %v2354
  %v2496 = vpop.f32.mrb[0].mxu0
  %v2497 = vadd.f32 0.0, %v2496
  %v2498 = vpop.f32.mrb[0].mxu0
  %2499 = vmatprep.mubr.f32.mxu0 %v2358
  %2500 = vmatmul.mubr.f32.gmra.mrb[0].mxu0 %v2357
  %v2501 = vpop.f32.mrb[0].mxu0
  %v2502 = vadd.f32 0.0, %v2501
  %v2503 = vpop.f32.mrb[0].mxu0
  %2504 = vdwg.mxu0
  %2505 = vmatprep.subr.mxu0 0.0
  %2506 = vmatpush1.msra.mxu0 %v2322
  %2507 = vmatprep.subr.mxu0 0.0
  %2508 = vmatpush1.msra.mxu0 %v2323
  %2509 = vmatprep.subr.mxu0 0.0
  %2510 = vmatpush1.msra.mxu0 %v2324
  %2511 = vmatprep.subr.mxu0 0.0
  %2512 = vmatpush1.msra.mxu0 %v2325
  %2513 = vmatprep.subr.mxu0 0.0
  %2514 = vmatpush1.msra.mxu0 %v2326
  %2515 = vmatprep.subr.mxu0 0.0
  %2516 = vmatpush1.msra.mxu0 %v2327
  %2517 = vmatprep.subr.mxu0 0.0
  %2518 = vmatpush1.msra.mxu0 %v2328
  %2519 = vmatprep.subr.mxu0 0.0
  %2520 = vmatpush1.msra.mxu0 %v2329
  %2521 = vmatprep.subr.mxu0 0.0
  %2522 = vmatpush1.msra.mxu0 0.0
  %2523 = vmatprep.subr.mxu0 0.0
  %2524 = vmatpush1.msra.mxu0 0.0
  %2525 = vmatprep.subr.mxu0 0.0
  %2526 = vmatpush1.msra.mxu0 0.0
  %2527 = vmatprep.subr.mxu0 0.0
  %2528 = vmatpush1.msra.mxu0 0.0
  %2529 = vmatprep.subr.mxu0 0.0
  %2530 = vmatpush1.msra.mxu0 0.0
  %2531 = vmatprep.subr.mxu0 0.0
  %2532 = vmatpush1.msra.mxu0 0.0
  %2533 = vmatprep.subr.mxu0 0.0
  %2534 = vmatpush1.msra.mxu0 0.0
  %2535 = vmatprep.subr.mxu0 0.0
  %2536 = vmatpush1.msra.mxu0 0.0
  %2537 = vmatprep.subr.mxu0 0.0
  %2538 = vmatpush1.msra.mxu0 0.0
  %2539 = vmatprep.subr.mxu0 0.0
  %2540 = vmatpush1.msra.mxu0 0.0
  %2541 = vmatprep.subr.mxu0 0.0
  %2542 = vmatpush1.msra.mxu0 0.0
  %2543 = vmatprep.subr.mxu0 0.0
  %2544 = vmatpush1.msra.mxu0 0.0
  %2545 = vmatprep.subr.mxu0 0.0
  %2546 = vmatpush1.msra.mxu0 0.0
  %2547 = vmatprep.subr.mxu0 0.0
  %2548 = vmatpush1.msra.mxu0 0.0
  %2549 = vmatprep.subr.mxu0 0.0
  %2550 = vmatpush1.msra.mxu0 0.0
  %2551 = vmatprep.subr.mxu0 0.0
  %2552 = vmatpush1.msra.mxu0 0.0
  %2553 = vmatprep.subr.mxu0 0.0
  %2554 = vmatpush1.msra.mxu0 0.0
  %2555 = vmatprep.subr.mxu0 0.0
  %2556 = vmatpush1.msra.mxu0 0.0
  %2557 = vmatprep.subr.mxu0 0.0
  %2558 = vmatpush1.msra.mxu0 0.0
  %2559 = vmatprep.subr.mxu0 0.0
  %2560 = vmatpush1.msra.mxu0 0.0
  %2561 = vmatprep.subr.mxu0 0.0
  %2562 = vmatpush1.msra.mxu0 0.0
  %2563 = vmatprep.subr.mxu0 0.0
  %2564 = vmatpush1.msra.mxu0 0.0
  %2565 = vmatprep.subr.mxu0 0.0
  %2566 = vmatpush1.msra.mxu0 0.0
  %2567 = vmatprep.subr.mxu0 0.0
  %2568 = vmatpush1.msra.mxu0 0.0
  %2569 = vmatprep.mubr.f32.mxu0 0.0
  %2570 = vmatmul.mubr.f32.gmra.mrb[0].mxu0 %v2361
  %v2571 = vpop.f32.mrb[0].mxu0
  %v2572 = vadd.f32 %v2457, %v2571
  %v2573 = vpop.f32.mrb[0].mxu0
  %2574 = vmatprep.mubr.f32.mxu0 0.0
  %2575 = vmatmul.mubr.f32.gmra.mrb[0].mxu0 %v2364
  %v2576 = vpop.f32.mrb[0].mxu0
  %v2577 = vadd.f32 %v2462, %v2576
  %v2578 = vpop.f32.mrb[0].mxu0
  %2579 = vmatprep.mubr.f32.mxu0 0.0
  %2580 = vmatmul.mubr.f32.gmra.mrb[0].mxu0 %v2367
  %v2581 = vpop.f32.mrb[0].mxu0
  %v2582 = vadd.f32 %v2467, %v2581
  %v2583 = vpop.f32.mrb[0].mxu0
  %2584 = vmatprep.mubr.f32.mxu0 0.0
  %2585 = vmatmul.mubr.f32.gmra.mrb[0].mxu0 %v2370
  %v2586 = vpop.f32.mrb[0].mxu0
  %v2587 = vadd.f32 %v2472, %v2586
  %v2588 = vpop.f32.mrb[0].mxu0
  %2589 = vmatprep.mubr.f32.mxu0 0.0
  %2590 = vmatmul.mubr.f32.gmra.mrb[0].mxu0 %v2373
  %v2591 = vpop.f32.mrb[0].mxu0
  %v2592 = vadd.f32 %v2477, %v2591
  %v2593 = vpop.f32.mrb[0].mxu0
  %2594 = vmatprep.mubr.f32.mxu0 0.0
  %2595 = vmatmul.mubr.f32.gmra.mrb[0].mxu0 %v2376
  %v2596 = vpop.f32.mrb[0].mxu0
  %v2597 = vadd.f32 %v2482, %v2596
  %v2598 = vpop.f32.mrb[0].mxu0
  %2599 = vmatprep.mubr.f32.mxu0 0.0
  %2600 = vmatmul.mubr.f32.gmra.mrb[0].mxu0 %v2379
  %v2601 = vpop.f32.mrb[0].mxu0
  %v2602 = vadd.f32 %v2487, %v2601
  %v2603 = vpop.f32.mrb[0].mxu0
  %2604 = vmatprep.mubr.f32.mxu0 0.0
  %2605 = vmatmul.mubr.f32.gmra.mrb[0].mxu0 %v2382
  %v2606 = vpop.f32.mrb[0].mxu0
  %v2607 = vadd.f32 %v2492, %v2606
  %v2608 = vpop.f32.mrb[0].mxu0
  %2609 = vmatprep.mubr.f32.mxu0 0.0
  %2610 = vmatmul.mubr.f32.gmra.mrb[0].mxu0 %v2385
  %v2611 = vpop.f32.mrb[0].mxu0
  %v2612 = vadd.f32 %v2497, %v2611
  %v2613 = vpop.f32.mrb[0].mxu0
  %2614 = vmatprep.mubr.f32.mxu0 0.0
  %2615 = vmatmul.mubr.f32.gmra.mrb[0].mxu0 %v2388
  %v2616 = vpop.f32.mrb[0].mxu0
  %v2617 = vadd.f32 %v2502, %v2616
  %v2618 = vpop.f32.mrb[0].mxu0
  %2619 = vdwg.mxu0
  %v2620 = vld [vmem:[%s10] sm:$0xf]
  %v2621 = vld [vmem:[%s11] sm:$0xff]
  %v2622 = vld [vmem:[%s11 + $0x8] sm:$0xff]
  %v2623 = vld [vmem:[%s11 + $0x10] sm:$0xff]
  %v2624 = vld [vmem:[%s11 + $0x18] sm:$0xff]
  %v2625 = vld [vmem:[%s11 + $0x20] sm:$0xff]
  %v2626 = vld [vmem:[%s11 + $0x28] sm:$0xff]
  %v2627 = vld [vmem:[%s11 + $0x30] sm:$0xff]
  %v2628 = vld [vmem:[%s11 + $0x38] sm:$0xff]
  %v2630 = vsel %vm1824, %v2572, 0
  %v2633 = vsel %vm1824, %v2577, 0
  %v2636 = vsel %vm1824, %v2582, 0
  %v2639 = vsel %vm1824, %v2587, 0
  %v2642 = vsel %vm1824, %v2592, 0
  %v2645 = vsel %vm1824, %v2597, 0
  %v2648 = vsel %vm1824, %v2602, 0
  %v2651 = vsel %vm1824, %v2607, 0
  %v2654 = vsel %vm1824, %v2612, 0
  %v2657 = vsel %vm1824, %v2617, 0
  %2659 = vmatprep.subr.mxu0 0.0
  %2660 = vmatpush1.msra.mxu0 %v2621
  %2661 = vmatprep.subr.mxu0 0.0
  %2662 = vmatpush1.msra.mxu0 %v2622
  %2663 = vmatprep.subr.mxu0 0.0
  %2664 = vmatpush1.msra.mxu0 %v2623
  %2665 = vmatprep.subr.mxu0 0.0
  %2666 = vmatpush1.msra.mxu0 %v2624
  %2667 = vmatprep.subr.mxu0 0.0
  %2668 = vmatpush1.msra.mxu0 %v2625
  %2669 = vmatprep.subr.mxu0 0.0
  %2670 = vmatpush1.msra.mxu0 %v2626
  %2671 = vmatprep.subr.mxu0 0.0
  %2672 = vmatpush1.msra.mxu0 %v2627
  %2673 = vmatprep.subr.mxu0 0.0
  %2674 = vmatpush1.msra.mxu0 %v2628
  %2675 = vmatprep.subr.mxu0 0.0
  %2676 = vmatpush1.msra.mxu0 0.0
  %2677 = vmatprep.subr.mxu0 0.0
  %2678 = vmatpush1.msra.mxu0 0.0
  %2679 = vmatprep.subr.mxu0 0.0
  %2680 = vmatpush1.msra.mxu0 0.0
  %2681 = vmatprep.subr.mxu0 0.0
  %2682 = vmatpush1.msra.mxu0 0.0
  %2683 = vmatprep.subr.mxu0 0.0
  %2684 = vmatpush1.msra.mxu0 0.0
  %2685 = vmatprep.subr.mxu0 0.0
  %2686 = vmatpush1.msra.mxu0 0.0
  %2687 = vmatprep.subr.mxu0 0.0
  %2688 = vmatpush1.msra.mxu0 0.0
  %2689 = vmatprep.subr.mxu0 0.0
  %2690 = vmatpush1.msra.mxu0 0.0
  %2691 = vmatprep.subr.mxu0 0.0
  %2692 = vmatpush1.msra.mxu0 0.0
  %2693 = vmatprep.subr.mxu0 0.0
  %2694 = vmatpush1.msra.mxu0 0.0
  %2695 = vmatprep.subr.mxu0 0.0
  %2696 = vmatpush1.msra.mxu0 0.0
  %2697 = vmatprep.subr.mxu0 0.0
  %2698 = vmatpush1.msra.mxu0 0.0
  %2699 = vmatprep.subr.mxu0 0.0
  %2700 = vmatpush1.msra.mxu0 0.0
  %2701 = vmatprep.subr.mxu0 0.0
  %2702 = vmatpush1.msra.mxu0 0.0
  %2703 = vmatprep.subr.mxu0 0.0
  %2704 = vmatpush1.msra.mxu0 0.0
  %2705 = vmatprep.subr.mxu0 0.0
  %2706 = vmatpush1.msra.mxu0 0.0
  %2707 = vmatprep.subr.mxu0 0.0
  %2708 = vmatpush1.msra.mxu0 0.0
  %2709 = vmatprep.subr.mxu0 0.0
  %2710 = vmatpush1.msra.mxu0 0.0
  %2711 = vmatprep.subr.mxu0 0.0
  %2712 = vmatpush1.msra.mxu0 0.0
  %2713 = vmatprep.subr.mxu0 0.0
  %2714 = vmatpush1.msra.mxu0 0.0
  %2715 = vmatprep.subr.mxu0 0.0
  %2716 = vmatpush1.msra.mxu0 0.0
  %2717 = vmatprep.subr.mxu0 0.0
  %2718 = vmatpush1.msra.mxu0 0.0
  %2719 = vmatprep.subr.mxu0 0.0
  %2720 = vmatpush1.msra.mxu0 0.0
  %2721 = vmatprep.subr.mxu0 0.0
  %2722 = vmatpush1.msra.mxu0 0.0
  %2723 = vmatprep.mubr.f32.mxu0 0.0
  %2724 = vmatmul.mubr.f32.gmra.mrb[0].mxu0 %v2630
  %v2725 = vpop.f32.mrb[0].mxu0
  %v2726 = vadd.f32 0.0, %v2725
  %v2727 = vpop.f32.mrb[0].mxu0
  %2728 = vmatprep.mubr.f32.mxu0 0.0
  %2729 = vmatmul.mubr.f32.gmra.mrb[0].mxu0 %v2633
  %v2730 = vpop.f32.mrb[0].mxu0
  %v2731 = vadd.f32 0.0, %v2730
  %v2732 = vpop.f32.mrb[0].mxu0
  %2733 = vmatprep.mubr.f32.mxu0 0.0
  %2734 = vmatmul.mubr.f32.gmra.mrb[0].mxu0 %v2636
  %v2735 = vpop.f32.mrb[0].mxu0
  %v2736 = vadd.f32 0.0, %v2735
  %v2737 = vpop.f32.mrb[0].mxu0
  %2738 = vmatprep.mubr.f32.mxu0 0.0
  %2739 = vmatmul.mubr.f32.gmra.mrb[0].mxu0 %v2639
  %v2740 = vpop.f32.mrb[0].mxu0
  %v2741 = vadd.f32 0.0, %v2740
  %v2742 = vpop.f32.mrb[0].mxu0
  %2743 = vmatprep.mubr.f32.mxu0 0.0
  %2744 = vmatmul.mubr.f32.gmra.mrb[0].mxu0 %v2642
  %v2745 = vpop.f32.mrb[0].mxu0
  %v2746 = vadd.f32 0.0, %v2745
  %v2747 = vpop.f32.mrb[0].mxu0
  %2748 = vmatprep.mubr.f32.mxu0 0.0
  %2749 = vmatmul.mubr.f32.gmra.mrb[0].mxu0 %v2645
  %v2750 = vpop.f32.mrb[0].mxu0
  %v2751 = vadd.f32 0.0, %v2750
  %v2752 = vpop.f32.mrb[0].mxu0
  %2753 = vmatprep.mubr.f32.mxu0 0.0
  %2754 = vmatmul.mubr.f32.gmra.mrb[0].mxu0 %v2648
  %v2755 = vpop.f32.mrb[0].mxu0
  %v2756 = vadd.f32 0.0, %v2755
  %v2757 = vpop.f32.mrb[0].mxu0
  %2758 = vmatprep.mubr.f32.mxu0 0.0
  %2759 = vmatmul.mubr.f32.gmra.mrb[0].mxu0 %v2651
  %v2760 = vpop.f32.mrb[0].mxu0
  %v2761 = vadd.f32 0.0, %v2760
  %v2762 = vpop.f32.mrb[0].mxu0
  %2763 = vmatprep.mubr.f32.mxu0 0.0
  %2764 = vmatmul.mubr.f32.gmra.mrb[0].mxu0 %v2654
  %v2765 = vpop.f32.mrb[0].mxu0
  %v2766 = vadd.f32 0.0, %v2765
  %v2767 = vpop.f32.mrb[0].mxu0
  %2768 = vmatprep.mubr.f32.mxu0 0.0
  %2769 = vmatmul.mubr.f32.gmra.mrb[0].mxu0 %v2657
  %v2770 = vpop.f32.mrb[0].mxu0
  %v2771 = vadd.f32 0.0, %v2770
  %v2772 = vpop.f32.mrb[0].mxu0
  %2773 = vdwg.mxu0
  %v2775 = vsel %vm944, %v81, 0
  %v2778 = vsel %vm944, %v82, 0
  %v2781 = vsel %vm944, %v83, 0
  %v2784 = vsel %vm944, %v84, 0
  %v2787 = vsel %vm944, %v85, 0
  %v2790 = vsel %vm944, %v86, 0
  %v2793 = vsel %vm944, %v87, 0
  %v2796 = vsel %vm944, %v88, 0
  %v2799 = vsel %vm944, %v89, 0
  %v2802 = vsel %vm944, %v90, 0
  %v2805 = vsel %vm1065, %v2620, 0
  %2807 = vmatprep.subr.mxu0 0.0
  %2808 = vmatpush1.msra.mxu0 %v2805
  %2809 = vmatprep.subr.mxu0 0.0
  %2810 = vmatpush1.msra.mxu0 0.0
  %2811 = vmatprep.subr.mxu0 0.0
  %2812 = vmatpush1.msra.mxu0 0.0
  %2813 = vmatprep.subr.mxu0 0.0
  %2814 = vmatpush1.msra.mxu0 0.0
  %2815 = vmatprep.subr.mxu0 0.0
  %2816 = vmatpush1.msra.mxu0 0.0
  %2817 = vmatprep.subr.mxu0 0.0
  %2818 = vmatpush1.msra.mxu0 0.0
  %2819 = vmatprep.subr.mxu0 0.0
  %2820 = vmatpush1.msra.mxu0 0.0
  %2821 = vmatprep.subr.mxu0 0.0
  %2822 = vmatpush1.msra.mxu0 0.0
  %2823 = vmatprep.subr.mxu0 0.0
  %2824 = vmatpush1.msra.mxu0 0.0
  %2825 = vmatprep.subr.mxu0 0.0
  %2826 = vmatpush1.msra.mxu0 0.0
  %2827 = vmatprep.subr.mxu0 0.0
  %2828 = vmatpush1.msra.mxu0 0.0
  %2829 = vmatprep.subr.mxu0 0.0
  %2830 = vmatpush1.msra.mxu0 0.0
  %2831 = vmatprep.subr.mxu0 0.0
  %2832 = vmatpush1.msra.mxu0 0.0
  %2833 = vmatprep.subr.mxu0 0.0
  %2834 = vmatpush1.msra.mxu0 0.0
  %2835 = vmatprep.subr.mxu0 0.0
  %2836 = vmatpush1.msra.mxu0 0.0
  %2837 = vmatprep.subr.mxu0 0.0
  %2838 = vmatpush1.msra.mxu0 0.0
  %2839 = vmatprep.subr.mxu0 0.0
  %2840 = vmatpush1.msra.mxu0 0.0
  %2841 = vmatprep.subr.mxu0 0.0
  %2842 = vmatpush1.msra.mxu0 0.0
  %2843 = vmatprep.subr.mxu0 0.0
  %2844 = vmatpush1.msra.mxu0 0.0
  %2845 = vmatprep.subr.mxu0 0.0
  %2846 = vmatpush1.msra.mxu0 0.0
  %2847 = vmatprep.subr.mxu0 0.0
  %2848 = vmatpush1.msra.mxu0 0.0
  %2849 = vmatprep.subr.mxu0 0.0
  %2850 = vmatpush1.msra.mxu0 0.0
  %2851 = vmatprep.subr.mxu0 0.0
  %2852 = vmatpush1.msra.mxu0 0.0
  %2853 = vmatprep.subr.mxu0 0.0
  %2854 = vmatpush1.msra.mxu0 0.0
  %2855 = vmatprep.subr.mxu0 0.0
  %2856 = vmatpush1.msra.mxu0 0.0
  %2857 = vmatprep.subr.mxu0 0.0
  %2858 = vmatpush1.msra.mxu0 0.0
  %2859 = vmatprep.subr.mxu0 0.0
  %2860 = vmatpush1.msra.mxu0 0.0
  %2861 = vmatprep.subr.mxu0 0.0
  %2862 = vmatpush1.msra.mxu0 0.0
  %2863 = vmatprep.subr.mxu0 0.0
  %2864 = vmatpush1.msra.mxu0 0.0
  %2865 = vmatprep.subr.mxu0 0.0
  %2866 = vmatpush1.msra.mxu0 0.0
  %2867 = vmatprep.subr.mxu0 0.0
  %2868 = vmatpush1.msra.mxu0 0.0
  %2869 = vmatprep.subr.mxu0 0.0
  %2870 = vmatpush1.msra.mxu0 0.0
  %2871 = vmatprep.mubr.f32.mxu0 0.0
  %2872 = vmatmul.mubr.f32.gmra.mrb[0].mxu0 %v2775
  %v2873 = vpop.f32.mrb[0].mxu0
  %v2874 = vadd.f32 %v2726, %v2873
  %v2875 = vpop.f32.mrb[0].mxu0
  %2876 = vmatprep.mubr.f32.mxu0 0.0
  %2877 = vmatmul.mubr.f32.gmra.mrb[0].mxu0 %v2778
  %v2878 = vpop.f32.mrb[0].mxu0
  %v2879 = vadd.f32 %v2731, %v2878
  %v2880 = vpop.f32.mrb[0].mxu0
  %2881 = vmatprep.mubr.f32.mxu0 0.0
  %2882 = vmatmul.mubr.f32.gmra.mrb[0].mxu0 %v2781
  %v2883 = vpop.f32.mrb[0].mxu0
  %v2884 = vadd.f32 %v2736, %v2883
  %v2885 = vpop.f32.mrb[0].mxu0
  %2886 = vmatprep.mubr.f32.mxu0 0.0
  %2887 = vmatmul.mubr.f32.gmra.mrb[0].mxu0 %v2784
  %v2888 = vpop.f32.mrb[0].mxu0
  %v2889 = vadd.f32 %v2741, %v2888
  %v2890 = vpop.f32.mrb[0].mxu0
  %2891 = vmatprep.mubr.f32.mxu0 0.0
  %2892 = vmatmul.mubr.f32.gmra.mrb[0].mxu0 %v2787
  %v2893 = vpop.f32.mrb[0].mxu0
  %v2894 = vadd.f32 %v2746, %v2893
  %v2895 = vpop.f32.mrb[0].mxu0
  %2896 = vmatprep.mubr.f32.mxu0 0.0
  %2897 = vmatmul.mubr.f32.gmra.mrb[0].mxu0 %v2790
  %v2898 = vpop.f32.mrb[0].mxu0
  %v2899 = vadd.f32 %v2751, %v2898
  %v2900 = vpop.f32.mrb[0].mxu0
  %2901 = vmatprep.mubr.f32.mxu0 0.0
  %2902 = vmatmul.mubr.f32.gmra.mrb[0].mxu0 %v2793
  %v2903 = vpop.f32.mrb[0].mxu0
  %v2904 = vadd.f32 %v2756, %v2903
  %v2905 = vpop.f32.mrb[0].mxu0
  %2906 = vmatprep.mubr.f32.mxu0 0.0
  %2907 = vmatmul.mubr.f32.gmra.mrb[0].mxu0 %v2796
  %v2908 = vpop.f32.mrb[0].mxu0
  %v2909 = vadd.f32 %v2761, %v2908
  %v2910 = vpop.f32.mrb[0].mxu0
  %2911 = vmatprep.mubr.f32.mxu0 0.0
  %2912 = vmatmul.mubr.f32.gmra.mrb[0].mxu0 %v2799
  %v2913 = vpop.f32.mrb[0].mxu0
  %v2914 = vadd.f32 %v2766, %v2913
  %v2915 = vpop.f32.mrb[0].mxu0
  %2916 = vmatprep.mubr.f32.mxu0 0.0
  %2917 = vmatmul.mubr.f32.gmra.mrb[0].mxu0 %v2802
  %v2918 = vpop.f32.mrb[0].mxu0
  %v2919 = vadd.f32 %v2771, %v2918
  %v2920 = vpop.f32.mrb[0].mxu0
  %2921 = vdwg.mxu0
  %v2922 = vld [vmem:[%s12] sm:$0x1]
  %v2924 = vlaneseq
  %v2925 = vshrl.u32 %v2924, 7
  %v2926 = vsub.s32 0, %v2925
  %v2927 = vrot.slane %v2922, %v2926
  %v2929 = vadd.f32 %v2874, %v2927
  %v2930 = vadd.f32 %v2879, %v2927
  %v2931 = vadd.f32 %v2884, %v2927
  %v2932 = vadd.f32 %v2889, %v2927
  %v2933 = vadd.f32 %v2894, %v2927
  %v2934 = vadd.f32 %v2899, %v2927
  %v2935 = vadd.f32 %v2904, %v2927
  %v2936 = vadd.f32 %v2909, %v2927
  %v2937 = vadd.f32 %v2914, %v2927
  %v2938 = vadd.f32 %v2919, %v2927
  %v2939 = vmax.f32 %v2929, 0.0
  %v2940 = vmax.f32 %v2930, 0.0
  %v2941 = vmax.f32 %v2931, 0.0
  %v2942 = vmax.f32 %v2932, 0.0
  %v2943 = vmax.f32 %v2933, 0.0
  %v2944 = vmax.f32 %v2934, 0.0
  %v2945 = vmax.f32 %v2935, 0.0
  %v2946 = vmax.f32 %v2936, 0.0
  %v2947 = vmax.f32 %v2937, 0.0
  %v2948 = vmax.f32 %v2938, 0.0
  %v2949 = vld [vmem:[%s13] sm:$0xff]
  %v2950 = vld [vmem:[%s13 + $0x8] sm:$0xff]
  %v2951 = vld [vmem:[%s13 + $0x10] sm:$0xff]
  %v2952 = vld [vmem:[%s13 + $0x18] sm:$0xff]
  %v2953 = vld [vmem:[%s14] sm:$0x1]
  %v2955 = vlaneseq
  %v2956 = vshrl.u32 %v2955, 7
  %v2957 = vsub.s32 0, %v2956
  %v2958 = vrot.slane %v2953, %v2957
  %vm2960 = vcmask 261120
  %v2962 = vsel %vm2960, %v2939, 0
  %v2965 = vsel %vm2960, %v2940, 0
  %v2968 = vsel %vm2960, %v2941, 0
  %v2971 = vsel %vm2960, %v2942, 0
  %v2974 = vsel %vm2960, %v2943, 0
  %v2977 = vsel %vm2960, %v2944, 0
  %v2980 = vsel %vm2960, %v2945, 0
  %v2983 = vsel %vm2960, %v2946, 0
  %v2986 = vsel %vm2960, %v2947, 0
  %v2989 = vsel %vm2960, %v2948, 0
  %2991 = vmatprep.subr.mxu0 0.0
  %2992 = vmatpush1.msra.mxu0 %v2949
  %2993 = vmatprep.subr.mxu0 0.0
  %2994 = vmatpush1.msra.mxu0 %v2950
  %2995 = vmatprep.subr.mxu0 0.0
  %2996 = vmatpush1.msra.mxu0 %v2951
  %2997 = vmatprep.subr.mxu0 0.0
  %2998 = vmatpush1.msra.mxu0 %v2952
  %2999 = vmatprep.subr.mxu0 0.0
  %3000 = vmatpush1.msra.mxu0 0.0
  %3001 = vmatprep.subr.mxu0 0.0
  %3002 = vmatpush1.msra.mxu0 0.0
  %3003 = vmatprep.subr.mxu0 0.0
  %3004 = vmatpush1.msra.mxu0 0.0
  %3005 = vmatprep.subr.mxu0 0.0
  %3006 = vmatpush1.msra.mxu0 0.0
  %3007 = vmatprep.subr.mxu0 0.0
  %3008 = vmatpush1.msra.mxu0 0.0
  %3009 = vmatprep.subr.mxu0 0.0
  %3010 = vmatpush1.msra.mxu0 0.0
  %3011 = vmatprep.subr.mxu0 0.0
  %3012 = vmatpush1.msra.mxu0 0.0
  %3013 = vmatprep.subr.mxu0 0.0
  %3014 = vmatpush1.msra.mxu0 0.0
  %3015 = vmatprep.subr.mxu0 0.0
  %3016 = vmatpush1.msra.mxu0 0.0
  %3017 = vmatprep.subr.mxu0 0.0
  %3018 = vmatpush1.msra.mxu0 0.0
  %3019 = vmatprep.subr.mxu0 0.0
  %3020 = vmatpush1.msra.mxu0 0.0
  %3021 = vmatprep.subr.mxu0 0.0
  %3022 = vmatpush1.msra.mxu0 0.0
  %3023 = vmatprep.subr.mxu0 0.0
  %3024 = vmatpush1.msra.mxu0 0.0
  %3025 = vmatprep.subr.mxu0 0.0
  %3026 = vmatpush1.msra.mxu0 0.0
  %3027 = vmatprep.subr.mxu0 0.0
  %3028 = vmatpush1.msra.mxu0 0.0
  %3029 = vmatprep.subr.mxu0 0.0
  %3030 = vmatpush1.msra.mxu0 0.0
  %3031 = vmatprep.subr.mxu0 0.0
  %3032 = vmatpush1.msra.mxu0 0.0
  %3033 = vmatprep.subr.mxu0 0.0
  %3034 = vmatpush1.msra.mxu0 0.0
  %3035 = vmatprep.subr.mxu0 0.0
  %3036 = vmatpush1.msra.mxu0 0.0
  %3037 = vmatprep.subr.mxu0 0.0
  %3038 = vmatpush1.msra.mxu0 0.0
  %3039 = vmatprep.subr.mxu0 0.0
  %3040 = vmatpush1.msra.mxu0 0.0
  %3041 = vmatprep.subr.mxu0 0.0
  %3042 = vmatpush1.msra.mxu0 0.0
  %3043 = vmatprep.subr.mxu0 0.0
  %3044 = vmatpush1.msra.mxu0 0.0
  %3045 = vmatprep.subr.mxu0 0.0
  %3046 = vmatpush1.msra.mxu0 0.0
  %3047 = vmatprep.subr.mxu0 0.0
  %3048 = vmatpush1.msra.mxu0 0.0
  %3049 = vmatprep.subr.mxu0 0.0
  %3050 = vmatpush1.msra.mxu0 0.0
  %3051 = vmatprep.subr.mxu0 0.0
  %3052 = vmatpush1.msra.mxu0 0.0
  %3053 = vmatprep.subr.mxu0 0.0
  %3054 = vmatpush1.msra.mxu0 0.0
  %3055 = vmatprep.mubr.f32.mxu0 0.0
  %3056 = vmatmul.mubr.f32.gmra.mrb[0].mxu0 %v2962
  %v3057 = vpop.f32.mrb[0].mxu0
  %v3058 = vadd.f32 %v2958, %v3057
  %v3059 = vpop.f32.mrb[0].mxu0
  %3060 = vmatprep.mubr.f32.mxu0 0.0
  %3061 = vmatmul.mubr.f32.gmra.mrb[0].mxu0 %v2965
  %v3062 = vpop.f32.mrb[0].mxu0
  %v3063 = vadd.f32 %v2958, %v3062
  %v3064 = vpop.f32.mrb[0].mxu0
  %3065 = vmatprep.mubr.f32.mxu0 0.0
  %3066 = vmatmul.mubr.f32.gmra.mrb[0].mxu0 %v2968
  %v3067 = vpop.f32.mrb[0].mxu0
  %v3068 = vadd.f32 %v2958, %v3067
  %v3069 = vpop.f32.mrb[0].mxu0
  %3070 = vmatprep.mubr.f32.mxu0 0.0
  %3071 = vmatmul.mubr.f32.gmra.mrb[0].mxu0 %v2971
  %v3072 = vpop.f32.mrb[0].mxu0
  %v3073 = vadd.f32 %v2958, %v3072
  %v3074 = vpop.f32.mrb[0].mxu0
  %3075 = vmatprep.mubr.f32.mxu0 0.0
  %3076 = vmatmul.mubr.f32.gmra.mrb[0].mxu0 %v2974
  %v3077 = vpop.f32.mrb[0].mxu0
  %v3078 = vadd.f32 %v2958, %v3077
  %v3079 = vpop.f32.mrb[0].mxu0
  %3080 = vmatprep.mubr.f32.mxu0 0.0
  %3081 = vmatmul.mubr.f32.gmra.mrb[0].mxu0 %v2977
  %v3082 = vpop.f32.mrb[0].mxu0
  %v3083 = vadd.f32 %v2958, %v3082
  %v3084 = vpop.f32.mrb[0].mxu0
  %3085 = vmatprep.mubr.f32.mxu0 0.0
  %3086 = vmatmul.mubr.f32.gmra.mrb[0].mxu0 %v2980
  %v3087 = vpop.f32.mrb[0].mxu0
  %v3088 = vadd.f32 %v2958, %v3087
  %v3089 = vpop.f32.mrb[0].mxu0
  %3090 = vmatprep.mubr.f32.mxu0 0.0
  %3091 = vmatmul.mubr.f32.gmra.mrb[0].mxu0 %v2983
  %v3092 = vpop.f32.mrb[0].mxu0
  %v3093 = vadd.f32 %v2958, %v3092
  %v3094 = vpop.f32.mrb[0].mxu0
  %3095 = vmatprep.mubr.f32.mxu0 0.0
  %3096 = vmatmul.mubr.f32.gmra.mrb[0].mxu0 %v2986
  %v3097 = vpop.f32.mrb[0].mxu0
  %v3098 = vadd.f32 %v2958, %v3097
  %v3099 = vpop.f32.mrb[0].mxu0
  %3100 = vmatprep.mubr.f32.mxu0 0.0
  %3101 = vmatmul.mubr.f32.gmra.mrb[0].mxu0 %v2989
  %v3102 = vpop.f32.mrb[0].mxu0
  %v3103 = vadd.f32 %v2958, %v3102
  %v3104 = vpop.f32.mrb[0].mxu0
  %3105 = vdwg.mxu0
  %v3106 = vmax.f32 %v3058, 0.0
  %v3107 = vmax.f32 %v3063, 0.0
  %v3108 = vmax.f32 %v3068, 0.0
  %v3109 = vmax.f32 %v3073, 0.0
  %v3110 = vmax.f32 %v3078, 0.0
  %v3111 = vmax.f32 %v3083, 0.0
  %v3112 = vmax.f32 %v3088, 0.0
  %v3113 = vmax.f32 %v3093, 0.0
  %v3114 = vmax.f32 %v3098, 0.0
  %v3115 = vmax.f32 %v3103, 0.0
  %v3116 = vld [vmem:[%s15] sm:$0xff]
  %v3117 = vld [vmem:[%s15 + $0x8] sm:$0xff]
  %v3118 = vld [vmem:[%s15 + $0x10] sm:$0xff]
  %v3119 = vld [vmem:[%s15 + $0x18] sm:$0xff]
  %v3120 = vld [vmem:[%s16] sm:$0x1]
  %v3122 = vlaneseq
  %v3123 = vshrl.u32 %v3122, 7
  %v3124 = vsub.s32 0, %v3123
  %v3125 = vrot.slane %v3120, %v3124
  %v3128 = vsel %vm2960, %v3106, 0
  %v3131 = vsel %vm2960, %v3107, 0
  %v3134 = vsel %vm2960, %v3108, 0
  %v3137 = vsel %vm2960, %v3109, 0
  %v3140 = vsel %vm2960, %v3110, 0
  %v3143 = vsel %vm2960, %v3111, 0
  %v3146 = vsel %vm2960, %v3112, 0
  %v3149 = vsel %vm2960, %v3113, 0
  %v3152 = vsel %vm2960, %v3114, 0
  %v3155 = vsel %vm2960, %v3115, 0
  %3157 = vmatprep.subr.mxu0 0.0
  %3158 = vmatpush1.msra.mxu0 %v3116
  %3159 = vmatprep.subr.mxu0 0.0
  %3160 = vmatpush1.msra.mxu0 %v3117
  %3161 = vmatprep.subr.mxu0 0.0
  %3162 = vmatpush1.msra.mxu0 %v3118
  %3163 = vmatprep.subr.mxu0 0.0
  %3164 = vmatpush1.msra.mxu0 %v3119
  %3165 = vmatprep.subr.mxu0 0.0
  %3166 = vmatpush1.msra.mxu0 0.0
  %3167 = vmatprep.subr.mxu0 0.0
  %3168 = vmatpush1.msra.mxu0 0.0
  %3169 = vmatprep.subr.mxu0 0.0
  %3170 = vmatpush1.msra.mxu0 0.0
  %3171 = vmatprep.subr.mxu0 0.0
  %3172 = vmatpush1.msra.mxu0 0.0
  %3173 = vmatprep.subr.mxu0 0.0
  %3174 = vmatpush1.msra.mxu0 0.0
  %3175 = vmatprep.subr.mxu0 0.0
  %3176 = vmatpush1.msra.mxu0 0.0
  %3177 = vmatprep.subr.mxu0 0.0
  %3178 = vmatpush1.msra.mxu0 0.0
  %3179 = vmatprep.subr.mxu0 0.0
  %3180 = vmatpush1.msra.mxu0 0.0
  %3181 = vmatprep.subr.mxu0 0.0
  %3182 = vmatpush1.msra.mxu0 0.0
  %3183 = vmatprep.subr.mxu0 0.0
  %3184 = vmatpush1.msra.mxu0 0.0
  %3185 = vmatprep.subr.mxu0 0.0
  %3186 = vmatpush1.msra.mxu0 0.0
  %3187 = vmatprep.subr.mxu0 0.0
  %3188 = vmatpush1.msra.mxu0 0.0
  %3189 = vmatprep.subr.mxu0 0.0
  %3190 = vmatpush1.msra.mxu0 0.0
  %3191 = vmatprep.subr.mxu0 0.0
  %3192 = vmatpush1.msra.mxu0 0.0
  %3193 = vmatprep.subr.mxu0 0.0
  %3194 = vmatpush1.msra.mxu0 0.0
  %3195 = vmatprep.subr.mxu0 0.0
  %3196 = vmatpush1.msra.mxu0 0.0
  %3197 = vmatprep.subr.mxu0 0.0
  %3198 = vmatpush1.msra.mxu0 0.0
  %3199 = vmatprep.subr.mxu0 0.0
  %3200 = vmatpush1.msra.mxu0 0.0
  %3201 = vmatprep.subr.mxu0 0.0
  %3202 = vmatpush1.msra.mxu0 0.0
  %3203 = vmatprep.subr.mxu0 0.0
  %3204 = vmatpush1.msra.mxu0 0.0
  %3205 = vmatprep.subr.mxu0 0.0
  %3206 = vmatpush1.msra.mxu0 0.0
  %3207 = vmatprep.subr.mxu0 0.0
  %3208 = vmatpush1.msra.mxu0 0.0
  %3209 = vmatprep.subr.mxu0 0.0
  %3210 = vmatpush1.msra.mxu0 0.0
  %3211 = vmatprep.subr.mxu0 0.0
  %3212 = vmatpush1.msra.mxu0 0.0
  %3213 = vmatprep.subr.mxu0 0.0
  %3214 = vmatpush1.msra.mxu0 0.0
  %3215 = vmatprep.subr.mxu0 0.0
  %3216 = vmatpush1.msra.mxu0 0.0
  %3217 = vmatprep.subr.mxu0 0.0
  %3218 = vmatpush1.msra.mxu0 0.0
  %3219 = vmatprep.subr.mxu0 0.0
  %3220 = vmatpush1.msra.mxu0 0.0
  %3221 = vmatprep.mubr.f32.mxu0 0.0
  %3222 = vmatmul.mubr.f32.gmra.mrb[0].mxu0 %v3128
  %v3223 = vpop.f32.mrb[0].mxu0
  %v3224 = vadd.f32 %v3125, %v3223
  %v3225 = vpop.f32.mrb[0].mxu0
  %3226 = vmatprep.mubr.f32.mxu0 0.0
  %3227 = vmatmul.mubr.f32.gmra.mrb[0].mxu0 %v3131
  %v3228 = vpop.f32.mrb[0].mxu0
  %v3229 = vadd.f32 %v3125, %v3228
  %v3230 = vpop.f32.mrb[0].mxu0
  %3231 = vmatprep.mubr.f32.mxu0 0.0
  %3232 = vmatmul.mubr.f32.gmra.mrb[0].mxu0 %v3134
  %v3233 = vpop.f32.mrb[0].mxu0
  %v3234 = vadd.f32 %v3125, %v3233
  %v3235 = vpop.f32.mrb[0].mxu0
  %3236 = vmatprep.mubr.f32.mxu0 0.0
  %3237 = vmatmul.mubr.f32.gmra.mrb[0].mxu0 %v3137
  %v3238 = vpop.f32.mrb[0].mxu0
  %v3239 = vadd.f32 %v3125, %v3238
  %v3240 = vpop.f32.mrb[0].mxu0
  %3241 = vmatprep.mubr.f32.mxu0 0.0
  %3242 = vmatmul.mubr.f32.gmra.mrb[0].mxu0 %v3140
  %v3243 = vpop.f32.mrb[0].mxu0
  %v3244 = vadd.f32 %v3125, %v3243
  %v3245 = vpop.f32.mrb[0].mxu0
  %3246 = vmatprep.mubr.f32.mxu0 0.0
  %3247 = vmatmul.mubr.f32.gmra.mrb[0].mxu0 %v3143
  %v3248 = vpop.f32.mrb[0].mxu0
  %v3249 = vadd.f32 %v3125, %v3248
  %v3250 = vpop.f32.mrb[0].mxu0
  %3251 = vmatprep.mubr.f32.mxu0 0.0
  %3252 = vmatmul.mubr.f32.gmra.mrb[0].mxu0 %v3146
  %v3253 = vpop.f32.mrb[0].mxu0
  %v3254 = vadd.f32 %v3125, %v3253
  %v3255 = vpop.f32.mrb[0].mxu0
  %3256 = vmatprep.mubr.f32.mxu0 0.0
  %3257 = vmatmul.mubr.f32.gmra.mrb[0].mxu0 %v3149
  %v3258 = vpop.f32.mrb[0].mxu0
  %v3259 = vadd.f32 %v3125, %v3258
  %v3260 = vpop.f32.mrb[0].mxu0
  %3261 = vmatprep.mubr.f32.mxu0 0.0
  %3262 = vmatmul.mubr.f32.gmra.mrb[0].mxu0 %v3152
  %v3263 = vpop.f32.mrb[0].mxu0
  %v3264 = vadd.f32 %v3125, %v3263
  %v3265 = vpop.f32.mrb[0].mxu0
  %3266 = vmatprep.mubr.f32.mxu0 0.0
  %3267 = vmatmul.mubr.f32.gmra.mrb[0].mxu0 %v3155
  %v3268 = vpop.f32.mrb[0].mxu0
  %v3269 = vadd.f32 %v3125, %v3268
  %v3270 = vpop.f32.mrb[0].mxu0
  %3271 = vdwg.mxu0
  %v3272 = vadd.f32 %v81, %v3224
  %v3273 = vadd.f32 %v82, %v3229
  %v3274 = vadd.f32 %v83, %v3234
  %v3275 = vadd.f32 %v84, %v3239
  %v3276 = vadd.f32 %v85, %v3244
  %v3277 = vadd.f32 %v86, %v3249
  %v3278 = vadd.f32 %v87, %v3254
  %v3279 = vadd.f32 %v88, %v3259
  %v3280 = vadd.f32 %v89, %v3264
  %v3281 = vadd.f32 %v90, %v3269
  %3282 = vst.msk [vmem:[#allocation2] sm:$0xff] %vm944, %v3272
  %3283 = vst.msk [vmem:[#allocation2 + $0x8] sm:$0xff] %vm944, %v3273
  %3284 = vst.msk [vmem:[#allocation2 + $0x10] sm:$0xff] %vm944, %v3274
  %3285 = vst.msk [vmem:[#allocation2 + $0x18] sm:$0xff] %vm944, %v3275
  %3286 = vst.msk [vmem:[#allocation2 + $0x20] sm:$0xff] %vm944, %v3276
  %3287 = vst.msk [vmem:[#allocation2 + $0x28] sm:$0xff] %vm944, %v3277
  %3288 = vst.msk [vmem:[#allocation2 + $0x30] sm:$0xff] %vm944, %v3278
  %3289 = vst.msk [vmem:[#allocation2 + $0x38] sm:$0xff] %vm944, %v3279
  %3290 = vst.msk [vmem:[#allocation2 + $0x40] sm:$0xff] %vm944, %v3280
  %3291 = vst.msk [vmem:[#allocation2 + $0x48] sm:$0xff] %vm944, %v3281
  %3292 = vst.msk [vmem:[%s17] sm:$0xff] %vm944, %v3272
  %3293 = vst.msk [vmem:[%s17 + $0x8] sm:$0xff] %vm944, %v3273
  %3294 = vst.msk [vmem:[%s17 + $0x10] sm:$0xff] %vm944, %v3274
  %3295 = vst.msk [vmem:[%s17 + $0x18] sm:$0xff] %vm944, %v3275
  %3296 = vst.msk [vmem:[%s17 + $0x20] sm:$0xff] %vm944, %v3276
  %3297 = vst.msk [vmem:[%s17 + $0x28] sm:$0xff] %vm944, %v3277
  %3298 = vst.msk [vmem:[%s17 + $0x30] sm:$0xff] %vm944, %v3278
  %3299 = vst.msk [vmem:[%s17 + $0x38] sm:$0xff] %vm944, %v3279
  %3300 = vst.msk [vmem:[%s17 + $0x40] sm:$0xff] %vm944, %v3280
  %3301 = vst.msk [vmem:[%s17 + $0x48] sm:$0xff] %vm944, %v3281
  // Predicated region
  $region74: #{tpu_custom_call.1} parent=0 // pred_check
    _
  $region75: #{tpu_custom_call.1} parent=0 // pred_check_branch
    %3303 = sbr.rel (0) target = $region77
  $region76: #{tpu_custom_call.1} parent=0 // pred_region
    _
  $region77: #{tpu_custom_call.1} parent=0 // pred_fallthru
    _
  // Predicated region
  $region78: #{tpu_custom_call.1} parent=0 // pred_check
    _
  $region79: #{tpu_custom_call.1} parent=0 // pred_check_branch
    %3305 = sbr.rel (0) target = $region81
  $region80: #{tpu_custom_call.1} parent=0 // pred_region
    _
  $region81: #{tpu_custom_call.1} parent=0 // pred_fallthru
    _

</llo_original>
